<compile_context>
chip_gen: v7x
topology: tpu7x:2x2x1
jax: 0.10.0
libtpu: 0.0.40
codegen_flags: <defaults>
</compile_context>

<pallas_src>
import functools

import jax
import jax.numpy as jnp
from jax.experimental import pallas as pl
from jax.experimental.pallas import tpu as pltpu

EPS = 1e-5
NEG_SLOPE = 0.01


def _ceil_to(x, m):
    return (x + m - 1) // m * m


def _block_vmem_bytes(shape, itemsize):
    """Rough VMEM footprint of one block (lane pad to 128, sublane pad to 8)."""
    s = list(shape)
    s[-1] = _ceil_to(s[-1], 128)
    if len(s) >= 2:
        s[-2] = _ceil_to(s[-2], 8)
    n = 1
    for d in s:
        n *= d
    return n * itemsize


def _vmem_budget_cap():
    """VMEM we are willing to request: <= 64 MiB and <= 3/4 of physical."""
    cap = 128 * 1024 * 1024
    try:
        cap = int(pltpu.get_tpu_info().vmem_capacity_bytes)
    except Exception:
        pass
    return min(64 * 1024 * 1024, (cap * 3) // 4)


def _vmem_limit(est_bytes, cap_bytes):
    want = max(int(est_bytes * 1.3), 32 * 1024 * 1024)
    if want <= cap_bytes:
        return want
    # Need more than the comfortable cap: ask for what we actually need.
    return max(cap_bytes, int(est_bytes * 1.1))


def _pick_row_tile(h_out, w_out, k_fold, c_pad, target_pixels=2048):
    """Output rows per grid step: ~target_pixels pixels, but cap so the im2col
    lhs (bf16) + f32 accumulator stay ~<= 8 MiB of VMEM temporaries."""
    bytes_per_px = 2 * max(k_fold, 128) + 4 * c_pad
    cap_px = max(256, (8 * 1024 * 1024) // bytes_per_px)
    px = min(target_pixels, cap_px)
    th = max(1, px // max(w_out, 1))
    return min(h_out, th)


def _resident_spec(block_shape, index_map, block_bytes, budget):
    """BlockSpec for an operand whose block index is constant along the
    row-tile axis.  Drop to a single pipeline buffer when double-buffering it
    would consume a meaningful fraction of the VMEM budget."""
    single = 2 * block_bytes > budget // 4
    if single:
        spec = pl.BlockSpec(block_shape, index_map, pipeline_mode=pl.Buffered(1))
    else:
        spec = pl.BlockSpec(block_shape, index_map)
    return spec, (1 if single else 2)


def _conv_stats_kernel(x_ref, w_ref, raw_ref, stats_ref, *,
                       KH, KW, TH, Wout, Cin, Cout, Cpad, Kf, Hout):
    """Grid = (N, T).  One step: conv for TH output rows + tile statistics.

    x_ref:     (1, Hp, Wp, Cin)     padded NHWC sample, bf16 (resident per n)
    w_ref:     (Kf, Cpad)           folded conv weights, bf16 (grid-invariant)
    raw_ref:   (1, TH, Wout, Cout)  raw conv output tile, bf16 (un-padded C)
    stats_ref: (1, 1, 2, Cout)      this tile's [sum; sum of squares], f32
    """
    t = pl.program_id(1)
    row0 = t * TH
    M = TH * Wout

    # Build the im2col lhs tile in VMEM: KH*KW shifted views of the resident
    # padded sample, concatenated along the channel (lane) axis.
    taps = [x_ref[0, pl.ds(row0 + kh, TH), pl.ds(kw, Wout), :]
            for kh in range(KH) for kw in range(KW)]
    lhs3 = taps[0] if len(taps) == 1 else jnp.concatenate(taps, axis=-1)
    lhs = lhs3.reshape(M, Kf)                                   # bf16

    # One MXU contraction with K = KH*KW*Cin, f32 accumulation.
    acc = jnp.dot(lhs, w_ref[...], preferred_element_type=jnp.float32)  # (M, Cpad)
    accv = acc if Cout == Cpad else acc[:, :Cout]
    raw_ref[0] = accv.reshape(TH, Wout, Cout).astype(raw_ref.dtype)

    # Per-tile per-channel sum / sum-of-squares.  For a ragged last tile the
    # padded rows (>= Hout) are masked out of the statistics.
    if Hout % TH != 0:
        valid_pixels = jnp.minimum(TH, Hout - row0) * Wout      # scalar
        pidx = jax.lax.broadcasted_iota(jnp.int32, (M, 1), 0)
        accv = jnp.where(pidx < valid_pixels, accv, 0.0)
    tile_sum = jnp.sum(accv, axis=0, keepdims=True)             # (1, Cout)
    tile_ssq = jnp.sum(accv * accv, axis=0, keepdims=True)      # (1, Cout)
    stats_ref[0, 0] = jnp.concatenate([tile_sum, tile_ssq], axis=0)


def _norm_relu_kernel(raw_ref, stats_ref, gb_ref, o_ref, *, inv_hw):
    """Grid = (N, T).  InstanceNorm normalize + affine + LeakyReLU, one tile.

    raw_ref:   (1, TH, Wout, Cout) bf16
    stats_ref: (1, T, 2, Cout)     per-tile partial stats for this sample, f32
    gb_ref:    (2, Cout)           gamma / beta
    o_ref:     (1, TH, Wout, Cout) f32
    """
    s = jnp.sum(stats_ref[0], axis=0)                 # (2, Cout): reduce tiles
    mean = s[0:1, :] * inv_hw
    # Biased variance (matches InstanceNorm2d); clamp >= 0 to guard the
    # E[x^2] - E[x]^2 cancellation against going slightly negative.
    var = jnp.maximum(s[1:2, :] * inv_hw - mean * mean, 0.0)
    gamma = gb_ref[0:1, :]
    beta = gb_ref[1:2, :]
    scale = gamma * jax.lax.rsqrt(var + EPS)           # EUP rsqrt
    shift = beta - mean * scale

    x = raw_ref[0].astype(jnp.float32)                 # (TH, Wout, Cout)
    y = x * scale.reshape(1, 1, -1) + shift.reshape(1, 1, -1)
    y = jnp.where(y >= 0.0, y, NEG_SLOPE * y)
    o_ref[0] = y.astype(o_ref.dtype)


@functools.partial(jax.jit, static_argnames=("stride",))
def conv_dropout_norm_relu(x_nchw, weight_oihw, gamma, beta, *, stride=(1, 1)):
    """Forward pass of ConvDropoutNormReLU: conv -> instancenorm -> leakyrelu.

    x_nchw:      (N, Cin, H, W)      float32
    weight_oihw: (Cout, Cin, KH, KW) float32 (PyTorch conv weight layout)
    gamma, beta: (Cout,)             float32 (InstanceNorm affine params)
    returns:     (N, Cout, H, W)     float32

    Matches the nnU-Net instantiation with conv_bias=False and
    dropout_op=None (dropout is the identity here).
    """
    N, Cin, H, W = x_nchw.shape
    Cout, _, KH, KW = weight_oihw.shape
    sh, sw = stride
    # TODO(synk): stride != 1 (nnU-Net downsampling blocks) is not implemented
    # in this Pallas path; it needs strided row/col taps inside the kernel.
    assert (sh, sw) == (1, 1), "Pallas path implements stride=(1, 1) only"
    # TODO(synk): dropout_op=None only; p>0 dropout is not implemented.

    ph, pw = (KH - 1) // 2, (KW - 1) // 2
    Hout = H + 2 * ph - KH + 1
    Wout = W + 2 * pw - KW + 1
    HW = Hout * Wout
    Cpad = _ceil_to(Cout, 128)            # lane-dense MXU output width
    Kf = KH * KW * Cin                    # folded contraction depth
    TH = _pick_row_tile(Hout, Wout, Kf, Cpad)
    T = -(-Hout // TH)                    # ceil-div; ragged last tile masked
    Hout_pad = T * TH
    extra = Hout_pad - Hout

    # --- glue: pure layout work, no im2col blow-up ---
    x = jnp.transpose(x_nchw, (0, 2, 3, 1)).astype(jnp.bfloat16)          # NHWC
    x = jnp.pad(x, ((0, 0), (ph, ph + extra), (pw, pw), (0, 0)))
    Hp = H + 2 * ph + extra               # == Hout_pad + KH - 1
    Wp = W + 2 * pw
    w = jnp.transpose(weight_oihw, (2, 3, 1, 0)).reshape(Kf, Cout)        # (Kf, Cout)
    w = jnp.pad(w, ((0, 0), (0, Cpad - Cout))).astype(jnp.bfloat16)
    gb = jnp.stack([gamma, beta], axis=0).astype(jnp.float32)             # (2, Cout)

    # --- VMEM budget from the actual block sizes ---
    budget = _vmem_budget_cap()
    x_blk = _block_vmem_bytes((1, Hp, Wp, Cin), 2)
    w_blk = _block_vmem_bytes((Kf, Cpad), 2)
    raw_blk = _block_vmem_bytes((1, TH, Wout, Cout), 2)
    out_blk = _block_vmem_bytes((1, TH, Wout, Cout), 4)
    st_blk = _block_vmem_bytes((1, 1, 2, Cout), 4)
    stT_blk = _block_vmem_bytes((1, T, 2, Cout), 4)
    gb_blk = _block_vmem_bytes((2, Cout), 4)
    lhs_tmp = _block_vmem_bytes((TH * Wout, Kf), 2)
    acc_tmp = _block_vmem_bytes((TH * Wout, Cpad), 4)

    x_spec, x_bufs = _resident_spec((1, Hp, Wp, Cin), lambda n, t: (n, 0, 0, 0),
                                    x_blk, budget)
    w_spec, w_bufs = _resident_spec((Kf, Cpad), lambda n, t: (0, 0),
                                    w_blk, budget)

    est1 = (x_bufs * x_blk + w_bufs * w_blk + 2 * raw_blk + 2 * st_blk
            + lhs_tmp + 3 * acc_tmp)
    est2 = 2 * raw_blk + 2 * stT_blk + 2 * gb_blk + 2 * out_blk + 3 * out_blk
    vmem1 = _vmem_limit(est1, budget)
    vmem2 = _vmem_limit(est2, budget)

    ce1 = pl.CostEstimate(
        flops=int(2 * N * Hout_pad * Wout * Kf * Cpad),
        transcendentals=0,
        bytes_accessed=int(x.size * 2 + w.size * 2
                           + N * Hout_pad * Wout * Cout * 2
                           + N * T * 2 * Cout * 4))
    ce2 = pl.CostEstimate(
        flops=int(6 * N * Hout_pad * Wout * Cout),
        transcendentals=int(N * T * Cout),
        bytes_accessed=int(N * Hout_pad * Wout * Cout * (2 + 4)
                           + N * T * 2 * Cout * 4 + 2 * Cout * 4))

    # ---- pass 1: folded conv matmul (bf16 -> f32) + per-tile channel stats ----
    conv_kernel = functools.partial(
        _conv_stats_kernel, KH=KH, KW=KW, TH=TH, Wout=Wout, Cin=Cin,
        Cout=Cout, Cpad=Cpad, Kf=Kf, Hout=Hout)
    raw, pstats = pl.pallas_call(
        conv_kernel,
        out_shape=(jax.ShapeDtypeStruct((N, Hout_pad, Wout, Cout), jnp.bfloat16),
                   jax.ShapeDtypeStruct((N, T, 2, Cout), jnp.float32)),
        grid=(N, T),
        in_specs=[x_spec, w_spec],
        out_specs=(
            pl.BlockSpec((1, TH, Wout, Cout), lambda n, t: (n, t, 0, 0)),
            pl.BlockSpec((1, 1, 2, Cout), lambda n, t: (n, t, 0, 0)),
        ),
        compiler_params=pltpu.CompilerParams(
            dimension_semantics=("parallel", "parallel"),
            vmem_limit_bytes=vmem1),
        cost_estimate=ce1,
    )(x, w)

    # ---- pass 2: reduce partial stats + InstanceNorm affine + LeakyReLU ----
    norm_kernel = functools.partial(_norm_relu_kernel, inv_hw=1.0 / float(HW))
    out_full = pl.pallas_call(
        norm_kernel,
        out_shape=jax.ShapeDtypeStruct((N, Hout_pad, Wout, Cout), jnp.float32),
        grid=(N, T),
        in_specs=[
            pl.BlockSpec((1, TH, Wout, Cout), lambda n, t: (n, t, 0, 0)),
            pl.BlockSpec((1, T, 2, Cout), lambda n, t: (n, 0, 0, 0)),
            pl.BlockSpec((2, Cout), lambda n, t: (0, 0)),
        ],
        out_specs=pl.BlockSpec((1, TH, Wout, Cout), lambda n, t: (n, t, 0, 0)),
        compiler_params=pltpu.CompilerParams(
            dimension_semantics=("parallel", "parallel"),
            vmem_limit_bytes=vmem2),
        cost_estimate=ce2,
    )(raw, pstats, gb)

    # --- glue: drop padded rows, back to NCHW (keep NHWC/bf16 when chaining) ---
    out = out_full if Hout_pad == Hout else out_full[:, :Hout]
    return jnp.transpose(out, (0, 3, 1, 2))


def _reference(x_nchw, weight_oihw, gamma, beta, stride=(1, 1)):
    """Pure-JAX reference (f32): conv2d + InstanceNorm2d(biased var) + LeakyReLU."""
    KH, KW = weight_oihw.shape[2], weight_oihw.shape[3]
    ph, pw = (KH - 1) // 2, (KW - 1) // 2
    y = jax.lax.conv_general_dilated(
        x_nchw, weight_oihw, window_strides=stride,
        padding=[(ph, ph), (pw, pw)],
        dimension_numbers=("NCHW", "OIHW", "NCHW"))
    mean = y.mean(axis=(2, 3), keepdims=True)
    var = ((y - mean) ** 2).mean(axis=(2, 3), keepdims=True)
    yn = (y - mean) / jnp.sqrt(var + EPS)
    yn = yn * gamma[None, :, None, None] + beta[None, :, None, None]
    return jnp.where(yn >= 0, yn, NEG_SLOPE * yn)


if __name__ == "__main__":
    key = jax.random.PRNGKey(0)
    k_x, k_w, k_g, k_b, k_x2, k_w2 = jax.random.split(key, 6)

    # Case 1: ConvDropoutNormReLU(Conv2d(4->8, 3x3, s=1, bias=False),
    #         InstanceNorm2d(8, affine=True), LeakyReLU(0.01)).
    N, Cin, H, W = 2, 4, 16, 16
    Cout, KH, KW = 8, 3, 3
    x = jax.random.normal(k_x, (N, Cin, H, W), dtype=jnp.float32)
    fan_in = Cin * KH * KW
    weight = jax.random.normal(k_w, (Cout, Cin, KH, KW), jnp.float32) * (1.0 / fan_in) ** 0.5
    gamma = 1.0 + 0.1 * jax.random.normal(k_g, (Cout,), jnp.float32)
    beta = 0.1 * jax.random.normal(k_b, (Cout,), jnp.float32)

    out = jax.block_until_ready(conv_dropout_norm_relu(x, weight, gamma, beta))
    ref = _reference(x, weight, gamma, beta)
    assert out.shape == ref.shape == (N, Cout, H, W)
    max_err = float(jnp.max(jnp.abs(out - ref)))
    # bf16 matmul inputs + bf16 raw-conv intermediate -> ~1e-2-level agreement.
    assert jnp.allclose(out, ref, rtol=5e-2, atol=5e-2), f"max abs err = {max_err}"

    # Case 2: exercises the ragged row-tile path (Hout not a multiple of TH),
    # N=1 and a different channel count.
    N2, Cin2, H2, W2, Cout2 = 1, 3, 48, 48, 16
    x2 = jax.random.normal(k_x2, (N2, Cin2, H2, W2), dtype=jnp.float32)
    w2 = jax.random.normal(k_w2, (Cout2, Cin2, KH, KW), jnp.float32) * (1.0 / (Cin2 * KH * KW)) ** 0.5
    g2 = jnp.ones((Cout2,), jnp.float32)
    b2 = jnp.zeros((Cout2,), jnp.float32)
    out2 = jax.block_until_ready(conv_dropout_norm_relu(x2, w2, g2, b2))
    ref2 = _reference(x2, w2, g2, b2)
    assert out2.shape == ref2.shape == (N2, Cout2, H2, W2)
    max_err2 = float(jnp.max(jnp.abs(out2 - ref2)))
    assert jnp.allclose(out2, ref2, rtol=5e-2, atol=5e-2), f"max abs err = {max_err2}"

    print("KERNEL_OK")
</pallas_src>

<mosaic_0001>
module attributes {stable_mosaic.version = 11 : i64} {
  func.func @_conv_stats_kernel(%arg0: i32, %arg1: i32, %arg2: memref<1x18x18x4xbf16, #tpu.memory_space<vmem>>, %arg3: memref<36x128xbf16, #tpu.memory_space<vmem>>, %arg4: memref<1x16x16x8xbf16, #tpu.memory_space<vmem>>, %arg5: memref<1x1x2x8xf32, #tpu.memory_space<vmem>>) attributes {dimension_semantics = [#tpu.dimension_semantics<parallel>, #tpu.dimension_semantics<parallel>], iteration_bounds = array<i64: 2, 1>, scalar_prefetch = 0 : i64, scratch_operands = 0 : i64, tpu.core_type = #tpu.core_type<tc>, window_params = [{transform_indices = @transform_0, window_bounds = array<i64: 1, 18, 18, 4>}, {pipeline_mode = #tpu.pipeline_mode<synchronous>, transform_indices = @transform_1, window_bounds = array<i64: 36, 128>}, {transform_indices = @transform_2, window_bounds = array<i64: 1, 16, 16, 8>}, {transform_indices = @transform_3, window_bounds = array<i64: 1, 1, 2, 8>}]} {
    %c16_i32 = arith.constant 16 : i32
    %0 = arith.muli %arg1, %c16_i32 : i32
    %c0_i32 = arith.constant 0 : i32
    %1 = arith.addi %0, %c0_i32 : i32
    %c0 = arith.constant 0 : index
    %2 = arith.index_cast %1 : i32 to index
    %c0_0 = arith.constant 0 : index
    %c0_1 = arith.constant 0 : index
    %3 = vector.load %arg2[%c0, %2, %c0_0, %c0_1] : memref<1x18x18x4xbf16, #tpu.memory_space<vmem>>, vector<1x16x16x4xbf16>
    %4 = vector.shape_cast %3 : vector<1x16x16x4xbf16> to vector<16x16x4xbf16>
    %c0_i32_2 = arith.constant 0 : i32
    %5 = arith.addi %0, %c0_i32_2 : i32
    %c0_3 = arith.constant 0 : index
    %6 = arith.index_cast %5 : i32 to index
    %c1 = arith.constant 1 : index
    %c0_4 = arith.constant 0 : index
    %7 = vector.load %arg2[%c0_3, %6, %c1, %c0_4] : memref<1x18x18x4xbf16, #tpu.memory_space<vmem>>, vector<1x16x16x4xbf16>
    %8 = vector.shape_cast %7 : vector<1x16x16x4xbf16> to vector<16x16x4xbf16>
    %c0_i32_5 = arith.constant 0 : i32
    %9 = arith.addi %0, %c0_i32_5 : i32
    %c0_6 = arith.constant 0 : index
    %10 = arith.index_cast %9 : i32 to index
    %c2 = arith.constant 2 : index
    %c0_7 = arith.constant 0 : index
    %11 = vector.load %arg2[%c0_6, %10, %c2, %c0_7] : memref<1x18x18x4xbf16, #tpu.memory_space<vmem>>, vector<1x16x16x4xbf16>
    %12 = vector.shape_cast %11 : vector<1x16x16x4xbf16> to vector<16x16x4xbf16>
    %c1_i32 = arith.constant 1 : i32
    %13 = arith.addi %0, %c1_i32 : i32
    %c0_8 = arith.constant 0 : index
    %14 = arith.index_cast %13 : i32 to index
    %c0_9 = arith.constant 0 : index
    %c0_10 = arith.constant 0 : index
    %15 = vector.load %arg2[%c0_8, %14, %c0_9, %c0_10] : memref<1x18x18x4xbf16, #tpu.memory_space<vmem>>, vector<1x16x16x4xbf16>
    %16 = vector.shape_cast %15 : vector<1x16x16x4xbf16> to vector<16x16x4xbf16>
    %c1_i32_11 = arith.constant 1 : i32
    %17 = arith.addi %0, %c1_i32_11 : i32
    %c0_12 = arith.constant 0 : index
    %18 = arith.index_cast %17 : i32 to index
    %c1_13 = arith.constant 1 : index
    %c0_14 = arith.constant 0 : index
    %19 = vector.load %arg2[%c0_12, %18, %c1_13, %c0_14] : memref<1x18x18x4xbf16, #tpu.memory_space<vmem>>, vector<1x16x16x4xbf16>
    %20 = vector.shape_cast %19 : vector<1x16x16x4xbf16> to vector<16x16x4xbf16>
    %c1_i32_15 = arith.constant 1 : i32
    %21 = arith.addi %0, %c1_i32_15 : i32
    %c0_16 = arith.constant 0 : index
    %22 = arith.index_cast %21 : i32 to index
    %c2_17 = arith.constant 2 : index
    %c0_18 = arith.constant 0 : index
    %23 = vector.load %arg2[%c0_16, %22, %c2_17, %c0_18] : memref<1x18x18x4xbf16, #tpu.memory_space<vmem>>, vector<1x16x16x4xbf16>
    %24 = vector.shape_cast %23 : vector<1x16x16x4xbf16> to vector<16x16x4xbf16>
    %c2_i32 = arith.constant 2 : i32
    %25 = arith.addi %0, %c2_i32 : i32
    %c0_19 = arith.constant 0 : index
    %26 = arith.index_cast %25 : i32 to index
    %c0_20 = arith.constant 0 : index
    %c0_21 = arith.constant 0 : index
    %27 = vector.load %arg2[%c0_19, %26, %c0_20, %c0_21] : memref<1x18x18x4xbf16, #tpu.memory_space<vmem>>, vector<1x16x16x4xbf16>
    %28 = vector.shape_cast %27 : vector<1x16x16x4xbf16> to vector<16x16x4xbf16>
    %c2_i32_22 = arith.constant 2 : i32
    %29 = arith.addi %0, %c2_i32_22 : i32
    %c0_23 = arith.constant 0 : index
    %30 = arith.index_cast %29 : i32 to index
    %c1_24 = arith.constant 1 : index
    %c0_25 = arith.constant 0 : index
    %31 = vector.load %arg2[%c0_23, %30, %c1_24, %c0_25] : memref<1x18x18x4xbf16, #tpu.memory_space<vmem>>, vector<1x16x16x4xbf16>
    %32 = vector.shape_cast %31 : vector<1x16x16x4xbf16> to vector<16x16x4xbf16>
    %c2_i32_26 = arith.constant 2 : i32
    %33 = arith.addi %0, %c2_i32_26 : i32
    %c0_27 = arith.constant 0 : index
    %34 = arith.index_cast %33 : i32 to index
    %c2_28 = arith.constant 2 : index
    %c0_29 = arith.constant 0 : index
    %35 = vector.load %arg2[%c0_27, %34, %c2_28, %c0_29] : memref<1x18x18x4xbf16, #tpu.memory_space<vmem>>, vector<1x16x16x4xbf16>
    %36 = vector.shape_cast %35 : vector<1x16x16x4xbf16> to vector<16x16x4xbf16>
    %37 = tpu.concatenate %4, %8, %12, %16, %20, %24, %28, %32, %36 in 2 : vector<16x16x4xbf16>, vector<16x16x4xbf16>, vector<16x16x4xbf16>, vector<16x16x4xbf16>, vector<16x16x4xbf16>, vector<16x16x4xbf16>, vector<16x16x4xbf16>, vector<16x16x4xbf16>, vector<16x16x4xbf16> -> vector<16x16x36xbf16>
    %38 = vector.shape_cast %37 : vector<16x16x36xbf16> to vector<256x36xbf16>
    %c0_30 = arith.constant 0 : index
    %c0_31 = arith.constant 0 : index
    %39 = vector.load %arg3[%c0_30, %c0_31] : memref<36x128xbf16, #tpu.memory_space<vmem>>, vector<36x128xbf16>
    %cst = arith.constant dense<0.000000e+00> : vector<256x128xf32>
    %40 = tpu.matmul %38, %39, %cst {dimension_numbers = #tpu.dot_dimension_numbers<[1], [0], [0], [1], [0, 0, 1, 1], [], []>} : vector<256x36xbf16>, vector<36x128xbf16>, vector<256x128xf32> -> vector<256x128xf32>
    %41 = vector.extract_strided_slice %40 {offsets = [0, 0], sizes = [256, 8], strides = [1, 1]} : vector<256x128xf32> to vector<256x8xf32>
    %42 = vector.shape_cast %41 : vector<256x8xf32> to vector<16x16x8xf32>
    %43 = arith.truncf %42 : vector<16x16x8xf32> to vector<16x16x8xbf16>
    %c0_32 = arith.constant 0 : index
    %c0_33 = arith.constant 0 : index
    %c0_34 = arith.constant 0 : index
    %c0_35 = arith.constant 0 : index
    %44 = vector.load %arg4[%c0_32, %c0_33, %c0_34, %c0_35] : memref<1x16x16x8xbf16, #tpu.memory_space<vmem>>, vector<1x16x16x8xbf16>
    %45 = vector.shape_cast %44 : vector<1x16x16x8xbf16> to vector<16x16x8xbf16>
    %46 = vector.shape_cast %43 : vector<16x16x8xbf16> to vector<1x16x16x8xbf16>
    tpu.vector_store %arg4[%c0_32, %c0_33, %c0_34, %c0_35], %46 {strides = array<i32>} : memref<1x16x16x8xbf16, #tpu.memory_space<vmem>>, vector<1x16x16x8xbf16>,
    %cst_36 = arith.constant dense<0.000000e+00> : vector<8xf32>
    %47 = vector.multi_reduction <add>, %41, %cst_36 [0] : vector<256x8xf32> to vector<8xf32>
    %48 = vector.shape_cast %47 : vector<8xf32> to vector<1x8xf32>
    %49 = arith.mulf %41, %41 : vector<256x8xf32>
    %cst_37 = arith.constant dense<0.000000e+00> : vector<8xf32>
    %50 = vector.multi_reduction <add>, %49, %cst_37 [0] : vector<256x8xf32> to vector<8xf32>
    %51 = vector.shape_cast %50 : vector<8xf32> to vector<1x8xf32>
    %52 = tpu.concatenate %48, %51 in 0 : vector<1x8xf32>, vector<1x8xf32> -> vector<2x8xf32>
    %c0_38 = arith.constant 0 : index
    %c0_39 = arith.constant 0 : index
    %c0_40 = arith.constant 0 : index
    %c0_41 = arith.constant 0 : index
    %53 = vector.load %arg5[%c0_38, %c0_39, %c0_40, %c0_41] : memref<1x1x2x8xf32, #tpu.memory_space<vmem>>, vector<1x1x2x8xf32>
    %54 = vector.shape_cast %53 : vector<1x1x2x8xf32> to vector<2x8xf32>
    %55 = vector.shape_cast %52 : vector<2x8xf32> to vector<1x1x2x8xf32>
    tpu.vector_store %arg5[%c0_38, %c0_39, %c0_40, %c0_41], %55 {strides = array<i32>} : memref<1x1x2x8xf32, #tpu.memory_space<vmem>>, vector<1x1x2x8xf32>,
    return
  }
  func.func @transform_0(%arg0: i32, %arg1: i32) -> (i32, i32, i32, i32) {
    %c0_i32 = arith.constant 0 : i32
    %c0_i32_0 = arith.constant 0 : i32
    %c0_i32_1 = arith.constant 0 : i32
    %c0_i32_2 = arith.constant 0 : i32
    return %arg0, %c0_i32, %c0_i32_0, %c0_i32_1 : i32, i32, i32, i32
  }
  func.func @transform_1(%arg0: i32, %arg1: i32) -> (i32, i32) {
    %c0_i32 = arith.constant 0 : i32
    %c0_i32_0 = arith.constant 0 : i32
    %c0_i32_1 = arith.constant 0 : i32
    return %c0_i32, %c0_i32_0 : i32, i32
  }
  func.func @transform_2(%arg0: i32, %arg1: i32) -> (i32, i32, i32, i32) {
    %c0_i32 = arith.constant 0 : i32
    %c0_i32_0 = arith.constant 0 : i32
    %c0_i32_1 = arith.constant 0 : i32
    return %arg0, %arg1, %c0_i32, %c0_i32_0 : i32, i32, i32, i32
  }
  func.func @transform_3(%arg0: i32, %arg1: i32) -> (i32, i32, i32, i32) {
    %c0_i32 = arith.constant 0 : i32
    %c0_i32_0 = arith.constant 0 : i32
    %c0_i32_1 = arith.constant 0 : i32
    return %arg0, %arg1, %c0_i32, %c0_i32_0 : i32, i32, i32, i32
  }
}

module attributes {stable_mosaic.version = 11 : i64} {
  func.func @_norm_relu_kernel(%arg0: i32, %arg1: i32, %arg2: memref<1x16x16x8xbf16, #tpu.memory_space<vmem>>, %arg3: memref<1x1x2x8xf32, #tpu.memory_space<vmem>>, %arg4: memref<2x8xf32, #tpu.memory_space<vmem>>, %arg5: memref<1x16x16x8xf32, #tpu.memory_space<vmem>>) attributes {dimension_semantics = [#tpu.dimension_semantics<parallel>, #tpu.dimension_semantics<parallel>], iteration_bounds = array<i64: 2, 1>, scalar_prefetch = 0 : i64, scratch_operands = 0 : i64, tpu.core_type = #tpu.core_type<tc>, window_params = [{transform_indices = @transform_0, window_bounds = array<i64: 1, 16, 16, 8>}, {transform_indices = @transform_1, window_bounds = array<i64: 1, 1, 2, 8>}, {pipeline_mode = #tpu.pipeline_mode<synchronous>, transform_indices = @transform_2, window_bounds = array<i64: 2, 8>}, {transform_indices = @transform_3, window_bounds = array<i64: 1, 16, 16, 8>}]} {
    %c0 = arith.constant 0 : index
    %c0_0 = arith.constant 0 : index
    %c0_1 = arith.constant 0 : index
    %c0_2 = arith.constant 0 : index
    %0 = vector.load %arg3[%c0, %c0_0, %c0_1, %c0_2] : memref<1x1x2x8xf32, #tpu.memory_space<vmem>>, vector<1x1x2x8xf32>
    %1 = vector.shape_cast %0 : vector<1x1x2x8xf32> to vector<1x2x8xf32>
    %cst = arith.constant dense<0.000000e+00> : vector<2x8xf32>
    %2 = vector.multi_reduction <add>, %1, %cst [0] : vector<1x2x8xf32> to vector<2x8xf32>
    %3 = vector.extract_strided_slice %2 {offsets = [0, 0], sizes = [1, 8], strides = [1, 1]} : vector<2x8xf32> to vector<1x8xf32>
    %cst_3 = arith.constant 3.906250e-03 : f32
    %4 = vector.broadcast %cst_3 : f32 to vector<1x8xf32>
    %5 = arith.mulf %3, %4 : vector<1x8xf32>
    %6 = vector.extract_strided_slice %2 {offsets = [1, 0], sizes = [1, 8], strides = [1, 1]} : vector<2x8xf32> to vector<1x8xf32>
    %cst_4 = arith.constant 3.906250e-03 : f32
    %7 = vector.broadcast %cst_4 : f32 to vector<1x8xf32>
    %8 = arith.mulf %6, %7 : vector<1x8xf32>
    %9 = arith.mulf %5, %5 : vector<1x8xf32>
    %10 = arith.subf %8, %9 : vector<1x8xf32>
    %cst_5 = arith.constant 0.000000e+00 : f32
    %11 = vector.broadcast %cst_5 : f32 to vector<1x8xf32>
    %12 = arith.maximumf %10, %11 : vector<1x8xf32>
    %c0_6 = arith.constant 0 : index
    %c0_7 = arith.constant 0 : index
    %13 = vector.load %arg4[%c0_6, %c0_7] : memref<2x8xf32, #tpu.memory_space<vmem>>, vector<1x8xf32>
    %c1 = arith.constant 1 : index
    %c0_8 = arith.constant 0 : index
    %14 = vector.load %arg4[%c1, %c0_8] : memref<2x8xf32, #tpu.memory_space<vmem>>, vector<1x8xf32>
    %cst_9 = arith.constant 9.99999974E-6 : f32
    %15 = vector.broadcast %cst_9 : f32 to vector<1x8xf32>
    %16 = arith.addf %12, %15 : vector<1x8xf32>
    %17 = math.rsqrt %16 : vector<1x8xf32>
    %18 = arith.mulf %13, %17 : vector<1x8xf32>
    %19 = arith.mulf %5, %18 : vector<1x8xf32>
    %20 = arith.subf %14, %19 : vector<1x8xf32>
    %c0_10 = arith.constant 0 : index
    %c0_11 = arith.constant 0 : index
    %c0_12 = arith.constant 0 : index
    %c0_13 = arith.constant 0 : index
    %21 = vector.load %arg2[%c0_10, %c0_11, %c0_12, %c0_13] : memref<1x16x16x8xbf16, #tpu.memory_space<vmem>>, vector<1x16x16x8xbf16>
    %22 = vector.shape_cast %21 : vector<1x16x16x8xbf16> to vector<16x16x8xbf16>
    %23 = arith.extf %22 : vector<16x16x8xbf16> to vector<16x16x8xf32>
    %24 = vector.shape_cast %18 : vector<1x8xf32> to vector<1x1x8xf32>
    %25 = vector.broadcast %24 : vector<1x1x8xf32> to vector<16x16x8xf32>
    %26 = arith.mulf %23, %25 : vector<16x16x8xf32>
    %27 = vector.shape_cast %20 : vector<1x8xf32> to vector<1x1x8xf32>
    %28 = vector.broadcast %27 : vector<1x1x8xf32> to vector<16x16x8xf32>
    %29 = arith.addf %26, %28 : vector<16x16x8xf32>
    %cst_14 = arith.constant 0.000000e+00 : f32
    %30 = vector.broadcast %cst_14 : f32 to vector<16x16x8xf32>
    %31 = arith.cmpf oge, %29, %30 : vector<16x16x8xf32>
    %cst_15 = arith.constant 0.00999999977 : f32
    %32 = vector.broadcast %cst_15 : f32 to vector<16x16x8xf32>
    %33 = arith.mulf %32, %29 : vector<16x16x8xf32>
    %34 = arith.select %31, %29, %33 : vector<16x16x8xi1>, vector<16x16x8xf32>
    %c0_16 = arith.constant 0 : index
    %c0_17 = arith.constant 0 : index
    %c0_18 = arith.constant 0 : index
    %c0_19 = arith.constant 0 : index
    %35 = vector.load %arg5[%c0_16, %c0_17, %c0_18, %c0_19] : memref<1x16x16x8xf32, #tpu.memory_space<vmem>>, vector<1x16x16x8xf32>
    %36 = vector.shape_cast %35 : vector<1x16x16x8xf32> to vector<16x16x8xf32>
    %37 = vector.shape_cast %34 : vector<16x16x8xf32> to vector<1x16x16x8xf32>
    tpu.vector_store %arg5[%c0_16, %c0_17, %c0_18, %c0_19], %37 {strides = array<i32>} : memref<1x16x16x8xf32, #tpu.memory_space<vmem>>, vector<1x16x16x8xf32>,
    return
  }
  func.func @transform_0(%arg0: i32, %arg1: i32) -> (i32, i32, i32, i32) {
    %c0_i32 = arith.constant 0 : i32
    %c0_i32_0 = arith.constant 0 : i32
    %c0_i32_1 = arith.constant 0 : i32
    return %arg0, %arg1, %c0_i32, %c0_i32_0 : i32, i32, i32, i32
  }
  func.func @transform_1(%arg0: i32, %arg1: i32) -> (i32, i32, i32, i32) {
    %c0_i32 = arith.constant 0 : i32
    %c0_i32_0 = arith.constant 0 : i32
    %c0_i32_1 = arith.constant 0 : i32
    %c0_i32_2 = arith.constant 0 : i32
    return %arg0, %c0_i32, %c0_i32_0, %c0_i32_1 : i32, i32, i32, i32
  }
  func.func @transform_2(%arg0: i32, %arg1: i32) -> (i32, i32) {
    %c0_i32 = arith.constant 0 : i32
    %c0_i32_0 = arith.constant 0 : i32
    %c0_i32_1 = arith.constant 0 : i32
    return %c0_i32, %c0_i32_0 : i32, i32
  }
  func.func @transform_3(%arg0: i32, %arg1: i32) -> (i32, i32, i32, i32) {
    %c0_i32 = arith.constant 0 : i32
    %c0_i32_0 = arith.constant 0 : i32
    %c0_i32_1 = arith.constant 0 : i32
    return %arg0, %arg1, %c0_i32, %c0_i32_0 : i32, i32, i32, i32
  }
}

</mosaic_0001>

<llo_original>
// kernel: conv_dropout_norm_relu.3
$region0: #{conv_dropout_norm_relu.3}
  #allocation0 [shape = 'u32[]', space=smem, size = 0x4, offset = 0x4, fixed_abs, tag = 'smem constant byte address 0x4 - core index']
  #allocation1 [shape = 'u32[144,128]{1,0:T(1,128)}', space=vmem, size = 0x12000, scoped, tag = 'internal scratch']
  %s0 = inlined_call_operand.vmem [shape: bf16[2,16,16,8], index: 0, kind: input, shape index: {}]
  %s1 = inlined_call_operand.vmem [shape: f32[2,1,2,8], index: 1, kind: input, shape index: {}]
  %s2 = inlined_call_operand.vmem [shape: f32[2,8], index: 2, kind: input, shape index: {}]
  %s3 = inlined_call_operand.vmem [shape: f32[2,16,16,8], index: 3, kind: output, shape index: {}]
  %s4 = sld [smem:[#allocation0]]
  $region45: #{conv_dropout_norm_relu.3} parent=0
    _
  %s6 = ssub.s32 1, %s4
  %s7 = scalar_select 0, %s6, %s4
  loop: start=0, step=1, limit=4
  $region2: #{conv_dropout_norm_relu.3} parent=0 // loop_pre_header
    _
  $region3: #{conv_dropout_norm_relu.3} parent=0 // loop_header
    %s9 = sphi 0, %s13
    %p10 = scmp.ge.s32.totalorder %s9, 4
    %s16 = sphi 0, %s28
    %s17 = sphi 0, %s24
    %s18 = sphi 0, %s16
    %s19 = sphi 0, %s17
    %s20 = sphi 0, %s18
    %s21 = sphi 0, %s19
    %s33 = sphi 0, %s35
    %s36 = sphi 0, %s33
    %s37 = sphi 0, %s36
    %s53 = sphi 0, %s37
    %s59 = sphi 0, %s61
    %s62 = sphi 0, %s59
    %s63 = sphi 0, %s62
    %s79 = sphi 0, %s63
    %s83 = sphi 0, %s83
    %s85 = sphi 0, %s83
    %s86 = sphi 0, %s85
    %s100 = sphi 0, %s86
    %s108 = sphi 0, %s110
    %s111 = sphi 0, %s108
    %s112 = sphi 0, %s111
    %s128 = sphi 0, %s112
  $region4: #{conv_dropout_norm_relu.3} parent=0 // loop_header_branch
    %12 = sbr.rel (%p10) target = $region8
  $region5: #{conv_dropout_norm_relu.3} parent=0 // loop_body
    %s14 = ssub.s32 %s9, 1
    %s15 = ssub.s32 %s9, 2
    %s22 = sadd.s32 1, %s17
    %p23 = scmp.ge.s32.totalorder %s22, 1
    %s24 = scalar_select %p23, 0, %s22
    %s25 = sadd.s32 1, %s16
    %s26 = scalar_select %p23, %s25, %s16
    %p27 = scmp.ge.s32.totalorder %s26, 2
    %s28 = scalar_select %p27, 0, %s26
    %s29 = ssub.s32 %s16, %s28
    %s30 = ssub.s32 %s17, %s24
    %s31 = sor.u32 %s29, %s30
    %p32 = scmp.eq.s32.totalorder %s31, 0
    %s34 = sadd.s32 %s33, 1
    %s35 = scalar_select %p32, %s33, %s34
    %p38 = pneg %p32
    %p39 = scmp.eq.s32.totalorder %s9, 1
    %p40 = por %p38, %p39
    %p41 = scmp.ne.s32.totalorder %s33, %s36
    %p42 = scmp.eq.s32.totalorder %s9, 0
    %p43 = por %p41, %p42
    %p44 = scmp.ne.s32.totalorder %s33, %s36
    %p45 = scmp.eq.s32.totalorder %s14, 1
    %p46 = por %p44, %p45
    %p47 = scmp.ne.s32.totalorder %s36, %s37
    %p48 = scmp.eq.s32.totalorder %s14, 0
    %p49 = por %p47, %p48
    %p50 = scmp.ne.s32.totalorder %s36, %s37
    %p51 = scmp.eq.s32.totalorder %s15, 1
    %p52 = por %p50, %p51
    %p54 = scmp.ne.s32.totalorder %s37, %s53
    %p55 = scmp.eq.s32.totalorder %s15, 0
    %p56 = por %p54, %p55
    %s57 = ssub.s32 %s16, %s28
    %p58 = scmp.eq.s32.totalorder %s57, 0
    %s60 = sadd.s32 %s59, 1
    %s61 = scalar_select %p58, %s59, %s60
    %p64 = pneg %p58
    %p65 = scmp.eq.s32.totalorder %s9, 1
    %p66 = por %p64, %p65
    %p67 = scmp.ne.s32.totalorder %s59, %s62
    %p68 = scmp.eq.s32.totalorder %s9, 0
    %p69 = por %p67, %p68
    %p70 = scmp.ne.s32.totalorder %s59, %s62
    %p71 = scmp.eq.s32.totalorder %s14, 1
    %p72 = por %p70, %p71
    %p73 = scmp.ne.s32.totalorder %s62, %s63
    %p74 = scmp.eq.s32.totalorder %s14, 0
    %p75 = por %p73, %p74
    %p76 = scmp.ne.s32.totalorder %s62, %s63
    %p77 = scmp.eq.s32.totalorder %s15, 1
    %p78 = por %p76, %p77
    %p80 = scmp.ne.s32.totalorder %s63, %s79
    %p81 = scmp.eq.s32.totalorder %s15, 0
    %p82 = por %p80, %p81
    %s84 = sadd.s32 %s83, 1
    %p87 = scmp.eq.s32.totalorder %s9, 1
    %p88 = scmp.ne.s32.totalorder %s83, %s85
    %p89 = scmp.eq.s32.totalorder %s9, 0
    %p90 = por %p88, %p89
    %p91 = scmp.ne.s32.totalorder %s83, %s85
    %p92 = scmp.eq.s32.totalorder %s14, 1
    %p93 = por %p91, %p92
    %p94 = scmp.ne.s32.totalorder %s85, %s86
    %p95 = scmp.eq.s32.totalorder %s14, 0
    %p96 = por %p94, %p95
    %p97 = scmp.ne.s32.totalorder %s85, %s86
    %p98 = scmp.eq.s32.totalorder %s15, 1
    %p99 = por %p97, %p98
    %p101 = scmp.ne.s32.totalorder %s86, %s100
    %p102 = scmp.eq.s32.totalorder %s15, 0
    %p103 = por %p101, %p102
    %s104 = ssub.s32 %s16, %s28
    %s105 = ssub.s32 %s17, %s24
    %s106 = sor.u32 %s104, %s105
    %p107 = scmp.eq.s32.totalorder %s106, 0
    %s109 = sadd.s32 %s108, 1
    %s110 = scalar_select %p107, %s108, %s109
    %p113 = pneg %p107
    %p114 = scmp.eq.s32.totalorder %s9, 1
    %p115 = por %p113, %p114
    %p116 = scmp.ne.s32.totalorder %s108, %s111
    %p117 = scmp.eq.s32.totalorder %s9, 0
    %p118 = por %p116, %p117
    %p119 = scmp.ne.s32.totalorder %s108, %s111
    %p120 = scmp.eq.s32.totalorder %s14, 1
    %p121 = por %p119, %p120
    %p122 = scmp.ne.s32.totalorder %s111, %s112
    %p123 = scmp.eq.s32.totalorder %s14, 0
    %p124 = por %p122, %p123
    %p125 = scmp.ne.s32.totalorder %s111, %s112
    %p126 = scmp.eq.s32.totalorder %s15, 1
    %p127 = por %p125, %p126
    %p129 = scmp.ne.s32.totalorder %s112, %s128
    %p130 = scmp.eq.s32.totalorder %s15, 0
    %p131 = por %p129, %p130
    %p132 = scmp.le.s32.totalorder 1, %s9
    %p133 = scmp.lt.s32.totalorder %s9, 3
    %p134 = pnand %p132, %p133
    %p135 = pneg %p134
    // Predicated region
    $region9: #{conv_dropout_norm_relu.3} parent=5 // pred_check
      _
    $region10: #{conv_dropout_norm_relu.3} parent=5 // pred_check_branch
      %137 = sbr.rel (%p134) target = $region12
    $region11: #{conv_dropout_norm_relu.3} parent=5 // pred_region
      %s138 = ssub.s32 %s9, 1
      // Predicated region
      $region13: #{conv_dropout_norm_relu.3} parent=11 // pred_check
        %p139 = pneg %p96
      $region14: #{conv_dropout_norm_relu.3} parent=11 // pred_check_branch
        %141 = sbr.rel (%p139) target = $region16
      $region15: #{conv_dropout_norm_relu.3} parent=11 // pred_region
        _
      $region16: #{conv_dropout_norm_relu.3} parent=11 // pred_fallthru
        _
    $region12: #{conv_dropout_norm_relu.3} parent=5 // pred_fallthru
      _
    %p142 = scmp.lt.s32.totalorder %s9, 2
    // Predicated region
    $region17: #{conv_dropout_norm_relu.3} parent=5 // pred_check
      %p143 = pneg %p142
    $region18: #{conv_dropout_norm_relu.3} parent=5 // pred_check_branch
      %145 = sbr.rel (%p143) target = $region20
    $region19: #{conv_dropout_norm_relu.3} parent=5 // pred_region
      // Predicated region
      $region21: #{conv_dropout_norm_relu.3} parent=19 // pred_check
        %p146 = pneg %p43
      $region22: #{conv_dropout_norm_relu.3} parent=19 // pred_check_branch
        %148 = sbr.rel (%p146) target = $region24
      $region23: #{conv_dropout_norm_relu.3} parent=19 // pred_region
        %s149 = smul.u32 16, %s17
        %p150 = scmp.lt.s32.totalorder %s16, 1
        %s151 = scalar_select %p150, %s16, 1
        %p152 = scmp.lt.s32.totalorder %s149, 15
        %s153 = scalar_select %p152, %s149, 15
        %s154 = smul.addr %s153, 2
        %s155 = smul.addr %s151, 32
        %s156 = sadd.s32 %s154, %s155
        %s157 = smul.addr %s156, 4
        %s158 = scalar_lea.vmem %s0, %s157
        %s159 = smul.u32 16, %s17
      $region24: #{conv_dropout_norm_relu.3} parent=19 // pred_fallthru
        _
      // Predicated region
      $region25: #{conv_dropout_norm_relu.3} parent=19 // pred_check
        %p160 = pneg %p69
      $region26: #{conv_dropout_norm_relu.3} parent=19 // pred_check_branch
        %162 = sbr.rel (%p160) target = $region28
      $region27: #{conv_dropout_norm_relu.3} parent=19 // pred_region
        %p163 = scmp.lt.s32.totalorder %s16, 1
        %s164 = scalar_select %p163, %s16, 1
        %s165 = smul.addr %s164, 2
        %s166 = scalar_lea.vmem %s1, %s165
      $region28: #{conv_dropout_norm_relu.3} parent=19 // pred_fallthru
        _
    $region20: #{conv_dropout_norm_relu.3} parent=5 // pred_fallthru
      _
    %p167 = scmp.le.s32.totalorder 1, %s9
    %p168 = scmp.lt.s32.totalorder %s9, 3
    %p169 = pnand %p167, %p168
    %p170 = pneg %p169
    // Predicated region
    $region29: #{conv_dropout_norm_relu.3} parent=5 // pred_check
      _
    $region30: #{conv_dropout_norm_relu.3} parent=5 // pred_check_branch
      %172 = sbr.rel (%p169) target = $region32
    $region31: #{conv_dropout_norm_relu.3} parent=5 // pred_region
      %s173 = ssub.s32 %s9, 1
      %s174 = smul.u32 16, %s19
      %p175 = scmp.lt.s32.totalorder %s18, 1
      %s176 = scalar_select %p175, %s18, 1
      %p177 = scmp.lt.s32.totalorder %s174, 15
      %s178 = scalar_select %p177, %s174, 15
      %s179 = smul.addr %s178, 2
      %s180 = smul.addr %s176, 32
      %s181 = sadd.s32 %s179, %s180
      %s182 = smul.addr %s181, 4
      %s183 = scalar_lea.vmem %s0, %s182
      %p184 = pneg %p49
      %p185 = pneg %p46
      %p186 = scmp.lt.s32.totalorder %s18, 1
      %s187 = scalar_select %p186, %s18, 1
      %s188 = smul.addr %s187, 2
      %s189 = scalar_lea.vmem %s1, %s188
      %p190 = pneg %p75
      %p191 = pneg %p72
      %p192 = pneg %p96
      %p193 = pneg %p93
      %p194 = pneg %p124
      %p195 = pneg %p121
      %s196 = smul.u32 16, %s19
      %p197 = scmp.lt.s32.totalorder %s18, 1
      %s198 = scalar_select %p197, %s18, 1
      %p199 = scmp.lt.s32.totalorder %s196, 15
      %s200 = scalar_select %p199, %s196, 15
      %s201 = smul.addr %s200, 2
      %s202 = smul.addr %s198, 32
      %s203 = sadd.s32 %s201, %s202
      %s204 = smul.addr %s203, 8
      %s205 = scalar_lea.vmem %s3, %s204
      %s206 = smul.u32 16, %s19
      %p207 = scmp.lt.s32.totalorder %s18, 1
      %s208 = scalar_select %p207, %s18, 1
      %p209 = scmp.lt.s32.totalorder %s206, 15
      %s210 = scalar_select %p209, %s206, 15
      %s211 = smul.addr %s210, 2
      %s212 = smul.addr %s208, 32
      %s213 = sadd.s32 %s211, %s212
      %s214 = smul.addr %s213, 4
      %s215 = scalar_lea.vmem %s0, %s214
      %s216 = smul.u32 16, %s19
      %p217 = scmp.lt.s32.totalorder %s18, 1
      %s218 = scalar_select %p217, %s18, 1
      %s219 = smul.addr %s218, 2
      %s220 = scalar_lea.vmem %s1, %s219
      %s221 = smul.u32 16, %s19
      %p222 = scmp.lt.s32.totalorder %s18, 1
      %s223 = scalar_select %p222, %s18, 1
      %p224 = scmp.lt.s32.totalorder %s221, 15
      %s225 = scalar_select %p224, %s221, 15
      %s226 = smul.addr %s225, 2
      %s227 = smul.addr %s223, 32
      %s228 = sadd.s32 %s226, %s227
      %s229 = smul.addr %s228, 8
      %s230 = scalar_lea.vmem %s3, %s229
      %s231 = smul.u32 16, %s19
      %v232 = vld [vmem:[%s220] sm:$0x3]
      %v233 = vadd.f32 %v232, 0.0
      %v234 = vmul.f32 %v233, 0.00390625
      %v235 = vmul.f32 %v234, %v234
      %v237 = vrot.slane %v235, 7
      %v239 = vsub.f32 %v234, %v237
      %v240 = vmax.f32 %v239, 0.0
      %v241 = vld [vmem:[%s2] sm:$0x1]
      %v242 = vld [vmem:[%s2 + $0x1] sm:$0x1]
      %v243 = vadd.f32 %v240, 1e-05
      %v244 = vrsqrt.pop %v243
      %v246 = vrot.slane %v244, 1
      %v248 = vmul.f32 %v241, %v246
      %v249 = vmul.f32 %v234, %v248
      %v250 = vsub.f32 %v242, %v249
      %v251 = vld [vmem:[%s215] sm:$0xf]
      %v252 = vld [vmem:[%s215 + $0x4] sm:$0xf]
      %v253 = vld [vmem:[%s215 + $0x8] sm:$0xf]
      %v254 = vld [vmem:[%s215 + $0xc] sm:$0xf]
      %v255 = vld [vmem:[%s215 + $0x10] sm:$0xf]
      %v256 = vld [vmem:[%s215 + $0x14] sm:$0xf]
      %v257 = vld [vmem:[%s215 + $0x18] sm:$0xf]
      %v258 = vld [vmem:[%s215 + $0x1c] sm:$0xf]
      %v259 = vld [vmem:[%s215 + $0x20] sm:$0xf]
      %v260 = vld [vmem:[%s215 + $0x24] sm:$0xf]
      %v261 = vld [vmem:[%s215 + $0x28] sm:$0xf]
      %v262 = vld [vmem:[%s215 + $0x2c] sm:$0xf]
      %v263 = vld [vmem:[%s215 + $0x30] sm:$0xf]
      %v264 = vld [vmem:[%s215 + $0x34] sm:$0xf]
      %v265 = vld [vmem:[%s215 + $0x38] sm:$0xf]
      %v266 = vld [vmem:[%s215 + $0x3c] sm:$0xf]
      %v267 = vld [vmem:[%s215 + $0x40] sm:$0xf]
      %v268 = vld [vmem:[%s215 + $0x44] sm:$0xf]
      %v269 = vld [vmem:[%s215 + $0x48] sm:$0xf]
      %v270 = vld [vmem:[%s215 + $0x4c] sm:$0xf]
      %v271 = vld [vmem:[%s215 + $0x50] sm:$0xf]
      %v272 = vld [vmem:[%s215 + $0x54] sm:$0xf]
      %v273 = vld [vmem:[%s215 + $0x58] sm:$0xf]
      %v274 = vld [vmem:[%s215 + $0x5c] sm:$0xf]
      %v275 = vld [vmem:[%s215 + $0x60] sm:$0xf]
      %v276 = vld [vmem:[%s215 + $0x64] sm:$0xf]
      %v277 = vld [vmem:[%s215 + $0x68] sm:$0xf]
      %v278 = vld [vmem:[%s215 + $0x6c] sm:$0xf]
      %v279 = vld [vmem:[%s215 + $0x70] sm:$0xf]
      %v280 = vld [vmem:[%s215 + $0x74] sm:$0xf]
      %v281 = vld [vmem:[%s215 + $0x78] sm:$0xf]
      %v282 = vld [vmem:[%s215 + $0x7c] sm:$0xf]
      %v283 = vunpack.c.l.bf16 %v251
      %v284 = vunpack.c.l.bf16 %v252
      %v285 = vunpack.c.l.bf16 %v253
      %v286 = vunpack.c.l.bf16 %v254
      %v287 = vunpack.c.l.bf16 %v255
      %v288 = vunpack.c.l.bf16 %v256
      %v289 = vunpack.c.l.bf16 %v257
      %v290 = vunpack.c.l.bf16 %v258
      %v291 = vunpack.c.l.bf16 %v259
      %v292 = vunpack.c.l.bf16 %v260
      %v293 = vunpack.c.l.bf16 %v261
      %v294 = vunpack.c.l.bf16 %v262
      %v295 = vunpack.c.l.bf16 %v263
      %v296 = vunpack.c.l.bf16 %v264
      %v297 = vunpack.c.l.bf16 %v265
      %v298 = vunpack.c.l.bf16 %v266
      %v299 = vunpack.c.l.bf16 %v267
      %v300 = vunpack.c.l.bf16 %v268
      %v301 = vunpack.c.l.bf16 %v269
      %v302 = vunpack.c.l.bf16 %v270
      %v303 = vunpack.c.l.bf16 %v271
      %v304 = vunpack.c.l.bf16 %v272
      %v305 = vunpack.c.l.bf16 %v273
      %v306 = vunpack.c.l.bf16 %v274
      %v307 = vunpack.c.l.bf16 %v275
      %v308 = vunpack.c.l.bf16 %v276
      %v309 = vunpack.c.l.bf16 %v277
      %v310 = vunpack.c.l.bf16 %v278
      %v311 = vunpack.c.l.bf16 %v279
      %v312 = vunpack.c.l.bf16 %v280
      %v313 = vunpack.c.l.bf16 %v281
      %v314 = vunpack.c.l.bf16 %v282
      %v315 = vlaneseq
      %v316 = vshrl.u32 %v315, 7
      %v317 = vsub.s32 0, %v316
      %v318 = vrot.slane %v248, %v317
      %v319 = vmul.f32 %v283, %v318
      %v320 = vmul.f32 %v284, %v318
      %v321 = vmul.f32 %v285, %v318
      %v322 = vmul.f32 %v286, %v318
      %v323 = vmul.f32 %v287, %v318
      %v324 = vmul.f32 %v288, %v318
      %v325 = vmul.f32 %v289, %v318
      %v326 = vmul.f32 %v290, %v318
      %v327 = vmul.f32 %v291, %v318
      %v328 = vmul.f32 %v292, %v318
      %v329 = vmul.f32 %v293, %v318
      %v330 = vmul.f32 %v294, %v318
      %v331 = vmul.f32 %v295, %v318
      %v332 = vmul.f32 %v296, %v318
      %v333 = vmul.f32 %v297, %v318
      %v334 = vmul.f32 %v298, %v318
      %v335 = vmul.f32 %v299, %v318
      %v336 = vmul.f32 %v300, %v318
      %v337 = vmul.f32 %v301, %v318
      %v338 = vmul.f32 %v302, %v318
      %v339 = vmul.f32 %v303, %v318
      %v340 = vmul.f32 %v304, %v318
      %v341 = vmul.f32 %v305, %v318
      %v342 = vmul.f32 %v306, %v318
      %v343 = vmul.f32 %v307, %v318
      %v344 = vmul.f32 %v308, %v318
      %v345 = vmul.f32 %v309, %v318
      %v346 = vmul.f32 %v310, %v318
      %v347 = vmul.f32 %v311, %v318
      %v348 = vmul.f32 %v312, %v318
      %v349 = vmul.f32 %v313, %v318
      %v350 = vmul.f32 %v314, %v318
      %v351 = vlaneseq
      %v352 = vshrl.u32 %v351, 7
      %v353 = vsub.s32 0, %v352
      %v354 = vrot.slane %v250, %v353
      %v355 = vadd.f32 %v319, %v354
      %v356 = vadd.f32 %v320, %v354
      %v357 = vadd.f32 %v321, %v354
      %v358 = vadd.f32 %v322, %v354
      %v359 = vadd.f32 %v323, %v354
      %v360 = vadd.f32 %v324, %v354
      %v361 = vadd.f32 %v325, %v354
      %v362 = vadd.f32 %v326, %v354
      %v363 = vadd.f32 %v327, %v354
      %v364 = vadd.f32 %v328, %v354
      %v365 = vadd.f32 %v329, %v354
      %v366 = vadd.f32 %v330, %v354
      %v367 = vadd.f32 %v331, %v354
      %v368 = vadd.f32 %v332, %v354
      %v369 = vadd.f32 %v333, %v354
      %v370 = vadd.f32 %v334, %v354
      %v371 = vadd.f32 %v335, %v354
      %v372 = vadd.f32 %v336, %v354
      %v373 = vadd.f32 %v337, %v354
      %v374 = vadd.f32 %v338, %v354
      %v375 = vadd.f32 %v339, %v354
      %v376 = vadd.f32 %v340, %v354
      %v377 = vadd.f32 %v341, %v354
      %v378 = vadd.f32 %v342, %v354
      %v379 = vadd.f32 %v343, %v354
      %v380 = vadd.f32 %v344, %v354
      %v381 = vadd.f32 %v345, %v354
      %v382 = vadd.f32 %v346, %v354
      %v383 = vadd.f32 %v347, %v354
      %v384 = vadd.f32 %v348, %v354
      %v385 = vadd.f32 %v349, %v354
      %v386 = vadd.f32 %v350, %v354
      %vm387 = vcmp.ge.f32.partialorder %v355, 0.0
      %vm388 = vcmp.ge.f32.partialorder %v356, 0.0
      %vm389 = vcmp.ge.f32.partialorder %v357, 0.0
      %vm390 = vcmp.ge.f32.partialorder %v358, 0.0
      %vm391 = vcmp.ge.f32.partialorder %v359, 0.0
      %vm392 = vcmp.ge.f32.partialorder %v360, 0.0
      %vm393 = vcmp.ge.f32.partialorder %v361, 0.0
      %vm394 = vcmp.ge.f32.partialorder %v362, 0.0
      %vm395 = vcmp.ge.f32.partialorder %v363, 0.0
      %vm396 = vcmp.ge.f32.partialorder %v364, 0.0
      %vm397 = vcmp.ge.f32.partialorder %v365, 0.0
      %vm398 = vcmp.ge.f32.partialorder %v366, 0.0
      %vm399 = vcmp.ge.f32.partialorder %v367, 0.0
      %vm400 = vcmp.ge.f32.partialorder %v368, 0.0
      %vm401 = vcmp.ge.f32.partialorder %v369, 0.0
      %vm402 = vcmp.ge.f32.partialorder %v370, 0.0
      %vm403 = vcmp.ge.f32.partialorder %v371, 0.0
      %vm404 = vcmp.ge.f32.partialorder %v372, 0.0
      %vm405 = vcmp.ge.f32.partialorder %v373, 0.0
      %vm406 = vcmp.ge.f32.partialorder %v374, 0.0
      %vm407 = vcmp.ge.f32.partialorder %v375, 0.0
      %vm408 = vcmp.ge.f32.partialorder %v376, 0.0
      %vm409 = vcmp.ge.f32.partialorder %v377, 0.0
      %vm410 = vcmp.ge.f32.partialorder %v378, 0.0
      %vm411 = vcmp.ge.f32.partialorder %v379, 0.0
      %vm412 = vcmp.ge.f32.partialorder %v380, 0.0
      %vm413 = vcmp.ge.f32.partialorder %v381, 0.0
      %vm414 = vcmp.ge.f32.partialorder %v382, 0.0
      %vm415 = vcmp.ge.f32.partialorder %v383, 0.0
      %vm416 = vcmp.ge.f32.partialorder %v384, 0.0
      %vm417 = vcmp.ge.f32.partialorder %v385, 0.0
      %vm418 = vcmp.ge.f32.partialorder %v386, 0.0
      %v419 = vmul.f32 %v355, 0.01
      %v420 = vmul.f32 %v356, 0.01
      %v421 = vmul.f32 %v357, 0.01
      %v422 = vmul.f32 %v358, 0.01
      %v423 = vmul.f32 %v359, 0.01
      %v424 = vmul.f32 %v360, 0.01
      %v425 = vmul.f32 %v361, 0.01
      %v426 = vmul.f32 %v362, 0.01
      %v427 = vmul.f32 %v363, 0.01
      %v428 = vmul.f32 %v364, 0.01
      %v429 = vmul.f32 %v365, 0.01
      %v430 = vmul.f32 %v366, 0.01
      %v431 = vmul.f32 %v367, 0.01
      %v432 = vmul.f32 %v368, 0.01
      %v433 = vmul.f32 %v369, 0.01
      %v434 = vmul.f32 %v370, 0.01
      %v435 = vmul.f32 %v371, 0.01
      %v436 = vmul.f32 %v372, 0.01
      %v437 = vmul.f32 %v373, 0.01
      %v438 = vmul.f32 %v374, 0.01
      %v439 = vmul.f32 %v375, 0.01
      %v440 = vmul.f32 %v376, 0.01
      %v441 = vmul.f32 %v377, 0.01
      %v442 = vmul.f32 %v378, 0.01
      %v443 = vmul.f32 %v379, 0.01
      %v444 = vmul.f32 %v380, 0.01
      %v445 = vmul.f32 %v381, 0.01
      %v446 = vmul.f32 %v382, 0.01
      %v447 = vmul.f32 %v383, 0.01
      %v448 = vmul.f32 %v384, 0.01
      %v449 = vmul.f32 %v385, 0.01
      %v450 = vmul.f32 %v386, 0.01
      %v451 = vsel %vm387, %v355, %v419
      %v452 = vsel %vm388, %v356, %v420
      %v453 = vsel %vm389, %v357, %v421
      %v454 = vsel %vm390, %v358, %v422
      %v455 = vsel %vm391, %v359, %v423
      %v456 = vsel %vm392, %v360, %v424
      %v457 = vsel %vm393, %v361, %v425
      %v458 = vsel %vm394, %v362, %v426
      %v459 = vsel %vm395, %v363, %v427
      %v460 = vsel %vm396, %v364, %v428
      %v461 = vsel %vm397, %v365, %v429
      %v462 = vsel %vm398, %v366, %v430
      %v463 = vsel %vm399, %v367, %v431
      %v464 = vsel %vm400, %v368, %v432
      %v465 = vsel %vm401, %v369, %v433
      %v466 = vsel %vm402, %v370, %v434
      %v467 = vsel %vm403, %v371, %v435
      %v468 = vsel %vm404, %v372, %v436
      %v469 = vsel %vm405, %v373, %v437
      %v470 = vsel %vm406, %v374, %v438
      %v471 = vsel %vm407, %v375, %v439
      %v472 = vsel %vm408, %v376, %v440
      %v473 = vsel %vm409, %v377, %v441
      %v474 = vsel %vm410, %v378, %v442
      %v475 = vsel %vm411, %v379, %v443
      %v476 = vsel %vm412, %v380, %v444
      %v477 = vsel %vm413, %v381, %v445
      %v478 = vsel %vm414, %v382, %v446
      %v479 = vsel %vm415, %v383, %v447
      %v480 = vsel %vm416, %v384, %v448
      %v481 = vsel %vm417, %v385, %v449
      %v482 = vsel %vm418, %v386, %v450
      %vm483 = vcmask 64512
      %484 = vst.msk [vmem:[%s230] sm:$0xff] %vm483, %v451
      %485 = vst.msk [vmem:[%s230 + $0x8] sm:$0xff] %vm483, %v452
      %486 = vst.msk [vmem:[%s230 + $0x10] sm:$0xff] %vm483, %v453
      %487 = vst.msk [vmem:[%s230 + $0x18] sm:$0xff] %vm483, %v454
      %488 = vst.msk [vmem:[%s230 + $0x20] sm:$0xff] %vm483, %v455
      %489 = vst.msk [vmem:[%s230 + $0x28] sm:$0xff] %vm483, %v456
      %490 = vst.msk [vmem:[%s230 + $0x30] sm:$0xff] %vm483, %v457
      %491 = vst.msk [vmem:[%s230 + $0x38] sm:$0xff] %vm483, %v458
      %492 = vst.msk [vmem:[%s230 + $0x40] sm:$0xff] %vm483, %v459
      %493 = vst.msk [vmem:[%s230 + $0x48] sm:$0xff] %vm483, %v460
      %494 = vst.msk [vmem:[%s230 + $0x50] sm:$0xff] %vm483, %v461
      %495 = vst.msk [vmem:[%s230 + $0x58] sm:$0xff] %vm483, %v462
      %496 = vst.msk [vmem:[%s230 + $0x60] sm:$0xff] %vm483, %v463
      %497 = vst.msk [vmem:[%s230 + $0x68] sm:$0xff] %vm483, %v464
      %498 = vst.msk [vmem:[%s230 + $0x70] sm:$0xff] %vm483, %v465
      %499 = vst.msk [vmem:[%s230 + $0x78] sm:$0xff] %vm483, %v466
      %500 = vst.msk [vmem:[%s230 + $0x80] sm:$0xff] %vm483, %v467
      %501 = vst.msk [vmem:[%s230 + $0x88] sm:$0xff] %vm483, %v468
      %502 = vst.msk [vmem:[%s230 + $0x90] sm:$0xff] %vm483, %v469
      %503 = vst.msk [vmem:[%s230 + $0x98] sm:$0xff] %vm483, %v470
      %504 = vst.msk [vmem:[%s230 + $0xa0] sm:$0xff] %vm483, %v471
      %505 = vst.msk [vmem:[%s230 + $0xa8] sm:$0xff] %vm483, %v472
      %506 = vst.msk [vmem:[%s230 + $0xb0] sm:$0xff] %vm483, %v473
      %507 = vst.msk [vmem:[%s230 + $0xb8] sm:$0xff] %vm483, %v474
      %508 = vst.msk [vmem:[%s230 + $0xc0] sm:$0xff] %vm483, %v475
      %509 = vst.msk [vmem:[%s230 + $0xc8] sm:$0xff] %vm483, %v476
      %510 = vst.msk [vmem:[%s230 + $0xd0] sm:$0xff] %vm483, %v477
      %511 = vst.msk [vmem:[%s230 + $0xd8] sm:$0xff] %vm483, %v478
      %512 = vst.msk [vmem:[%s230 + $0xe0] sm:$0xff] %vm483, %v479
      %513 = vst.msk [vmem:[%s230 + $0xe8] sm:$0xff] %vm483, %v480
      %514 = vst.msk [vmem:[%s230 + $0xf0] sm:$0xff] %vm483, %v481
      %515 = vst.msk [vmem:[%s230 + $0xf8] sm:$0xff] %vm483, %v482
      %s516 = smul.u32 16, %s19
      %p517 = scmp.lt.s32.totalorder %s18, 1
      %s518 = scalar_select %p517, %s18, 1
      %p519 = scmp.lt.s32.totalorder %s516, 15
      %s520 = scalar_select %p519, %s516, 15
      %s521 = smul.addr %s520, 2
      %s522 = smul.addr %s518, 32
      %s523 = sadd.s32 %s521, %s522
      %s524 = smul.addr %s523, 8
      %s525 = scalar_lea.vmem %s3, %s524
      // Predicated region
      $region33: #{conv_dropout_norm_relu.3} parent=31 // pred_check
        %p526 = pneg %p121
      $region34: #{conv_dropout_norm_relu.3} parent=31 // pred_check_branch
        %528 = sbr.rel (%p526) target = $region36
      $region35: #{conv_dropout_norm_relu.3} parent=31 // pred_region
        %s529 = smul.u32 16, %s19
      $region36: #{conv_dropout_norm_relu.3} parent=31 // pred_fallthru
        _
    $region32: #{conv_dropout_norm_relu.3} parent=5 // pred_fallthru
      _
    %p530 = scmp.le.s32.totalorder 2, %s9
    // Predicated region
    $region37: #{conv_dropout_norm_relu.3} parent=5 // pred_check
      %p531 = pneg %p530
    $region38: #{conv_dropout_norm_relu.3} parent=5 // pred_check_branch
      %533 = sbr.rel (%p531) target = $region40
    $region39: #{conv_dropout_norm_relu.3} parent=5 // pred_region
      %s534 = ssub.s32 %s9, 2
      // Predicated region
      $region41: #{conv_dropout_norm_relu.3} parent=39 // pred_check
        %p535 = pneg %p127
      $region42: #{conv_dropout_norm_relu.3} parent=39 // pred_check_branch
        %537 = sbr.rel (%p535) target = $region44
      $region43: #{conv_dropout_norm_relu.3} parent=39 // pred_region
        %s538 = smul.u32 16, %s21
        %p539 = scmp.lt.s32.totalorder %s20, 1
        %s540 = scalar_select %p539, %s20, 1
        %p541 = scmp.lt.s32.totalorder %s538, 15
        %s542 = scalar_select %p541, %s538, 15
        %s543 = smul.addr %s542, 2
        %s544 = smul.addr %s540, 32
        %s545 = sadd.s32 %s543, %s544
        %s546 = smul.addr %s545, 8
        %s547 = scalar_lea.vmem %s3, %s546
      $region44: #{conv_dropout_norm_relu.3} parent=39 // pred_fallthru
        _
    $region40: #{conv_dropout_norm_relu.3} parent=5 // pred_fallthru
      _
  $region6: #{conv_dropout_norm_relu.3} parent=0 // loop_footer
    %s13 = sadd.s32 1, %s9
  $region7: #{conv_dropout_norm_relu.3} parent=0 // loop_footer_branch
    %8 = sbr.rel target = $region3
  $region8: #{conv_dropout_norm_relu.3} parent=0 // loop_exit
    _

// kernel: conv_dropout_norm_relu.2
$region0: #{conv_dropout_norm_relu.2}
  #allocation0 [shape = 'u32[]', space=smem, size = 0x4, offset = 0x4, fixed_abs, tag = 'smem constant byte address 0x4 - core index']
  #allocation1 [shape = 'u32[144,128]{1,0:T(1,128)}', space=vmem, size = 0x12000, scoped, tag = 'internal scratch']
  %s0 = inlined_call_operand.vmem [shape: bf16[2,18,18,4], index: 0, kind: input, shape index: {}]
  %s1 = inlined_call_operand.vmem [shape: bf16[36,128], index: 1, kind: input, shape index: {}]
  %s2 = inlined_call_operand.vmem [shape: bf16[2,16,16,8], index: 2, kind: output, shape index: {0}]
  %s3 = inlined_call_operand.vmem [shape: f32[2,1,2,8], index: 3, kind: output, shape index: {1}]
  %4 = xla_tuple %s2, %s3
  %s5 = sld [smem:[#allocation0]]
  $region49: #{conv_dropout_norm_relu.2} parent=0
    _
  %s7 = ssub.s32 1, %s5
  %s8 = scalar_select 0, %s7, %s5
  loop: start=0, step=1, limit=4
  $region2: #{conv_dropout_norm_relu.2} parent=0 // loop_pre_header
    _
  $region3: #{conv_dropout_norm_relu.2} parent=0 // loop_header
    %s10 = sphi 0, %s14
    %p11 = scmp.ge.s32.totalorder %s10, 4
    %s17 = sphi 0, %s29
    %s18 = sphi 0, %s25
    %s19 = sphi 0, %s17
    %s20 = sphi 0, %s18
    %s21 = sphi 0, %s19
    %s22 = sphi 0, %s20
    %s32 = sphi 0, %s34
    %s35 = sphi 0, %s32
    %s36 = sphi 0, %s35
    %s52 = sphi 0, %s36
    %s56 = sphi 0, %s56
    %s58 = sphi 0, %s56
    %s59 = sphi 0, %s58
    %s73 = sphi 0, %s59
    %s81 = sphi 0, %s83
    %s84 = sphi 0, %s81
    %s85 = sphi 0, %s84
    %s101 = sphi 0, %s85
    %s109 = sphi 0, %s111
    %s112 = sphi 0, %s109
    %s113 = sphi 0, %s112
    %s129 = sphi 0, %s113
  $region4: #{conv_dropout_norm_relu.2} parent=0 // loop_header_branch
    %13 = sbr.rel (%p11) target = $region8
  $region5: #{conv_dropout_norm_relu.2} parent=0 // loop_body
    %s15 = ssub.s32 %s10, 1
    %s16 = ssub.s32 %s10, 2
    %s23 = sadd.s32 1, %s18
    %p24 = scmp.ge.s32.totalorder %s23, 1
    %s25 = scalar_select %p24, 0, %s23
    %s26 = sadd.s32 1, %s17
    %s27 = scalar_select %p24, %s26, %s17
    %p28 = scmp.ge.s32.totalorder %s27, 2
    %s29 = scalar_select %p28, 0, %s27
    %s30 = ssub.s32 %s17, %s29
    %p31 = scmp.eq.s32.totalorder %s30, 0
    %s33 = sadd.s32 %s32, 1
    %s34 = scalar_select %p31, %s32, %s33
    %p37 = pneg %p31
    %p38 = scmp.eq.s32.totalorder %s10, 1
    %p39 = por %p37, %p38
    %p40 = scmp.ne.s32.totalorder %s32, %s35
    %p41 = scmp.eq.s32.totalorder %s10, 0
    %p42 = por %p40, %p41
    %p43 = scmp.ne.s32.totalorder %s32, %s35
    %p44 = scmp.eq.s32.totalorder %s15, 1
    %p45 = por %p43, %p44
    %p46 = scmp.ne.s32.totalorder %s35, %s36
    %p47 = scmp.eq.s32.totalorder %s15, 0
    %p48 = por %p46, %p47
    %p49 = scmp.ne.s32.totalorder %s35, %s36
    %p50 = scmp.eq.s32.totalorder %s16, 1
    %p51 = por %p49, %p50
    %p53 = scmp.ne.s32.totalorder %s36, %s52
    %p54 = scmp.eq.s32.totalorder %s16, 0
    %p55 = por %p53, %p54
    %s57 = sadd.s32 %s56, 1
    %p60 = scmp.eq.s32.totalorder %s10, 1
    %p61 = scmp.ne.s32.totalorder %s56, %s58
    %p62 = scmp.eq.s32.totalorder %s10, 0
    %p63 = por %p61, %p62
    %p64 = scmp.ne.s32.totalorder %s56, %s58
    %p65 = scmp.eq.s32.totalorder %s15, 1
    %p66 = por %p64, %p65
    %p67 = scmp.ne.s32.totalorder %s58, %s59
    %p68 = scmp.eq.s32.totalorder %s15, 0
    %p69 = por %p67, %p68
    %p70 = scmp.ne.s32.totalorder %s58, %s59
    %p71 = scmp.eq.s32.totalorder %s16, 1
    %p72 = por %p70, %p71
    %p74 = scmp.ne.s32.totalorder %s59, %s73
    %p75 = scmp.eq.s32.totalorder %s16, 0
    %p76 = por %p74, %p75
    %s77 = ssub.s32 %s17, %s29
    %s78 = ssub.s32 %s18, %s25
    %s79 = sor.u32 %s77, %s78
    %p80 = scmp.eq.s32.totalorder %s79, 0
    %s82 = sadd.s32 %s81, 1
    %s83 = scalar_select %p80, %s81, %s82
    %p86 = pneg %p80
    %p87 = scmp.eq.s32.totalorder %s10, 1
    %p88 = por %p86, %p87
    %p89 = scmp.ne.s32.totalorder %s81, %s84
    %p90 = scmp.eq.s32.totalorder %s10, 0
    %p91 = por %p89, %p90
    %p92 = scmp.ne.s32.totalorder %s81, %s84
    %p93 = scmp.eq.s32.totalorder %s15, 1
    %p94 = por %p92, %p93
    %p95 = scmp.ne.s32.totalorder %s84, %s85
    %p96 = scmp.eq.s32.totalorder %s15, 0
    %p97 = por %p95, %p96
    %p98 = scmp.ne.s32.totalorder %s84, %s85
    %p99 = scmp.eq.s32.totalorder %s16, 1
    %p100 = por %p98, %p99
    %p102 = scmp.ne.s32.totalorder %s85, %s101
    %p103 = scmp.eq.s32.totalorder %s16, 0
    %p104 = por %p102, %p103
    %s105 = ssub.s32 %s17, %s29
    %s106 = ssub.s32 %s18, %s25
    %s107 = sor.u32 %s105, %s106
    %p108 = scmp.eq.s32.totalorder %s107, 0
    %s110 = sadd.s32 %s109, 1
    %s111 = scalar_select %p108, %s109, %s110
    %p114 = pneg %p108
    %p115 = scmp.eq.s32.totalorder %s10, 1
    %p116 = por %p114, %p115
    %p117 = scmp.ne.s32.totalorder %s109, %s112
    %p118 = scmp.eq.s32.totalorder %s10, 0
    %p119 = por %p117, %p118
    %p120 = scmp.ne.s32.totalorder %s109, %s112
    %p121 = scmp.eq.s32.totalorder %s15, 1
    %p122 = por %p120, %p121
    %p123 = scmp.ne.s32.totalorder %s112, %s113
    %p124 = scmp.eq.s32.totalorder %s15, 0
    %p125 = por %p123, %p124
    %p126 = scmp.ne.s32.totalorder %s112, %s113
    %p127 = scmp.eq.s32.totalorder %s16, 1
    %p128 = por %p126, %p127
    %p130 = scmp.ne.s32.totalorder %s113, %s129
    %p131 = scmp.eq.s32.totalorder %s16, 0
    %p132 = por %p130, %p131
    %p133 = scmp.le.s32.totalorder 1, %s10
    %p134 = scmp.lt.s32.totalorder %s10, 3
    %p135 = pnand %p133, %p134
    %p136 = pneg %p135
    // Predicated region
    $region9: #{conv_dropout_norm_relu.2} parent=5 // pred_check
      _
    $region10: #{conv_dropout_norm_relu.2} parent=5 // pred_check_branch
      %138 = sbr.rel (%p135) target = $region12
    $region11: #{conv_dropout_norm_relu.2} parent=5 // pred_region
      %s139 = ssub.s32 %s10, 1
      // Predicated region
      $region13: #{conv_dropout_norm_relu.2} parent=11 // pred_check
        %p140 = pneg %p69
      $region14: #{conv_dropout_norm_relu.2} parent=11 // pred_check_branch
        %142 = sbr.rel (%p140) target = $region16
      $region15: #{conv_dropout_norm_relu.2} parent=11 // pred_region
        _
      $region16: #{conv_dropout_norm_relu.2} parent=11 // pred_fallthru
        _
    $region12: #{conv_dropout_norm_relu.2} parent=5 // pred_fallthru
      _
    %p143 = scmp.lt.s32.totalorder %s10, 2
    // Predicated region
    $region17: #{conv_dropout_norm_relu.2} parent=5 // pred_check
      %p144 = pneg %p143
    $region18: #{conv_dropout_norm_relu.2} parent=5 // pred_check_branch
      %146 = sbr.rel (%p144) target = $region20
    $region19: #{conv_dropout_norm_relu.2} parent=5 // pred_region
      // Predicated region
      $region21: #{conv_dropout_norm_relu.2} parent=19 // pred_check
        %p147 = pneg %p42
      $region22: #{conv_dropout_norm_relu.2} parent=19 // pred_check_branch
        %149 = sbr.rel (%p147) target = $region24
      $region23: #{conv_dropout_norm_relu.2} parent=19 // pred_region
        %p150 = scmp.lt.s32.totalorder %s17, 1
        %s151 = scalar_select %p150, %s17, 1
        %s152 = smul.addr %s151, 54
        %s153 = smul.addr %s152, 4
        %s154 = scalar_lea.vmem %s0, %s153
      $region24: #{conv_dropout_norm_relu.2} parent=19 // pred_fallthru
        _
    $region20: #{conv_dropout_norm_relu.2} parent=5 // pred_fallthru
      _
    %p155 = scmp.le.s32.totalorder 1, %s10
    %p156 = scmp.lt.s32.totalorder %s10, 3
    %p157 = pnand %p155, %p156
    %p158 = pneg %p157
    // Predicated region
    $region25: #{conv_dropout_norm_relu.2} parent=5 // pred_check
      _
    $region26: #{conv_dropout_norm_relu.2} parent=5 // pred_check_branch
      %160 = sbr.rel (%p157) target = $region28
    $region27: #{conv_dropout_norm_relu.2} parent=5 // pred_region
      %s161 = ssub.s32 %s10, 1
      %p162 = scmp.lt.s32.totalorder %s19, 1
      %s163 = scalar_select %p162, %s19, 1
      %s164 = smul.addr %s163, 54
      %s165 = smul.addr %s164, 4
      %s166 = scalar_lea.vmem %s0, %s165
      %p167 = pneg %p48
      %p168 = pneg %p45
      %p169 = pneg %p69
      %p170 = pneg %p66
      %p171 = pneg %p97
      %p172 = pneg %p94
      %s173 = smul.u32 16, %s20
      %p174 = scmp.lt.s32.totalorder %s19, 1
      %s175 = scalar_select %p174, %s19, 1
      %p176 = scmp.lt.s32.totalorder %s173, 15
      %s177 = scalar_select %p176, %s173, 15
      %s178 = smul.addr %s177, 2
      %s179 = smul.addr %s175, 32
      %s180 = sadd.s32 %s178, %s179
      %s181 = smul.addr %s180, 4
      %s182 = scalar_lea.vmem %s2, %s181
      %p183 = pneg %p125
      %p184 = pneg %p122
      %p185 = scmp.lt.s32.totalorder %s19, 1
      %s186 = scalar_select %p185, %s19, 1
      %p187 = scmp.lt.s32.totalorder %s20, 0
      %s188 = scalar_select %p187, %s20, 0
      %s189 = sadd.s32 %s188, %s186
      %s190 = smul.addr %s189, 2
      %s191 = scalar_lea.vmem %s3, %s190
      %p192 = scmp.lt.s32.totalorder %s19, 1
      %s193 = scalar_select %p192, %s19, 1
      %s194 = smul.addr %s193, 54
      %s195 = smul.addr %s194, 4
      %s196 = scalar_lea.vmem %s0, %s195
      %s197 = smul.u32 16, %s20
      %p198 = scmp.lt.s32.totalorder %s19, 1
      %s199 = scalar_select %p198, %s19, 1
      %p200 = scmp.lt.s32.totalorder %s197, 15
      %s201 = scalar_select %p200, %s197, 15
      %s202 = smul.addr %s201, 2
      %s203 = smul.addr %s199, 32
      %s204 = sadd.s32 %s202, %s203
      %s205 = smul.addr %s204, 4
      %s206 = scalar_lea.vmem %s2, %s205
      %s207 = smul.u32 16, %s20
      %p208 = scmp.lt.s32.totalorder %s19, 1
      %s209 = scalar_select %p208, %s19, 1
      %p210 = scmp.lt.s32.totalorder %s20, 0
      %s211 = scalar_select %p210, %s20, 0
      %s212 = sadd.s32 %s211, %s209
      %s213 = smul.addr %s212, 2
      %s214 = scalar_lea.vmem %s3, %s213
      %s216 = smul.u32 %s20, 16
      %s217 = smul.u32 %s216, 3
      %s218 = smul.addr %s217, 4
      %s219 = scalar_lea.vmem %s196, %s218
      %v220 = vld [vmem:[%s219] sm:$0xf]
      %v221 = vld [vmem:[%s219 + $0x4] sm:$0xf]
      %v222 = vld [vmem:[%s219 + $0xc] sm:$0xf]
      %v223 = vld [vmem:[%s219 + $0x10] sm:$0xf]
      %v224 = vld [vmem:[%s219 + $0x18] sm:$0xf]
      %v225 = vld [vmem:[%s219 + $0x1c] sm:$0xf]
      %v226 = vld [vmem:[%s219 + $0x24] sm:$0xf]
      %v227 = vld [vmem:[%s219 + $0x28] sm:$0xf]
      %v228 = vld [vmem:[%s219 + $0x30] sm:$0xf]
      %v229 = vld [vmem:[%s219 + $0x34] sm:$0xf]
      %v230 = vld [vmem:[%s219 + $0x3c] sm:$0xf]
      %v231 = vld [vmem:[%s219 + $0x40] sm:$0xf]
      %v232 = vld [vmem:[%s219 + $0x48] sm:$0xf]
      %v233 = vld [vmem:[%s219 + $0x4c] sm:$0xf]
      %v234 = vld [vmem:[%s219 + $0x54] sm:$0xf]
      %v235 = vld [vmem:[%s219 + $0x58] sm:$0xf]
      %v236 = vld [vmem:[%s219 + $0x60] sm:$0xf]
      %v237 = vld [vmem:[%s219 + $0x64] sm:$0xf]
      %v238 = vld [vmem:[%s219 + $0x6c] sm:$0xf]
      %v239 = vld [vmem:[%s219 + $0x70] sm:$0xf]
      %v240 = vld [vmem:[%s219 + $0x78] sm:$0xf]
      %v241 = vld [vmem:[%s219 + $0x7c] sm:$0xf]
      %v242 = vld [vmem:[%s219 + $0x84] sm:$0xf]
      %v243 = vld [vmem:[%s219 + $0x88] sm:$0xf]
      %v244 = vld [vmem:[%s219 + $0x90] sm:$0xf]
      %v245 = vld [vmem:[%s219 + $0x94] sm:$0xf]
      %v246 = vld [vmem:[%s219 + $0x9c] sm:$0xf]
      %v247 = vld [vmem:[%s219 + $0xa0] sm:$0xf]
      %v248 = vld [vmem:[%s219 + $0xa8] sm:$0xf]
      %v249 = vld [vmem:[%s219 + $0xac] sm:$0xf]
      %v250 = vld [vmem:[%s219 + $0xb4] sm:$0xf]
      %v251 = vld [vmem:[%s219 + $0xb8] sm:$0xf]
      %v252 = vld [vmem:[%s219 + $0x8] sm:$0x1]
      %v253 = vld [vmem:[%s219 + $0x14] sm:$0x1]
      %v254 = vld [vmem:[%s219 + $0x20] sm:$0x1]
      %v255 = vld [vmem:[%s219 + $0x2c] sm:$0x1]
      %v256 = vld [vmem:[%s219 + $0x38] sm:$0x1]
      %v257 = vld [vmem:[%s219 + $0x44] sm:$0x1]
      %v258 = vld [vmem:[%s219 + $0x50] sm:$0x1]
      %v259 = vld [vmem:[%s219 + $0x5c] sm:$0x1]
      %v260 = vld [vmem:[%s219 + $0x68] sm:$0x1]
      %v261 = vld [vmem:[%s219 + $0x74] sm:$0x1]
      %v262 = vld [vmem:[%s219 + $0x80] sm:$0x1]
      %v263 = vld [vmem:[%s219 + $0x8c] sm:$0x1]
      %v264 = vld [vmem:[%s219 + $0x98] sm:$0x1]
      %v265 = vld [vmem:[%s219 + $0xa4] sm:$0x1]
      %v266 = vld [vmem:[%s219 + $0xb0] sm:$0x1]
      %v267 = vld [vmem:[%s219 + $0xbc] sm:$0x1]
      %v268 = vld [vmem:[%s219] sm:$0xe]
      %v269 = vld [vmem:[%s219 + $0xc] sm:$0xe]
      %v270 = vld [vmem:[%s219 + $0x18] sm:$0xe]
      %v271 = vld [vmem:[%s219 + $0x24] sm:$0xe]
      %v272 = vld [vmem:[%s219 + $0x30] sm:$0xe]
      %v273 = vld [vmem:[%s219 + $0x3c] sm:$0xe]
      %v274 = vld [vmem:[%s219 + $0x48] sm:$0xe]
      %v275 = vld [vmem:[%s219 + $0x54] sm:$0xe]
      %v276 = vld [vmem:[%s219 + $0x60] sm:$0xe]
      %v277 = vld [vmem:[%s219 + $0x6c] sm:$0xe]
      %v278 = vld [vmem:[%s219 + $0x78] sm:$0xe]
      %v279 = vld [vmem:[%s219 + $0x84] sm:$0xe]
      %v280 = vld [vmem:[%s219 + $0x90] sm:$0xe]
      %v281 = vld [vmem:[%s219 + $0x9c] sm:$0xe]
      %v282 = vld [vmem:[%s219 + $0xa8] sm:$0xe]
      %v283 = vld [vmem:[%s219 + $0xb4] sm:$0xe]
      %s284 = sadd.s32 %s216, 1
      %s285 = smul.u32 %s284, 3
      %s286 = smul.addr %s285, 4
      %s287 = scalar_lea.vmem %s196, %s286
      %v288 = vld [vmem:[%s287] sm:$0xf]
      %v289 = vld [vmem:[%s287 + $0x4] sm:$0xf]
      %v290 = vld [vmem:[%s287 + $0xc] sm:$0xf]
      %v291 = vld [vmem:[%s287 + $0x10] sm:$0xf]
      %v292 = vld [vmem:[%s287 + $0x18] sm:$0xf]
      %v293 = vld [vmem:[%s287 + $0x1c] sm:$0xf]
      %v294 = vld [vmem:[%s287 + $0x24] sm:$0xf]
      %v295 = vld [vmem:[%s287 + $0x28] sm:$0xf]
      %v296 = vld [vmem:[%s287 + $0x30] sm:$0xf]
      %v297 = vld [vmem:[%s287 + $0x34] sm:$0xf]
      %v298 = vld [vmem:[%s287 + $0x3c] sm:$0xf]
      %v299 = vld [vmem:[%s287 + $0x40] sm:$0xf]
      %v300 = vld [vmem:[%s287 + $0x48] sm:$0xf]
      %v301 = vld [vmem:[%s287 + $0x4c] sm:$0xf]
      %v302 = vld [vmem:[%s287 + $0x54] sm:$0xf]
      %v303 = vld [vmem:[%s287 + $0x58] sm:$0xf]
      %v304 = vld [vmem:[%s287 + $0x60] sm:$0xf]
      %v305 = vld [vmem:[%s287 + $0x64] sm:$0xf]
      %v306 = vld [vmem:[%s287 + $0x6c] sm:$0xf]
      %v307 = vld [vmem:[%s287 + $0x70] sm:$0xf]
      %v308 = vld [vmem:[%s287 + $0x78] sm:$0xf]
      %v309 = vld [vmem:[%s287 + $0x7c] sm:$0xf]
      %v310 = vld [vmem:[%s287 + $0x84] sm:$0xf]
      %v311 = vld [vmem:[%s287 + $0x88] sm:$0xf]
      %v312 = vld [vmem:[%s287 + $0x90] sm:$0xf]
      %v313 = vld [vmem:[%s287 + $0x94] sm:$0xf]
      %v314 = vld [vmem:[%s287 + $0x9c] sm:$0xf]
      %v315 = vld [vmem:[%s287 + $0xa0] sm:$0xf]
      %v316 = vld [vmem:[%s287 + $0xa8] sm:$0xf]
      %v317 = vld [vmem:[%s287 + $0xac] sm:$0xf]
      %v318 = vld [vmem:[%s287 + $0xb4] sm:$0xf]
      %v319 = vld [vmem:[%s287 + $0xb8] sm:$0xf]
      %v320 = vld [vmem:[%s287 + $0x8] sm:$0x1]
      %v321 = vld [vmem:[%s287 + $0x14] sm:$0x1]
      %v322 = vld [vmem:[%s287 + $0x20] sm:$0x1]
      %v323 = vld [vmem:[%s287 + $0x2c] sm:$0x1]
      %v324 = vld [vmem:[%s287 + $0x38] sm:$0x1]
      %v325 = vld [vmem:[%s287 + $0x44] sm:$0x1]
      %v326 = vld [vmem:[%s287 + $0x50] sm:$0x1]
      %v327 = vld [vmem:[%s287 + $0x5c] sm:$0x1]
      %v328 = vld [vmem:[%s287 + $0x68] sm:$0x1]
      %v329 = vld [vmem:[%s287 + $0x74] sm:$0x1]
      %v330 = vld [vmem:[%s287 + $0x80] sm:$0x1]
      %v331 = vld [vmem:[%s287 + $0x8c] sm:$0x1]
      %v332 = vld [vmem:[%s287 + $0x98] sm:$0x1]
      %v333 = vld [vmem:[%s287 + $0xa4] sm:$0x1]
      %v334 = vld [vmem:[%s287 + $0xb0] sm:$0x1]
      %v335 = vld [vmem:[%s287 + $0xbc] sm:$0x1]
      %v336 = vld [vmem:[%s287] sm:$0xe]
      %v337 = vld [vmem:[%s287 + $0xc] sm:$0xe]
      %v338 = vld [vmem:[%s287 + $0x18] sm:$0xe]
      %v339 = vld [vmem:[%s287 + $0x24] sm:$0xe]
      %v340 = vld [vmem:[%s287 + $0x30] sm:$0xe]
      %v341 = vld [vmem:[%s287 + $0x3c] sm:$0xe]
      %v342 = vld [vmem:[%s287 + $0x48] sm:$0xe]
      %v343 = vld [vmem:[%s287 + $0x54] sm:$0xe]
      %v344 = vld [vmem:[%s287 + $0x60] sm:$0xe]
      %v345 = vld [vmem:[%s287 + $0x6c] sm:$0xe]
      %v346 = vld [vmem:[%s287 + $0x78] sm:$0xe]
      %v347 = vld [vmem:[%s287 + $0x84] sm:$0xe]
      %v348 = vld [vmem:[%s287 + $0x90] sm:$0xe]
      %v349 = vld [vmem:[%s287 + $0x9c] sm:$0xe]
      %v350 = vld [vmem:[%s287 + $0xa8] sm:$0xe]
      %v351 = vld [vmem:[%s287 + $0xb4] sm:$0xe]
      %s352 = sadd.s32 %s216, 2
      %s353 = smul.u32 %s352, 3
      %s354 = smul.addr %s353, 4
      %s355 = scalar_lea.vmem %s196, %s354
      %v356 = vld [vmem:[%s355] sm:$0xf]
      %v357 = vld [vmem:[%s355 + $0x4] sm:$0xf]
      %v358 = vld [vmem:[%s355 + $0xc] sm:$0xf]
      %v359 = vld [vmem:[%s355 + $0x10] sm:$0xf]
      %v360 = vld [vmem:[%s355 + $0x18] sm:$0xf]
      %v361 = vld [vmem:[%s355 + $0x1c] sm:$0xf]
      %v362 = vld [vmem:[%s355 + $0x24] sm:$0xf]
      %v363 = vld [vmem:[%s355 + $0x28] sm:$0xf]
      %v364 = vld [vmem:[%s355 + $0x30] sm:$0xf]
      %v365 = vld [vmem:[%s355 + $0x34] sm:$0xf]
      %v366 = vld [vmem:[%s355 + $0x3c] sm:$0xf]
      %v367 = vld [vmem:[%s355 + $0x40] sm:$0xf]
      %v368 = vld [vmem:[%s355 + $0x48] sm:$0xf]
      %v369 = vld [vmem:[%s355 + $0x4c] sm:$0xf]
      %v370 = vld [vmem:[%s355 + $0x54] sm:$0xf]
      %v371 = vld [vmem:[%s355 + $0x58] sm:$0xf]
      %v372 = vld [vmem:[%s355 + $0x60] sm:$0xf]
      %v373 = vld [vmem:[%s355 + $0x64] sm:$0xf]
      %v374 = vld [vmem:[%s355 + $0x6c] sm:$0xf]
      %v375 = vld [vmem:[%s355 + $0x70] sm:$0xf]
      %v376 = vld [vmem:[%s355 + $0x78] sm:$0xf]
      %v377 = vld [vmem:[%s355 + $0x7c] sm:$0xf]
      %v378 = vld [vmem:[%s355 + $0x84] sm:$0xf]
      %v379 = vld [vmem:[%s355 + $0x88] sm:$0xf]
      %v380 = vld [vmem:[%s355 + $0x90] sm:$0xf]
      %v381 = vld [vmem:[%s355 + $0x94] sm:$0xf]
      %v382 = vld [vmem:[%s355 + $0x9c] sm:$0xf]
      %v383 = vld [vmem:[%s355 + $0xa0] sm:$0xf]
      %v384 = vld [vmem:[%s355 + $0xa8] sm:$0xf]
      %v385 = vld [vmem:[%s355 + $0xac] sm:$0xf]
      %v386 = vld [vmem:[%s355 + $0xb4] sm:$0xf]
      %v387 = vld [vmem:[%s355 + $0xb8] sm:$0xf]
      %v388 = vld [vmem:[%s355 + $0x8] sm:$0x1]
      %v389 = vld [vmem:[%s355 + $0x14] sm:$0x1]
      %v390 = vld [vmem:[%s355 + $0x20] sm:$0x1]
      %v391 = vld [vmem:[%s355 + $0x2c] sm:$0x1]
      %v392 = vld [vmem:[%s355 + $0x38] sm:$0x1]
      %v393 = vld [vmem:[%s355 + $0x44] sm:$0x1]
      %v394 = vld [vmem:[%s355 + $0x50] sm:$0x1]
      %v395 = vld [vmem:[%s355 + $0x5c] sm:$0x1]
      %v396 = vld [vmem:[%s355 + $0x68] sm:$0x1]
      %v397 = vld [vmem:[%s355 + $0x74] sm:$0x1]
      %v398 = vld [vmem:[%s355 + $0x80] sm:$0x1]
      %v399 = vld [vmem:[%s355 + $0x8c] sm:$0x1]
      %v400 = vld [vmem:[%s355 + $0x98] sm:$0x1]
      %v401 = vld [vmem:[%s355 + $0xa4] sm:$0x1]
      %v402 = vld [vmem:[%s355 + $0xb0] sm:$0x1]
      %v403 = vld [vmem:[%s355 + $0xbc] sm:$0x1]
      %v404 = vld [vmem:[%s355] sm:$0xe]
      %v405 = vld [vmem:[%s355 + $0xc] sm:$0xe]
      %v406 = vld [vmem:[%s355 + $0x18] sm:$0xe]
      %v407 = vld [vmem:[%s355 + $0x24] sm:$0xe]
      %v408 = vld [vmem:[%s355 + $0x30] sm:$0xe]
      %v409 = vld [vmem:[%s355 + $0x3c] sm:$0xe]
      %v410 = vld [vmem:[%s355 + $0x48] sm:$0xe]
      %v411 = vld [vmem:[%s355 + $0x54] sm:$0xe]
      %v412 = vld [vmem:[%s355 + $0x60] sm:$0xe]
      %v413 = vld [vmem:[%s355 + $0x6c] sm:$0xe]
      %v414 = vld [vmem:[%s355 + $0x78] sm:$0xe]
      %v415 = vld [vmem:[%s355 + $0x84] sm:$0xe]
      %v416 = vld [vmem:[%s355 + $0x90] sm:$0xe]
      %v417 = vld [vmem:[%s355 + $0x9c] sm:$0xe]
      %v418 = vld [vmem:[%s355 + $0xa8] sm:$0xe]
      %v419 = vld [vmem:[%s355 + $0xb4] sm:$0xe]
      %v452 = vunpack.c.l.b16 %v220
      %v453 = vunpack.c.l.b16 %v221
      %v454 = vunpack.c.l.b16 %v222
      %v455 = vunpack.c.l.b16 %v223
      %v456 = vunpack.c.l.b16 %v224
      %v457 = vunpack.c.l.b16 %v225
      %v458 = vunpack.c.l.b16 %v226
      %v459 = vunpack.c.l.b16 %v227
      %v460 = vunpack.c.l.b16 %v228
      %v461 = vunpack.c.l.b16 %v229
      %v462 = vunpack.c.l.b16 %v230
      %v463 = vunpack.c.l.b16 %v231
      %v464 = vunpack.c.l.b16 %v232
      %v465 = vunpack.c.l.b16 %v233
      %v466 = vunpack.c.l.b16 %v234
      %v467 = vunpack.c.l.b16 %v235
      %v468 = vunpack.c.l.b16 %v236
      %v469 = vunpack.c.l.b16 %v237
      %v470 = vunpack.c.l.b16 %v238
      %v471 = vunpack.c.l.b16 %v239
      %v472 = vunpack.c.l.b16 %v240
      %v473 = vunpack.c.l.b16 %v241
      %v474 = vunpack.c.l.b16 %v242
      %v475 = vunpack.c.l.b16 %v243
      %v476 = vunpack.c.l.b16 %v244
      %v477 = vunpack.c.l.b16 %v245
      %v478 = vunpack.c.l.b16 %v246
      %v479 = vunpack.c.l.b16 %v247
      %v480 = vunpack.c.l.b16 %v248
      %v481 = vunpack.c.l.b16 %v249
      %v482 = vunpack.c.l.b16 %v250
      %v483 = vunpack.c.l.b16 %v251
      %v484 = vpack.c.b16 %v453, %v452
      %v485 = vpack.c.b16 %v455, %v454
      %v486 = vpack.c.b16 %v457, %v456
      %v487 = vpack.c.b16 %v459, %v458
      %v488 = vpack.c.b16 %v461, %v460
      %v489 = vpack.c.b16 %v463, %v462
      %v490 = vpack.c.b16 %v465, %v464
      %v491 = vpack.c.b16 %v467, %v466
      %v492 = vpack.c.b16 %v469, %v468
      %v493 = vpack.c.b16 %v471, %v470
      %v494 = vpack.c.b16 %v473, %v472
      %v495 = vpack.c.b16 %v475, %v474
      %v496 = vpack.c.b16 %v477, %v476
      %v497 = vpack.c.b16 %v479, %v478
      %v498 = vpack.c.b16 %v481, %v480
      %v499 = vpack.c.b16 %v483, %v482
      %v516 = vunpack.c.l.b16 %v252
      %v517 = vunpack.c.l.b16 %v253
      %v518 = vunpack.c.l.b16 %v254
      %v519 = vunpack.c.l.b16 %v255
      %v520 = vunpack.c.l.b16 %v256
      %v521 = vunpack.c.l.b16 %v257
      %v522 = vunpack.c.l.b16 %v258
      %v523 = vunpack.c.l.b16 %v259
      %v524 = vunpack.c.l.b16 %v260
      %v525 = vunpack.c.l.b16 %v261
      %v526 = vunpack.c.l.b16 %v262
      %v527 = vunpack.c.l.b16 %v263
      %v528 = vunpack.c.l.b16 %v264
      %v529 = vunpack.c.l.b16 %v265
      %v530 = vunpack.c.l.b16 %v266
      %v531 = vunpack.c.l.b16 %v267
      %v532 = vpack.c.b16 %v516, %v516
      %v533 = vpack.c.b16 %v517, %v517
      %v534 = vpack.c.b16 %v518, %v518
      %v535 = vpack.c.b16 %v519, %v519
      %v536 = vpack.c.b16 %v520, %v520
      %v537 = vpack.c.b16 %v521, %v521
      %v538 = vpack.c.b16 %v522, %v522
      %v539 = vpack.c.b16 %v523, %v523
      %v540 = vpack.c.b16 %v524, %v524
      %v541 = vpack.c.b16 %v525, %v525
      %v542 = vpack.c.b16 %v526, %v526
      %v543 = vpack.c.b16 %v527, %v527
      %v544 = vpack.c.b16 %v528, %v528
      %v545 = vpack.c.b16 %v529, %v529
      %v546 = vpack.c.b16 %v530, %v530
      %v547 = vpack.c.b16 %v531, %v531
      %vm548 = vsmask.f32 7424
      %v550 = vshrl.u32 %v484, 16
      %v552 = vshll.u32 %v484, 16
      %v554 = vrot.slane %v552, 1
      %v555 = vor.u32 %v550, %v554
      %v557 = vshll.u32 %v532, 16
      %v559 = vrot.slane %v557, 1
      %v560 = vsel %vm548, %v555, %v559
      %v562 = vshrl.u32 %v485, 16
      %v564 = vshll.u32 %v485, 16
      %v566 = vrot.slane %v564, 1
      %v567 = vor.u32 %v562, %v566
      %v569 = vshll.u32 %v533, 16
      %v571 = vrot.slane %v569, 1
      %v572 = vsel %vm548, %v567, %v571
      %v574 = vshrl.u32 %v486, 16
      %v576 = vshll.u32 %v486, 16
      %v578 = vrot.slane %v576, 1
      %v579 = vor.u32 %v574, %v578
      %v581 = vshll.u32 %v534, 16
      %v583 = vrot.slane %v581, 1
      %v584 = vsel %vm548, %v579, %v583
      %v586 = vshrl.u32 %v487, 16
      %v588 = vshll.u32 %v487, 16
      %v590 = vrot.slane %v588, 1
      %v591 = vor.u32 %v586, %v590
      %v593 = vshll.u32 %v535, 16
      %v595 = vrot.slane %v593, 1
      %v596 = vsel %vm548, %v591, %v595
      %v598 = vshrl.u32 %v488, 16
      %v600 = vshll.u32 %v488, 16
      %v602 = vrot.slane %v600, 1
      %v603 = vor.u32 %v598, %v602
      %v605 = vshll.u32 %v536, 16
      %v607 = vrot.slane %v605, 1
      %v608 = vsel %vm548, %v603, %v607
      %v610 = vshrl.u32 %v489, 16
      %v612 = vshll.u32 %v489, 16
      %v614 = vrot.slane %v612, 1
      %v615 = vor.u32 %v610, %v614
      %v617 = vshll.u32 %v537, 16
      %v619 = vrot.slane %v617, 1
      %v620 = vsel %vm548, %v615, %v619
      %v622 = vshrl.u32 %v490, 16
      %v624 = vshll.u32 %v490, 16
      %v626 = vrot.slane %v624, 1
      %v627 = vor.u32 %v622, %v626
      %v629 = vshll.u32 %v538, 16
      %v631 = vrot.slane %v629, 1
      %v632 = vsel %vm548, %v627, %v631
      %v634 = vshrl.u32 %v491, 16
      %v636 = vshll.u32 %v491, 16
      %v638 = vrot.slane %v636, 1
      %v639 = vor.u32 %v634, %v638
      %v641 = vshll.u32 %v539, 16
      %v643 = vrot.slane %v641, 1
      %v644 = vsel %vm548, %v639, %v643
      %v646 = vshrl.u32 %v492, 16
      %v648 = vshll.u32 %v492, 16
      %v650 = vrot.slane %v648, 1
      %v651 = vor.u32 %v646, %v650
      %v653 = vshll.u32 %v540, 16
      %v655 = vrot.slane %v653, 1
      %v656 = vsel %vm548, %v651, %v655
      %v658 = vshrl.u32 %v493, 16
      %v660 = vshll.u32 %v493, 16
      %v662 = vrot.slane %v660, 1
      %v663 = vor.u32 %v658, %v662
      %v665 = vshll.u32 %v541, 16
      %v667 = vrot.slane %v665, 1
      %v668 = vsel %vm548, %v663, %v667
      %v670 = vshrl.u32 %v494, 16
      %v672 = vshll.u32 %v494, 16
      %v674 = vrot.slane %v672, 1
      %v675 = vor.u32 %v670, %v674
      %v677 = vshll.u32 %v542, 16
      %v679 = vrot.slane %v677, 1
      %v680 = vsel %vm548, %v675, %v679
      %v682 = vshrl.u32 %v495, 16
      %v684 = vshll.u32 %v495, 16
      %v686 = vrot.slane %v684, 1
      %v687 = vor.u32 %v682, %v686
      %v689 = vshll.u32 %v543, 16
      %v691 = vrot.slane %v689, 1
      %v692 = vsel %vm548, %v687, %v691
      %v694 = vshrl.u32 %v496, 16
      %v696 = vshll.u32 %v496, 16
      %v698 = vrot.slane %v696, 1
      %v699 = vor.u32 %v694, %v698
      %v701 = vshll.u32 %v544, 16
      %v703 = vrot.slane %v701, 1
      %v704 = vsel %vm548, %v699, %v703
      %v706 = vshrl.u32 %v497, 16
      %v708 = vshll.u32 %v497, 16
      %v710 = vrot.slane %v708, 1
      %v711 = vor.u32 %v706, %v710
      %v713 = vshll.u32 %v545, 16
      %v715 = vrot.slane %v713, 1
      %v716 = vsel %vm548, %v711, %v715
      %v718 = vshrl.u32 %v498, 16
      %v720 = vshll.u32 %v498, 16
      %v722 = vrot.slane %v720, 1
      %v723 = vor.u32 %v718, %v722
      %v725 = vshll.u32 %v546, 16
      %v727 = vrot.slane %v725, 1
      %v728 = vsel %vm548, %v723, %v727
      %v730 = vshrl.u32 %v499, 16
      %v732 = vshll.u32 %v499, 16
      %v734 = vrot.slane %v732, 1
      %v735 = vor.u32 %v730, %v734
      %v737 = vshll.u32 %v547, 16
      %v739 = vrot.slane %v737, 1
      %v740 = vsel %vm548, %v735, %v739
      %741 = vrot.lane.b32.xlu0 %v560, 4
      %v742 = vpop.permute.xlu0 %741
      %743 = vrot.lane.b32.xlu0 %v572, 4
      %v744 = vpop.permute.xlu0 %743
      %745 = vrot.lane.b32.xlu0 %v584, 4
      %v746 = vpop.permute.xlu0 %745
      %747 = vrot.lane.b32.xlu0 %v596, 4
      %v748 = vpop.permute.xlu0 %747
      %749 = vrot.lane.b32.xlu0 %v608, 4
      %v750 = vpop.permute.xlu0 %749
      %751 = vrot.lane.b32.xlu0 %v620, 4
      %v752 = vpop.permute.xlu0 %751
      %753 = vrot.lane.b32.xlu0 %v632, 4
      %v754 = vpop.permute.xlu0 %753
      %755 = vrot.lane.b32.xlu0 %v644, 4
      %v756 = vpop.permute.xlu0 %755
      %757 = vrot.lane.b32.xlu0 %v656, 4
      %v758 = vpop.permute.xlu0 %757
      %759 = vrot.lane.b32.xlu0 %v668, 4
      %v760 = vpop.permute.xlu0 %759
      %761 = vrot.lane.b32.xlu0 %v680, 4
      %v762 = vpop.permute.xlu0 %761
      %763 = vrot.lane.b32.xlu0 %v692, 4
      %v764 = vpop.permute.xlu0 %763
      %765 = vrot.lane.b32.xlu0 %v704, 4
      %v766 = vpop.permute.xlu0 %765
      %767 = vrot.lane.b32.xlu0 %v716, 4
      %v768 = vpop.permute.xlu0 %767
      %769 = vrot.lane.b32.xlu0 %v728, 4
      %v770 = vpop.permute.xlu0 %769
      %771 = vrot.lane.b32.xlu0 %v740, 4
      %v772 = vpop.permute.xlu0 %771
      %v789 = vunpack.c.l.b16 %v268
      %v790 = vunpack.c.l.b16 %v269
      %v791 = vunpack.c.l.b16 %v270
      %v792 = vunpack.c.l.b16 %v271
      %v793 = vunpack.c.l.b16 %v272
      %v794 = vunpack.c.l.b16 %v273
      %v795 = vunpack.c.l.b16 %v274
      %v796 = vunpack.c.l.b16 %v275
      %v797 = vunpack.c.l.b16 %v276
      %v798 = vunpack.c.l.b16 %v277
      %v799 = vunpack.c.l.b16 %v278
      %v800 = vunpack.c.l.b16 %v279
      %v801 = vunpack.c.l.b16 %v280
      %v802 = vunpack.c.l.b16 %v281
      %v803 = vunpack.c.l.b16 %v282
      %v804 = vunpack.c.l.b16 %v283
      %v805 = vpack.c.b16 %v453, %v789
      %v806 = vpack.c.b16 %v455, %v790
      %v807 = vpack.c.b16 %v457, %v791
      %v808 = vpack.c.b16 %v459, %v792
      %v809 = vpack.c.b16 %v461, %v793
      %v810 = vpack.c.b16 %v463, %v794
      %v811 = vpack.c.b16 %v465, %v795
      %v812 = vpack.c.b16 %v467, %v796
      %v813 = vpack.c.b16 %v469, %v797
      %v814 = vpack.c.b16 %v471, %v798
      %v815 = vpack.c.b16 %v473, %v799
      %v816 = vpack.c.b16 %v475, %v800
      %v817 = vpack.c.b16 %v477, %v801
      %v818 = vpack.c.b16 %v479, %v802
      %v819 = vpack.c.b16 %v481, %v803
      %v820 = vpack.c.b16 %v483, %v804
      %vm821 = vcmask 1046528
      %v822 = vrot.slane %v805, 1
      %v823 = vrot.slane %v532, 1
      %v824 = vsel %vm821, %v822, %v823
      %v825 = vrot.slane %v806, 1
      %v826 = vrot.slane %v533, 1
      %v827 = vsel %vm821, %v825, %v826
      %v828 = vrot.slane %v807, 1
      %v829 = vrot.slane %v534, 1
      %v830 = vsel %vm821, %v828, %v829
      %v831 = vrot.slane %v808, 1
      %v832 = vrot.slane %v535, 1
      %v833 = vsel %vm821, %v831, %v832
      %v834 = vrot.slane %v809, 1
      %v835 = vrot.slane %v536, 1
      %v836 = vsel %vm821, %v834, %v835
      %v837 = vrot.slane %v810, 1
      %v838 = vrot.slane %v537, 1
      %v839 = vsel %vm821, %v837, %v838
      %v840 = vrot.slane %v811, 1
      %v841 = vrot.slane %v538, 1
      %v842 = vsel %vm821, %v840, %v841
      %v843 = vrot.slane %v812, 1
      %v844 = vrot.slane %v539, 1
      %v845 = vsel %vm821, %v843, %v844
      %v846 = vrot.slane %v813, 1
      %v847 = vrot.slane %v540, 1
      %v848 = vsel %vm821, %v846, %v847
      %v849 = vrot.slane %v814, 1
      %v850 = vrot.slane %v541, 1
      %v851 = vsel %vm821, %v849, %v850
      %v852 = vrot.slane %v815, 1
      %v853 = vrot.slane %v542, 1
      %v854 = vsel %vm821, %v852, %v853
      %v855 = vrot.slane %v816, 1
      %v856 = vrot.slane %v543, 1
      %v857 = vsel %vm821, %v855, %v856
      %v858 = vrot.slane %v817, 1
      %v859 = vrot.slane %v544, 1
      %v860 = vsel %vm821, %v858, %v859
      %v861 = vrot.slane %v818, 1
      %v862 = vrot.slane %v545, 1
      %v863 = vsel %vm821, %v861, %v862
      %v864 = vrot.slane %v819, 1
      %v865 = vrot.slane %v546, 1
      %v866 = vsel %vm821, %v864, %v865
      %v867 = vrot.slane %v820, 1
      %v868 = vrot.slane %v547, 1
      %v869 = vsel %vm821, %v867, %v868
      %870 = vrot.lane.b32.xlu0 %v824, 8
      %v871 = vpop.permute.xlu0 %870
      %872 = vrot.lane.b32.xlu0 %v827, 8
      %v873 = vpop.permute.xlu0 %872
      %874 = vrot.lane.b32.xlu0 %v830, 8
      %v875 = vpop.permute.xlu0 %874
      %876 = vrot.lane.b32.xlu0 %v833, 8
      %v877 = vpop.permute.xlu0 %876
      %878 = vrot.lane.b32.xlu0 %v836, 8
      %v879 = vpop.permute.xlu0 %878
      %880 = vrot.lane.b32.xlu0 %v839, 8
      %v881 = vpop.permute.xlu0 %880
      %882 = vrot.lane.b32.xlu0 %v842, 8
      %v883 = vpop.permute.xlu0 %882
      %884 = vrot.lane.b32.xlu0 %v845, 8
      %v885 = vpop.permute.xlu0 %884
      %886 = vrot.lane.b32.xlu0 %v848, 8
      %v887 = vpop.permute.xlu0 %886
      %888 = vrot.lane.b32.xlu0 %v851, 8
      %v889 = vpop.permute.xlu0 %888
      %890 = vrot.lane.b32.xlu0 %v854, 8
      %v891 = vpop.permute.xlu0 %890
      %892 = vrot.lane.b32.xlu0 %v857, 8
      %v893 = vpop.permute.xlu0 %892
      %894 = vrot.lane.b32.xlu0 %v860, 8
      %v895 = vpop.permute.xlu0 %894
      %896 = vrot.lane.b32.xlu0 %v863, 8
      %v897 = vpop.permute.xlu0 %896
      %898 = vrot.lane.b32.xlu0 %v866, 8
      %v899 = vpop.permute.xlu0 %898
      %900 = vrot.lane.b32.xlu0 %v869, 8
      %v901 = vpop.permute.xlu0 %900
      %v934 = vunpack.c.l.b16 %v288
      %v935 = vunpack.c.l.b16 %v289
      %v936 = vunpack.c.l.b16 %v290
      %v937 = vunpack.c.l.b16 %v291
      %v938 = vunpack.c.l.b16 %v292
      %v939 = vunpack.c.l.b16 %v293
      %v940 = vunpack.c.l.b16 %v294
      %v941 = vunpack.c.l.b16 %v295
      %v942 = vunpack.c.l.b16 %v296
      %v943 = vunpack.c.l.b16 %v297
      %v944 = vunpack.c.l.b16 %v298
      %v945 = vunpack.c.l.b16 %v299
      %v946 = vunpack.c.l.b16 %v300
      %v947 = vunpack.c.l.b16 %v301
      %v948 = vunpack.c.l.b16 %v302
      %v949 = vunpack.c.l.b16 %v303
      %v950 = vunpack.c.l.b16 %v304
      %v951 = vunpack.c.l.b16 %v305
      %v952 = vunpack.c.l.b16 %v306
      %v953 = vunpack.c.l.b16 %v307
      %v954 = vunpack.c.l.b16 %v308
      %v955 = vunpack.c.l.b16 %v309
      %v956 = vunpack.c.l.b16 %v310
      %v957 = vunpack.c.l.b16 %v311
      %v958 = vunpack.c.l.b16 %v312
      %v959 = vunpack.c.l.b16 %v313
      %v960 = vunpack.c.l.b16 %v314
      %v961 = vunpack.c.l.b16 %v315
      %v962 = vunpack.c.l.b16 %v316
      %v963 = vunpack.c.l.b16 %v317
      %v964 = vunpack.c.l.b16 %v318
      %v965 = vunpack.c.l.b16 %v319
      %v966 = vpack.c.b16 %v935, %v934
      %v967 = vpack.c.b16 %v937, %v936
      %v968 = vpack.c.b16 %v939, %v938
      %v969 = vpack.c.b16 %v941, %v940
      %v970 = vpack.c.b16 %v943, %v942
      %v971 = vpack.c.b16 %v945, %v944
      %v972 = vpack.c.b16 %v947, %v946
      %v973 = vpack.c.b16 %v949, %v948
      %v974 = vpack.c.b16 %v951, %v950
      %v975 = vpack.c.b16 %v953, %v952
      %v976 = vpack.c.b16 %v955, %v954
      %v977 = vpack.c.b16 %v957, %v956
      %v978 = vpack.c.b16 %v959, %v958
      %v979 = vpack.c.b16 %v961, %v960
      %v980 = vpack.c.b16 %v963, %v962
      %v981 = vpack.c.b16 %v965, %v964
      %982 = vrot.lane.b32.xlu0 %v966, 12
      %v983 = vpop.permute.xlu0 %982
      %984 = vrot.lane.b32.xlu0 %v967, 12
      %v985 = vpop.permute.xlu0 %984
      %986 = vrot.lane.b32.xlu0 %v968, 12
      %v987 = vpop.permute.xlu0 %986
      %988 = vrot.lane.b32.xlu0 %v969, 12
      %v989 = vpop.permute.xlu0 %988
      %990 = vrot.lane.b32.xlu0 %v970, 12
      %v991 = vpop.permute.xlu0 %990
      %992 = vrot.lane.b32.xlu0 %v971, 12
      %v993 = vpop.permute.xlu0 %992
      %994 = vrot.lane.b32.xlu0 %v972, 12
      %v995 = vpop.permute.xlu0 %994
      %996 = vrot.lane.b32.xlu0 %v973, 12
      %v997 = vpop.permute.xlu0 %996
      %998 = vrot.lane.b32.xlu0 %v974, 12
      %v999 = vpop.permute.xlu0 %998
      %1000 = vrot.lane.b32.xlu0 %v975, 12
      %v1001 = vpop.permute.xlu0 %1000
      %1002 = vrot.lane.b32.xlu0 %v976, 12
      %v1003 = vpop.permute.xlu0 %1002
      %1004 = vrot.lane.b32.xlu0 %v977, 12
      %v1005 = vpop.permute.xlu0 %1004
      %1006 = vrot.lane.b32.xlu0 %v978, 12
      %v1007 = vpop.permute.xlu0 %1006
      %1008 = vrot.lane.b32.xlu0 %v979, 12
      %v1009 = vpop.permute.xlu0 %1008
      %1010 = vrot.lane.b32.xlu0 %v980, 12
      %v1011 = vpop.permute.xlu0 %1010
      %1012 = vrot.lane.b32.xlu0 %v981, 12
      %v1013 = vpop.permute.xlu0 %1012
      %v1030 = vunpack.c.l.b16 %v320
      %v1031 = vunpack.c.l.b16 %v321
      %v1032 = vunpack.c.l.b16 %v322
      %v1033 = vunpack.c.l.b16 %v323
      %v1034 = vunpack.c.l.b16 %v324
      %v1035 = vunpack.c.l.b16 %v325
      %v1036 = vunpack.c.l.b16 %v326
      %v1037 = vunpack.c.l.b16 %v327
      %v1038 = vunpack.c.l.b16 %v328
      %v1039 = vunpack.c.l.b16 %v329
      %v1040 = vunpack.c.l.b16 %v330
      %v1041 = vunpack.c.l.b16 %v331
      %v1042 = vunpack.c.l.b16 %v332
      %v1043 = vunpack.c.l.b16 %v333
      %v1044 = vunpack.c.l.b16 %v334
      %v1045 = vunpack.c.l.b16 %v335
      %v1046 = vpack.c.b16 %v1030, %v1030
      %v1047 = vpack.c.b16 %v1031, %v1031
      %v1048 = vpack.c.b16 %v1032, %v1032
      %v1049 = vpack.c.b16 %v1033, %v1033
      %v1050 = vpack.c.b16 %v1034, %v1034
      %v1051 = vpack.c.b16 %v1035, %v1035
      %v1052 = vpack.c.b16 %v1036, %v1036
      %v1053 = vpack.c.b16 %v1037, %v1037
      %v1054 = vpack.c.b16 %v1038, %v1038
      %v1055 = vpack.c.b16 %v1039, %v1039
      %v1056 = vpack.c.b16 %v1040, %v1040
      %v1057 = vpack.c.b16 %v1041, %v1041
      %v1058 = vpack.c.b16 %v1042, %v1042
      %v1059 = vpack.c.b16 %v1043, %v1043
      %v1060 = vpack.c.b16 %v1044, %v1044
      %v1061 = vpack.c.b16 %v1045, %v1045
      %v1063 = vshrl.u32 %v966, 16
      %v1065 = vshll.u32 %v966, 16
      %v1067 = vrot.slane %v1065, 1
      %v1068 = vor.u32 %v1063, %v1067
      %v1070 = vshll.u32 %v1046, 16
      %v1072 = vrot.slane %v1070, 1
      %v1073 = vsel %vm548, %v1068, %v1072
      %v1075 = vshrl.u32 %v967, 16
      %v1077 = vshll.u32 %v967, 16
      %v1079 = vrot.slane %v1077, 1
      %v1080 = vor.u32 %v1075, %v1079
      %v1082 = vshll.u32 %v1047, 16
      %v1084 = vrot.slane %v1082, 1
      %v1085 = vsel %vm548, %v1080, %v1084
      %v1087 = vshrl.u32 %v968, 16
      %v1089 = vshll.u32 %v968, 16
      %v1091 = vrot.slane %v1089, 1
      %v1092 = vor.u32 %v1087, %v1091
      %v1094 = vshll.u32 %v1048, 16
      %v1096 = vrot.slane %v1094, 1
      %v1097 = vsel %vm548, %v1092, %v1096
      %v1099 = vshrl.u32 %v969, 16
      %v1101 = vshll.u32 %v969, 16
      %v1103 = vrot.slane %v1101, 1
      %v1104 = vor.u32 %v1099, %v1103
      %v1106 = vshll.u32 %v1049, 16
      %v1108 = vrot.slane %v1106, 1
      %v1109 = vsel %vm548, %v1104, %v1108
      %v1111 = vshrl.u32 %v970, 16
      %v1113 = vshll.u32 %v970, 16
      %v1115 = vrot.slane %v1113, 1
      %v1116 = vor.u32 %v1111, %v1115
      %v1118 = vshll.u32 %v1050, 16
      %v1120 = vrot.slane %v1118, 1
      %v1121 = vsel %vm548, %v1116, %v1120
      %v1123 = vshrl.u32 %v971, 16
      %v1125 = vshll.u32 %v971, 16
      %v1127 = vrot.slane %v1125, 1
      %v1128 = vor.u32 %v1123, %v1127
      %v1130 = vshll.u32 %v1051, 16
      %v1132 = vrot.slane %v1130, 1
      %v1133 = vsel %vm548, %v1128, %v1132
      %v1135 = vshrl.u32 %v972, 16
      %v1137 = vshll.u32 %v972, 16
      %v1139 = vrot.slane %v1137, 1
      %v1140 = vor.u32 %v1135, %v1139
      %v1142 = vshll.u32 %v1052, 16
      %v1144 = vrot.slane %v1142, 1
      %v1145 = vsel %vm548, %v1140, %v1144
      %v1147 = vshrl.u32 %v973, 16
      %v1149 = vshll.u32 %v973, 16
      %v1151 = vrot.slane %v1149, 1
      %v1152 = vor.u32 %v1147, %v1151
      %v1154 = vshll.u32 %v1053, 16
      %v1156 = vrot.slane %v1154, 1
      %v1157 = vsel %vm548, %v1152, %v1156
      %v1159 = vshrl.u32 %v974, 16
      %v1161 = vshll.u32 %v974, 16
      %v1163 = vrot.slane %v1161, 1
      %v1164 = vor.u32 %v1159, %v1163
      %v1166 = vshll.u32 %v1054, 16
      %v1168 = vrot.slane %v1166, 1
      %v1169 = vsel %vm548, %v1164, %v1168
      %v1171 = vshrl.u32 %v975, 16
      %v1173 = vshll.u32 %v975, 16
      %v1175 = vrot.slane %v1173, 1
      %v1176 = vor.u32 %v1171, %v1175
      %v1178 = vshll.u32 %v1055, 16
      %v1180 = vrot.slane %v1178, 1
      %v1181 = vsel %vm548, %v1176, %v1180
      %v1183 = vshrl.u32 %v976, 16
      %v1185 = vshll.u32 %v976, 16
      %v1187 = vrot.slane %v1185, 1
      %v1188 = vor.u32 %v1183, %v1187
      %v1190 = vshll.u32 %v1056, 16
      %v1192 = vrot.slane %v1190, 1
      %v1193 = vsel %vm548, %v1188, %v1192
      %v1195 = vshrl.u32 %v977, 16
      %v1197 = vshll.u32 %v977, 16
      %v1199 = vrot.slane %v1197, 1
      %v1200 = vor.u32 %v1195, %v1199
      %v1202 = vshll.u32 %v1057, 16
      %v1204 = vrot.slane %v1202, 1
      %v1205 = vsel %vm548, %v1200, %v1204
      %v1207 = vshrl.u32 %v978, 16
      %v1209 = vshll.u32 %v978, 16
      %v1211 = vrot.slane %v1209, 1
      %v1212 = vor.u32 %v1207, %v1211
      %v1214 = vshll.u32 %v1058, 16
      %v1216 = vrot.slane %v1214, 1
      %v1217 = vsel %vm548, %v1212, %v1216
      %v1219 = vshrl.u32 %v979, 16
      %v1221 = vshll.u32 %v979, 16
      %v1223 = vrot.slane %v1221, 1
      %v1224 = vor.u32 %v1219, %v1223
      %v1226 = vshll.u32 %v1059, 16
      %v1228 = vrot.slane %v1226, 1
      %v1229 = vsel %vm548, %v1224, %v1228
      %v1231 = vshrl.u32 %v980, 16
      %v1233 = vshll.u32 %v980, 16
      %v1235 = vrot.slane %v1233, 1
      %v1236 = vor.u32 %v1231, %v1235
      %v1238 = vshll.u32 %v1060, 16
      %v1240 = vrot.slane %v1238, 1
      %v1241 = vsel %vm548, %v1236, %v1240
      %v1243 = vshrl.u32 %v981, 16
      %v1245 = vshll.u32 %v981, 16
      %v1247 = vrot.slane %v1245, 1
      %v1248 = vor.u32 %v1243, %v1247
      %v1250 = vshll.u32 %v1061, 16
      %v1252 = vrot.slane %v1250, 1
      %v1253 = vsel %vm548, %v1248, %v1252
      %1254 = vrot.lane.b32.xlu0 %v1073, 16
      %v1255 = vpop.permute.xlu0 %1254
      %1256 = vrot.lane.b32.xlu0 %v1085, 16
      %v1257 = vpop.permute.xlu0 %1256
      %1258 = vrot.lane.b32.xlu0 %v1097, 16
      %v1259 = vpop.permute.xlu0 %1258
      %1260 = vrot.lane.b32.xlu0 %v1109, 16
      %v1261 = vpop.permute.xlu0 %1260
      %1262 = vrot.lane.b32.xlu0 %v1121, 16
      %v1263 = vpop.permute.xlu0 %1262
      %1264 = vrot.lane.b32.xlu0 %v1133, 16
      %v1265 = vpop.permute.xlu0 %1264
      %1266 = vrot.lane.b32.xlu0 %v1145, 16
      %v1267 = vpop.permute.xlu0 %1266
      %1268 = vrot.lane.b32.xlu0 %v1157, 16
      %v1269 = vpop.permute.xlu0 %1268
      %1270 = vrot.lane.b32.xlu0 %v1169, 16
      %v1271 = vpop.permute.xlu0 %1270
      %1272 = vrot.lane.b32.xlu0 %v1181, 16
      %v1273 = vpop.permute.xlu0 %1272
      %1274 = vrot.lane.b32.xlu0 %v1193, 16
      %v1275 = vpop.permute.xlu0 %1274
      %1276 = vrot.lane.b32.xlu0 %v1205, 16
      %v1277 = vpop.permute.xlu0 %1276
      %1278 = vrot.lane.b32.xlu0 %v1217, 16
      %v1279 = vpop.permute.xlu0 %1278
      %1280 = vrot.lane.b32.xlu0 %v1229, 16
      %v1281 = vpop.permute.xlu0 %1280
      %1282 = vrot.lane.b32.xlu0 %v1241, 16
      %v1283 = vpop.permute.xlu0 %1282
      %1284 = vrot.lane.b32.xlu0 %v1253, 16
      %v1285 = vpop.permute.xlu0 %1284
      %v1302 = vunpack.c.l.b16 %v336
      %v1303 = vunpack.c.l.b16 %v337
      %v1304 = vunpack.c.l.b16 %v338
      %v1305 = vunpack.c.l.b16 %v339
      %v1306 = vunpack.c.l.b16 %v340
      %v1307 = vunpack.c.l.b16 %v341
      %v1308 = vunpack.c.l.b16 %v342
      %v1309 = vunpack.c.l.b16 %v343
      %v1310 = vunpack.c.l.b16 %v344
      %v1311 = vunpack.c.l.b16 %v345
      %v1312 = vunpack.c.l.b16 %v346
      %v1313 = vunpack.c.l.b16 %v347
      %v1314 = vunpack.c.l.b16 %v348
      %v1315 = vunpack.c.l.b16 %v349
      %v1316 = vunpack.c.l.b16 %v350
      %v1317 = vunpack.c.l.b16 %v351
      %v1318 = vpack.c.b16 %v935, %v1302
      %v1319 = vpack.c.b16 %v937, %v1303
      %v1320 = vpack.c.b16 %v939, %v1304
      %v1321 = vpack.c.b16 %v941, %v1305
      %v1322 = vpack.c.b16 %v943, %v1306
      %v1323 = vpack.c.b16 %v945, %v1307
      %v1324 = vpack.c.b16 %v947, %v1308
      %v1325 = vpack.c.b16 %v949, %v1309
      %v1326 = vpack.c.b16 %v951, %v1310
      %v1327 = vpack.c.b16 %v953, %v1311
      %v1328 = vpack.c.b16 %v955, %v1312
      %v1329 = vpack.c.b16 %v957, %v1313
      %v1330 = vpack.c.b16 %v959, %v1314
      %v1331 = vpack.c.b16 %v961, %v1315
      %v1332 = vpack.c.b16 %v963, %v1316
      %v1333 = vpack.c.b16 %v965, %v1317
      %v1334 = vrot.slane %v1318, 1
      %v1335 = vrot.slane %v1046, 1
      %v1336 = vsel %vm821, %v1334, %v1335
      %v1337 = vrot.slane %v1319, 1
      %v1338 = vrot.slane %v1047, 1
      %v1339 = vsel %vm821, %v1337, %v1338
      %v1340 = vrot.slane %v1320, 1
      %v1341 = vrot.slane %v1048, 1
      %v1342 = vsel %vm821, %v1340, %v1341
      %v1343 = vrot.slane %v1321, 1
      %v1344 = vrot.slane %v1049, 1
      %v1345 = vsel %vm821, %v1343, %v1344
      %v1346 = vrot.slane %v1322, 1
      %v1347 = vrot.slane %v1050, 1
      %v1348 = vsel %vm821, %v1346, %v1347
      %v1349 = vrot.slane %v1323, 1
      %v1350 = vrot.slane %v1051, 1
      %v1351 = vsel %vm821, %v1349, %v1350
      %v1352 = vrot.slane %v1324, 1
      %v1353 = vrot.slane %v1052, 1
      %v1354 = vsel %vm821, %v1352, %v1353
      %v1355 = vrot.slane %v1325, 1
      %v1356 = vrot.slane %v1053, 1
      %v1357 = vsel %vm821, %v1355, %v1356
      %v1358 = vrot.slane %v1326, 1
      %v1359 = vrot.slane %v1054, 1
      %v1360 = vsel %vm821, %v1358, %v1359
      %v1361 = vrot.slane %v1327, 1
      %v1362 = vrot.slane %v1055, 1
      %v1363 = vsel %vm821, %v1361, %v1362
      %v1364 = vrot.slane %v1328, 1
      %v1365 = vrot.slane %v1056, 1
      %v1366 = vsel %vm821, %v1364, %v1365
      %v1367 = vrot.slane %v1329, 1
      %v1368 = vrot.slane %v1057, 1
      %v1369 = vsel %vm821, %v1367, %v1368
      %v1370 = vrot.slane %v1330, 1
      %v1371 = vrot.slane %v1058, 1
      %v1372 = vsel %vm821, %v1370, %v1371
      %v1373 = vrot.slane %v1331, 1
      %v1374 = vrot.slane %v1059, 1
      %v1375 = vsel %vm821, %v1373, %v1374
      %v1376 = vrot.slane %v1332, 1
      %v1377 = vrot.slane %v1060, 1
      %v1378 = vsel %vm821, %v1376, %v1377
      %v1379 = vrot.slane %v1333, 1
      %v1380 = vrot.slane %v1061, 1
      %v1381 = vsel %vm821, %v1379, %v1380
      %1382 = vrot.lane.b32.xlu0 %v1336, 20
      %v1383 = vpop.permute.xlu0 %1382
      %1384 = vrot.lane.b32.xlu0 %v1339, 20
      %v1385 = vpop.permute.xlu0 %1384
      %1386 = vrot.lane.b32.xlu0 %v1342, 20
      %v1387 = vpop.permute.xlu0 %1386
      %1388 = vrot.lane.b32.xlu0 %v1345, 20
      %v1389 = vpop.permute.xlu0 %1388
      %1390 = vrot.lane.b32.xlu0 %v1348, 20
      %v1391 = vpop.permute.xlu0 %1390
      %1392 = vrot.lane.b32.xlu0 %v1351, 20
      %v1393 = vpop.permute.xlu0 %1392
      %1394 = vrot.lane.b32.xlu0 %v1354, 20
      %v1395 = vpop.permute.xlu0 %1394
      %1396 = vrot.lane.b32.xlu0 %v1357, 20
      %v1397 = vpop.permute.xlu0 %1396
      %1398 = vrot.lane.b32.xlu0 %v1360, 20
      %v1399 = vpop.permute.xlu0 %1398
      %1400 = vrot.lane.b32.xlu0 %v1363, 20
      %v1401 = vpop.permute.xlu0 %1400
      %1402 = vrot.lane.b32.xlu0 %v1366, 20
      %v1403 = vpop.permute.xlu0 %1402
      %1404 = vrot.lane.b32.xlu0 %v1369, 20
      %v1405 = vpop.permute.xlu0 %1404
      %1406 = vrot.lane.b32.xlu0 %v1372, 20
      %v1407 = vpop.permute.xlu0 %1406
      %1408 = vrot.lane.b32.xlu0 %v1375, 20
      %v1409 = vpop.permute.xlu0 %1408
      %1410 = vrot.lane.b32.xlu0 %v1378, 20
      %v1411 = vpop.permute.xlu0 %1410
      %1412 = vrot.lane.b32.xlu0 %v1381, 20
      %v1413 = vpop.permute.xlu0 %1412
      %v1446 = vunpack.c.l.b16 %v356
      %v1447 = vunpack.c.l.b16 %v357
      %v1448 = vunpack.c.l.b16 %v358
      %v1449 = vunpack.c.l.b16 %v359
      %v1450 = vunpack.c.l.b16 %v360
      %v1451 = vunpack.c.l.b16 %v361
      %v1452 = vunpack.c.l.b16 %v362
      %v1453 = vunpack.c.l.b16 %v363
      %v1454 = vunpack.c.l.b16 %v364
      %v1455 = vunpack.c.l.b16 %v365
      %v1456 = vunpack.c.l.b16 %v366
      %v1457 = vunpack.c.l.b16 %v367
      %v1458 = vunpack.c.l.b16 %v368
      %v1459 = vunpack.c.l.b16 %v369
      %v1460 = vunpack.c.l.b16 %v370
      %v1461 = vunpack.c.l.b16 %v371
      %v1462 = vunpack.c.l.b16 %v372
      %v1463 = vunpack.c.l.b16 %v373
      %v1464 = vunpack.c.l.b16 %v374
      %v1465 = vunpack.c.l.b16 %v375
      %v1466 = vunpack.c.l.b16 %v376
      %v1467 = vunpack.c.l.b16 %v377
      %v1468 = vunpack.c.l.b16 %v378
      %v1469 = vunpack.c.l.b16 %v379
      %v1470 = vunpack.c.l.b16 %v380
      %v1471 = vunpack.c.l.b16 %v381
      %v1472 = vunpack.c.l.b16 %v382
      %v1473 = vunpack.c.l.b16 %v383
      %v1474 = vunpack.c.l.b16 %v384
      %v1475 = vunpack.c.l.b16 %v385
      %v1476 = vunpack.c.l.b16 %v386
      %v1477 = vunpack.c.l.b16 %v387
      %v1478 = vpack.c.b16 %v1447, %v1446
      %v1479 = vpack.c.b16 %v1449, %v1448
      %v1480 = vpack.c.b16 %v1451, %v1450
      %v1481 = vpack.c.b16 %v1453, %v1452
      %v1482 = vpack.c.b16 %v1455, %v1454
      %v1483 = vpack.c.b16 %v1457, %v1456
      %v1484 = vpack.c.b16 %v1459, %v1458
      %v1485 = vpack.c.b16 %v1461, %v1460
      %v1486 = vpack.c.b16 %v1463, %v1462
      %v1487 = vpack.c.b16 %v1465, %v1464
      %v1488 = vpack.c.b16 %v1467, %v1466
      %v1489 = vpack.c.b16 %v1469, %v1468
      %v1490 = vpack.c.b16 %v1471, %v1470
      %v1491 = vpack.c.b16 %v1473, %v1472
      %v1492 = vpack.c.b16 %v1475, %v1474
      %v1493 = vpack.c.b16 %v1477, %v1476
      %1494 = vrot.lane.b32.xlu0 %v1478, 24
      %v1495 = vpop.permute.xlu0 %1494
      %1496 = vrot.lane.b32.xlu0 %v1479, 24
      %v1497 = vpop.permute.xlu0 %1496
      %1498 = vrot.lane.b32.xlu0 %v1480, 24
      %v1499 = vpop.permute.xlu0 %1498
      %1500 = vrot.lane.b32.xlu0 %v1481, 24
      %v1501 = vpop.permute.xlu0 %1500
      %1502 = vrot.lane.b32.xlu0 %v1482, 24
      %v1503 = vpop.permute.xlu0 %1502
      %1504 = vrot.lane.b32.xlu0 %v1483, 24
      %v1505 = vpop.permute.xlu0 %1504
      %1506 = vrot.lane.b32.xlu0 %v1484, 24
      %v1507 = vpop.permute.xlu0 %1506
      %1508 = vrot.lane.b32.xlu0 %v1485, 24
      %v1509 = vpop.permute.xlu0 %1508
      %1510 = vrot.lane.b32.xlu0 %v1486, 24
      %v1511 = vpop.permute.xlu0 %1510
      %1512 = vrot.lane.b32.xlu0 %v1487, 24
      %v1513 = vpop.permute.xlu0 %1512
      %1514 = vrot.lane.b32.xlu0 %v1488, 24
      %v1515 = vpop.permute.xlu0 %1514
      %1516 = vrot.lane.b32.xlu0 %v1489, 24
      %v1517 = vpop.permute.xlu0 %1516
      %1518 = vrot.lane.b32.xlu0 %v1490, 24
      %v1519 = vpop.permute.xlu0 %1518
      %1520 = vrot.lane.b32.xlu0 %v1491, 24
      %v1521 = vpop.permute.xlu0 %1520
      %1522 = vrot.lane.b32.xlu0 %v1492, 24
      %v1523 = vpop.permute.xlu0 %1522
      %1524 = vrot.lane.b32.xlu0 %v1493, 24
      %v1525 = vpop.permute.xlu0 %1524
      %v1542 = vunpack.c.l.b16 %v388
      %v1543 = vunpack.c.l.b16 %v389
      %v1544 = vunpack.c.l.b16 %v390
      %v1545 = vunpack.c.l.b16 %v391
      %v1546 = vunpack.c.l.b16 %v392
      %v1547 = vunpack.c.l.b16 %v393
      %v1548 = vunpack.c.l.b16 %v394
      %v1549 = vunpack.c.l.b16 %v395
      %v1550 = vunpack.c.l.b16 %v396
      %v1551 = vunpack.c.l.b16 %v397
      %v1552 = vunpack.c.l.b16 %v398
      %v1553 = vunpack.c.l.b16 %v399
      %v1554 = vunpack.c.l.b16 %v400
      %v1555 = vunpack.c.l.b16 %v401
      %v1556 = vunpack.c.l.b16 %v402
      %v1557 = vunpack.c.l.b16 %v403
      %v1558 = vpack.c.b16 %v1542, %v1542
      %v1559 = vpack.c.b16 %v1543, %v1543
      %v1560 = vpack.c.b16 %v1544, %v1544
      %v1561 = vpack.c.b16 %v1545, %v1545
      %v1562 = vpack.c.b16 %v1546, %v1546
      %v1563 = vpack.c.b16 %v1547, %v1547
      %v1564 = vpack.c.b16 %v1548, %v1548
      %v1565 = vpack.c.b16 %v1549, %v1549
      %v1566 = vpack.c.b16 %v1550, %v1550
      %v1567 = vpack.c.b16 %v1551, %v1551
      %v1568 = vpack.c.b16 %v1552, %v1552
      %v1569 = vpack.c.b16 %v1553, %v1553
      %v1570 = vpack.c.b16 %v1554, %v1554
      %v1571 = vpack.c.b16 %v1555, %v1555
      %v1572 = vpack.c.b16 %v1556, %v1556
      %v1573 = vpack.c.b16 %v1557, %v1557
      %v1575 = vshrl.u32 %v1478, 16
      %v1577 = vshll.u32 %v1478, 16
      %v1579 = vrot.slane %v1577, 1
      %v1580 = vor.u32 %v1575, %v1579
      %v1582 = vshll.u32 %v1558, 16
      %v1584 = vrot.slane %v1582, 1
      %v1585 = vsel %vm548, %v1580, %v1584
      %v1587 = vshrl.u32 %v1479, 16
      %v1589 = vshll.u32 %v1479, 16
      %v1591 = vrot.slane %v1589, 1
      %v1592 = vor.u32 %v1587, %v1591
      %v1594 = vshll.u32 %v1559, 16
      %v1596 = vrot.slane %v1594, 1
      %v1597 = vsel %vm548, %v1592, %v1596
      %v1599 = vshrl.u32 %v1480, 16
      %v1601 = vshll.u32 %v1480, 16
      %v1603 = vrot.slane %v1601, 1
      %v1604 = vor.u32 %v1599, %v1603
      %v1606 = vshll.u32 %v1560, 16
      %v1608 = vrot.slane %v1606, 1
      %v1609 = vsel %vm548, %v1604, %v1608
      %v1611 = vshrl.u32 %v1481, 16
      %v1613 = vshll.u32 %v1481, 16
      %v1615 = vrot.slane %v1613, 1
      %v1616 = vor.u32 %v1611, %v1615
      %v1618 = vshll.u32 %v1561, 16
      %v1620 = vrot.slane %v1618, 1
      %v1621 = vsel %vm548, %v1616, %v1620
      %v1623 = vshrl.u32 %v1482, 16
      %v1625 = vshll.u32 %v1482, 16
      %v1627 = vrot.slane %v1625, 1
      %v1628 = vor.u32 %v1623, %v1627
      %v1630 = vshll.u32 %v1562, 16
      %v1632 = vrot.slane %v1630, 1
      %v1633 = vsel %vm548, %v1628, %v1632
      %v1635 = vshrl.u32 %v1483, 16
      %v1637 = vshll.u32 %v1483, 16
      %v1639 = vrot.slane %v1637, 1
      %v1640 = vor.u32 %v1635, %v1639
      %v1642 = vshll.u32 %v1563, 16
      %v1644 = vrot.slane %v1642, 1
      %v1645 = vsel %vm548, %v1640, %v1644
      %v1647 = vshrl.u32 %v1484, 16
      %v1649 = vshll.u32 %v1484, 16
      %v1651 = vrot.slane %v1649, 1
      %v1652 = vor.u32 %v1647, %v1651
      %v1654 = vshll.u32 %v1564, 16
      %v1656 = vrot.slane %v1654, 1
      %v1657 = vsel %vm548, %v1652, %v1656
      %v1659 = vshrl.u32 %v1485, 16
      %v1661 = vshll.u32 %v1485, 16
      %v1663 = vrot.slane %v1661, 1
      %v1664 = vor.u32 %v1659, %v1663
      %v1666 = vshll.u32 %v1565, 16
      %v1668 = vrot.slane %v1666, 1
      %v1669 = vsel %vm548, %v1664, %v1668
      %v1671 = vshrl.u32 %v1486, 16
      %v1673 = vshll.u32 %v1486, 16
      %v1675 = vrot.slane %v1673, 1
      %v1676 = vor.u32 %v1671, %v1675
      %v1678 = vshll.u32 %v1566, 16
      %v1680 = vrot.slane %v1678, 1
      %v1681 = vsel %vm548, %v1676, %v1680
      %v1683 = vshrl.u32 %v1487, 16
      %v1685 = vshll.u32 %v1487, 16
      %v1687 = vrot.slane %v1685, 1
      %v1688 = vor.u32 %v1683, %v1687
      %v1690 = vshll.u32 %v1567, 16
      %v1692 = vrot.slane %v1690, 1
      %v1693 = vsel %vm548, %v1688, %v1692
      %v1695 = vshrl.u32 %v1488, 16
      %v1697 = vshll.u32 %v1488, 16
      %v1699 = vrot.slane %v1697, 1
      %v1700 = vor.u32 %v1695, %v1699
      %v1702 = vshll.u32 %v1568, 16
      %v1704 = vrot.slane %v1702, 1
      %v1705 = vsel %vm548, %v1700, %v1704
      %v1707 = vshrl.u32 %v1489, 16
      %v1709 = vshll.u32 %v1489, 16
      %v1711 = vrot.slane %v1709, 1
      %v1712 = vor.u32 %v1707, %v1711
      %v1714 = vshll.u32 %v1569, 16
      %v1716 = vrot.slane %v1714, 1
      %v1717 = vsel %vm548, %v1712, %v1716
      %v1719 = vshrl.u32 %v1490, 16
      %v1721 = vshll.u32 %v1490, 16
      %v1723 = vrot.slane %v1721, 1
      %v1724 = vor.u32 %v1719, %v1723
      %v1726 = vshll.u32 %v1570, 16
      %v1728 = vrot.slane %v1726, 1
      %v1729 = vsel %vm548, %v1724, %v1728
      %v1731 = vshrl.u32 %v1491, 16
      %v1733 = vshll.u32 %v1491, 16
      %v1735 = vrot.slane %v1733, 1
      %v1736 = vor.u32 %v1731, %v1735
      %v1738 = vshll.u32 %v1571, 16
      %v1740 = vrot.slane %v1738, 1
      %v1741 = vsel %vm548, %v1736, %v1740
      %v1743 = vshrl.u32 %v1492, 16
      %v1745 = vshll.u32 %v1492, 16
      %v1747 = vrot.slane %v1745, 1
      %v1748 = vor.u32 %v1743, %v1747
      %v1750 = vshll.u32 %v1572, 16
      %v1752 = vrot.slane %v1750, 1
      %v1753 = vsel %vm548, %v1748, %v1752
      %v1755 = vshrl.u32 %v1493, 16
      %v1757 = vshll.u32 %v1493, 16
      %v1759 = vrot.slane %v1757, 1
      %v1760 = vor.u32 %v1755, %v1759
      %v1762 = vshll.u32 %v1573, 16
      %v1764 = vrot.slane %v1762, 1
      %v1765 = vsel %vm548, %v1760, %v1764
      %1766 = vrot.lane.b32.xlu0 %v1585, 28
      %v1767 = vpop.permute.xlu0 %1766
      %1768 = vrot.lane.b32.xlu0 %v1597, 28
      %v1769 = vpop.permute.xlu0 %1768
      %1770 = vrot.lane.b32.xlu0 %v1609, 28
      %v1771 = vpop.permute.xlu0 %1770
      %1772 = vrot.lane.b32.xlu0 %v1621, 28
      %v1773 = vpop.permute.xlu0 %1772
      %1774 = vrot.lane.b32.xlu0 %v1633, 28
      %v1775 = vpop.permute.xlu0 %1774
      %1776 = vrot.lane.b32.xlu0 %v1645, 28
      %v1777 = vpop.permute.xlu0 %1776
      %1778 = vrot.lane.b32.xlu0 %v1657, 28
      %v1779 = vpop.permute.xlu0 %1778
      %1780 = vrot.lane.b32.xlu0 %v1669, 28
      %v1781 = vpop.permute.xlu0 %1780
      %1782 = vrot.lane.b32.xlu0 %v1681, 28
      %v1783 = vpop.permute.xlu0 %1782
      %1784 = vrot.lane.b32.xlu0 %v1693, 28
      %v1785 = vpop.permute.xlu0 %1784
      %1786 = vrot.lane.b32.xlu0 %v1705, 28
      %v1787 = vpop.permute.xlu0 %1786
      %1788 = vrot.lane.b32.xlu0 %v1717, 28
      %v1789 = vpop.permute.xlu0 %1788
      %1790 = vrot.lane.b32.xlu0 %v1729, 28
      %v1791 = vpop.permute.xlu0 %1790
      %1792 = vrot.lane.b32.xlu0 %v1741, 28
      %v1793 = vpop.permute.xlu0 %1792
      %1794 = vrot.lane.b32.xlu0 %v1753, 28
      %v1795 = vpop.permute.xlu0 %1794
      %1796 = vrot.lane.b32.xlu0 %v1765, 28
      %v1797 = vpop.permute.xlu0 %1796
      %v1814 = vunpack.c.l.b16 %v404
      %v1815 = vunpack.c.l.b16 %v405
      %v1816 = vunpack.c.l.b16 %v406
      %v1817 = vunpack.c.l.b16 %v407
      %v1818 = vunpack.c.l.b16 %v408
      %v1819 = vunpack.c.l.b16 %v409
      %v1820 = vunpack.c.l.b16 %v410
      %v1821 = vunpack.c.l.b16 %v411
      %v1822 = vunpack.c.l.b16 %v412
      %v1823 = vunpack.c.l.b16 %v413
      %v1824 = vunpack.c.l.b16 %v414
      %v1825 = vunpack.c.l.b16 %v415
      %v1826 = vunpack.c.l.b16 %v416
      %v1827 = vunpack.c.l.b16 %v417
      %v1828 = vunpack.c.l.b16 %v418
      %v1829 = vunpack.c.l.b16 %v419
      %v1830 = vpack.c.b16 %v1447, %v1814
      %v1831 = vpack.c.b16 %v1449, %v1815
      %v1832 = vpack.c.b16 %v1451, %v1816
      %v1833 = vpack.c.b16 %v1453, %v1817
      %v1834 = vpack.c.b16 %v1455, %v1818
      %v1835 = vpack.c.b16 %v1457, %v1819
      %v1836 = vpack.c.b16 %v1459, %v1820
      %v1837 = vpack.c.b16 %v1461, %v1821
      %v1838 = vpack.c.b16 %v1463, %v1822
      %v1839 = vpack.c.b16 %v1465, %v1823
      %v1840 = vpack.c.b16 %v1467, %v1824
      %v1841 = vpack.c.b16 %v1469, %v1825
      %v1842 = vpack.c.b16 %v1471, %v1826
      %v1843 = vpack.c.b16 %v1473, %v1827
      %v1844 = vpack.c.b16 %v1475, %v1828
      %v1845 = vpack.c.b16 %v1477, %v1829
      %v1846 = vrot.slane %v1830, 1
      %v1847 = vrot.slane %v1558, 1
      %v1848 = vsel %vm821, %v1846, %v1847
      %v1849 = vrot.slane %v1831, 1
      %v1850 = vrot.slane %v1559, 1
      %v1851 = vsel %vm821, %v1849, %v1850
      %v1852 = vrot.slane %v1832, 1
      %v1853 = vrot.slane %v1560, 1
      %v1854 = vsel %vm821, %v1852, %v1853
      %v1855 = vrot.slane %v1833, 1
      %v1856 = vrot.slane %v1561, 1
      %v1857 = vsel %vm821, %v1855, %v1856
      %v1858 = vrot.slane %v1834, 1
      %v1859 = vrot.slane %v1562, 1
      %v1860 = vsel %vm821, %v1858, %v1859
      %v1861 = vrot.slane %v1835, 1
      %v1862 = vrot.slane %v1563, 1
      %v1863 = vsel %vm821, %v1861, %v1862
      %v1864 = vrot.slane %v1836, 1
      %v1865 = vrot.slane %v1564, 1
      %v1866 = vsel %vm821, %v1864, %v1865
      %v1867 = vrot.slane %v1837, 1
      %v1868 = vrot.slane %v1565, 1
      %v1869 = vsel %vm821, %v1867, %v1868
      %v1870 = vrot.slane %v1838, 1
      %v1871 = vrot.slane %v1566, 1
      %v1872 = vsel %vm821, %v1870, %v1871
      %v1873 = vrot.slane %v1839, 1
      %v1874 = vrot.slane %v1567, 1
      %v1875 = vsel %vm821, %v1873, %v1874
      %v1876 = vrot.slane %v1840, 1
      %v1877 = vrot.slane %v1568, 1
      %v1878 = vsel %vm821, %v1876, %v1877
      %v1879 = vrot.slane %v1841, 1
      %v1880 = vrot.slane %v1569, 1
      %v1881 = vsel %vm821, %v1879, %v1880
      %v1882 = vrot.slane %v1842, 1
      %v1883 = vrot.slane %v1570, 1
      %v1884 = vsel %vm821, %v1882, %v1883
      %v1885 = vrot.slane %v1843, 1
      %v1886 = vrot.slane %v1571, 1
      %v1887 = vsel %vm821, %v1885, %v1886
      %v1888 = vrot.slane %v1844, 1
      %v1889 = vrot.slane %v1572, 1
      %v1890 = vsel %vm821, %v1888, %v1889
      %v1891 = vrot.slane %v1845, 1
      %v1892 = vrot.slane %v1573, 1
      %v1893 = vsel %vm821, %v1891, %v1892
      %1894 = vrot.lane.b32.xlu0 %v1848, 32
      %v1895 = vpop.permute.xlu0 %1894
      %1896 = vrot.lane.b32.xlu0 %v1851, 32
      %v1897 = vpop.permute.xlu0 %1896
      %1898 = vrot.lane.b32.xlu0 %v1854, 32
      %v1899 = vpop.permute.xlu0 %1898
      %1900 = vrot.lane.b32.xlu0 %v1857, 32
      %v1901 = vpop.permute.xlu0 %1900
      %1902 = vrot.lane.b32.xlu0 %v1860, 32
      %v1903 = vpop.permute.xlu0 %1902
      %1904 = vrot.lane.b32.xlu0 %v1863, 32
      %v1905 = vpop.permute.xlu0 %1904
      %1906 = vrot.lane.b32.xlu0 %v1866, 32
      %v1907 = vpop.permute.xlu0 %1906
      %1908 = vrot.lane.b32.xlu0 %v1869, 32
      %v1909 = vpop.permute.xlu0 %1908
      %1910 = vrot.lane.b32.xlu0 %v1872, 32
      %v1911 = vpop.permute.xlu0 %1910
      %1912 = vrot.lane.b32.xlu0 %v1875, 32
      %v1913 = vpop.permute.xlu0 %1912
      %1914 = vrot.lane.b32.xlu0 %v1878, 32
      %v1915 = vpop.permute.xlu0 %1914
      %1916 = vrot.lane.b32.xlu0 %v1881, 32
      %v1917 = vpop.permute.xlu0 %1916
      %1918 = vrot.lane.b32.xlu0 %v1884, 32
      %v1919 = vpop.permute.xlu0 %1918
      %1920 = vrot.lane.b32.xlu0 %v1887, 32
      %v1921 = vpop.permute.xlu0 %1920
      %1922 = vrot.lane.b32.xlu0 %v1890, 32
      %v1923 = vpop.permute.xlu0 %1922
      %1924 = vrot.lane.b32.xlu0 %v1893, 32
      %v1925 = vpop.permute.xlu0 %1924
      %vm1926 = vcmask 31744
      %v1928 = vsel %vm1926, %v484, %v742
      %v1930 = vsel %vm1926, %v485, %v744
      %v1932 = vsel %vm1926, %v486, %v746
      %v1934 = vsel %vm1926, %v487, %v748
      %v1936 = vsel %vm1926, %v488, %v750
      %v1938 = vsel %vm1926, %v489, %v752
      %v1940 = vsel %vm1926, %v490, %v754
      %v1942 = vsel %vm1926, %v491, %v756
      %v1944 = vsel %vm1926, %v492, %v758
      %v1946 = vsel %vm1926, %v493, %v760
      %v1948 = vsel %vm1926, %v494, %v762
      %v1950 = vsel %vm1926, %v495, %v764
      %v1952 = vsel %vm1926, %v496, %v766
      %v1954 = vsel %vm1926, %v497, %v768
      %v1956 = vsel %vm1926, %v498, %v770
      %v1958 = vsel %vm1926, %v499, %v772
      %vm1959 = vcmask 64512
      %v1961 = vsel %vm1959, %v1928, %v871
      %v1963 = vsel %vm1959, %v1930, %v873
      %v1965 = vsel %vm1959, %v1932, %v875
      %v1967 = vsel %vm1959, %v1934, %v877
      %v1969 = vsel %vm1959, %v1936, %v879
      %v1971 = vsel %vm1959, %v1938, %v881
      %v1973 = vsel %vm1959, %v1940, %v883
      %v1975 = vsel %vm1959, %v1942, %v885
      %v1977 = vsel %vm1959, %v1944, %v887
      %v1979 = vsel %vm1959, %v1946, %v889
      %v1981 = vsel %vm1959, %v1948, %v891
      %v1983 = vsel %vm1959, %v1950, %v893
      %v1985 = vsel %vm1959, %v1952, %v895
      %v1987 = vsel %vm1959, %v1954, %v897
      %v1989 = vsel %vm1959, %v1956, %v899
      %v1991 = vsel %vm1959, %v1958, %v901
      %vm1992 = vcmask 97280
      %v1994 = vsel %vm1992, %v1961, %v983
      %v1996 = vsel %vm1992, %v1963, %v985
      %v1998 = vsel %vm1992, %v1965, %v987
      %v2000 = vsel %vm1992, %v1967, %v989
      %v2002 = vsel %vm1992, %v1969, %v991
      %v2004 = vsel %vm1992, %v1971, %v993
      %v2006 = vsel %vm1992, %v1973, %v995
      %v2008 = vsel %vm1992, %v1975, %v997
      %v2010 = vsel %vm1992, %v1977, %v999
      %v2012 = vsel %vm1992, %v1979, %v1001
      %v2014 = vsel %vm1992, %v1981, %v1003
      %v2016 = vsel %vm1992, %v1983, %v1005
      %v2018 = vsel %vm1992, %v1985, %v1007
      %v2020 = vsel %vm1992, %v1987, %v1009
      %v2022 = vsel %vm1992, %v1989, %v1011
      %v2024 = vsel %vm1992, %v1991, %v1013
      %vm2025 = vcmask 130048
      %v2027 = vsel %vm2025, %v1994, %v1255
      %v2029 = vsel %vm2025, %v1996, %v1257
      %v2031 = vsel %vm2025, %v1998, %v1259
      %v2033 = vsel %vm2025, %v2000, %v1261
      %v2035 = vsel %vm2025, %v2002, %v1263
      %v2037 = vsel %vm2025, %v2004, %v1265
      %v2039 = vsel %vm2025, %v2006, %v1267
      %v2041 = vsel %vm2025, %v2008, %v1269
      %v2043 = vsel %vm2025, %v2010, %v1271
      %v2045 = vsel %vm2025, %v2012, %v1273
      %v2047 = vsel %vm2025, %v2014, %v1275
      %v2049 = vsel %vm2025, %v2016, %v1277
      %v2051 = vsel %vm2025, %v2018, %v1279
      %v2053 = vsel %vm2025, %v2020, %v1281
      %v2055 = vsel %vm2025, %v2022, %v1283
      %v2057 = vsel %vm2025, %v2024, %v1285
      %vm2058 = vcmask 162816
      %v2060 = vsel %vm2058, %v2027, %v1383
      %v2062 = vsel %vm2058, %v2029, %v1385
      %v2064 = vsel %vm2058, %v2031, %v1387
      %v2066 = vsel %vm2058, %v2033, %v1389
      %v2068 = vsel %vm2058, %v2035, %v1391
      %v2070 = vsel %vm2058, %v2037, %v1393
      %v2072 = vsel %vm2058, %v2039, %v1395
      %v2074 = vsel %vm2058, %v2041, %v1397
      %v2076 = vsel %vm2058, %v2043, %v1399
      %v2078 = vsel %vm2058, %v2045, %v1401
      %v2080 = vsel %vm2058, %v2047, %v1403
      %v2082 = vsel %vm2058, %v2049, %v1405
      %v2084 = vsel %vm2058, %v2051, %v1407
      %v2086 = vsel %vm2058, %v2053, %v1409
      %v2088 = vsel %vm2058, %v2055, %v1411
      %v2090 = vsel %vm2058, %v2057, %v1413
      %vm2091 = vcmask 195584
      %v2093 = vsel %vm2091, %v2060, %v1495
      %v2095 = vsel %vm2091, %v2062, %v1497
      %v2097 = vsel %vm2091, %v2064, %v1499
      %v2099 = vsel %vm2091, %v2066, %v1501
      %v2101 = vsel %vm2091, %v2068, %v1503
      %v2103 = vsel %vm2091, %v2070, %v1505
      %v2105 = vsel %vm2091, %v2072, %v1507
      %v2107 = vsel %vm2091, %v2074, %v1509
      %v2109 = vsel %vm2091, %v2076, %v1511
      %v2111 = vsel %vm2091, %v2078, %v1513
      %v2113 = vsel %vm2091, %v2080, %v1515
      %v2115 = vsel %vm2091, %v2082, %v1517
      %v2117 = vsel %vm2091, %v2084, %v1519
      %v2119 = vsel %vm2091, %v2086, %v1521
      %v2121 = vsel %vm2091, %v2088, %v1523
      %v2123 = vsel %vm2091, %v2090, %v1525
      %vm2124 = vcmask 228352
      %v2126 = vsel %vm2124, %v2093, %v1767
      %v2128 = vsel %vm2124, %v2095, %v1769
      %v2130 = vsel %vm2124, %v2097, %v1771
      %v2132 = vsel %vm2124, %v2099, %v1773
      %v2134 = vsel %vm2124, %v2101, %v1775
      %v2136 = vsel %vm2124, %v2103, %v1777
      %v2138 = vsel %vm2124, %v2105, %v1779
      %v2140 = vsel %vm2124, %v2107, %v1781
      %v2142 = vsel %vm2124, %v2109, %v1783
      %v2144 = vsel %vm2124, %v2111, %v1785
      %v2146 = vsel %vm2124, %v2113, %v1787
      %v2148 = vsel %vm2124, %v2115, %v1789
      %v2150 = vsel %vm2124, %v2117, %v1791
      %v2152 = vsel %vm2124, %v2119, %v1793
      %v2154 = vsel %vm2124, %v2121, %v1795
      %v2156 = vsel %vm2124, %v2123, %v1797
      %vm2157 = vcmask 261120
      %v2159 = vsel %vm2157, %v2126, %v1895
      %v2161 = vsel %vm2157, %v2128, %v1897
      %v2163 = vsel %vm2157, %v2130, %v1899
      %v2165 = vsel %vm2157, %v2132, %v1901
      %v2167 = vsel %vm2157, %v2134, %v1903
      %v2169 = vsel %vm2157, %v2136, %v1905
      %v2171 = vsel %vm2157, %v2138, %v1907
      %v2173 = vsel %vm2157, %v2140, %v1909
      %v2175 = vsel %vm2157, %v2142, %v1911
      %v2177 = vsel %vm2157, %v2144, %v1913
      %v2179 = vsel %vm2157, %v2146, %v1915
      %v2181 = vsel %vm2157, %v2148, %v1917
      %v2183 = vsel %vm2157, %v2150, %v1919
      %v2185 = vsel %vm2157, %v2152, %v1921
      %v2187 = vsel %vm2157, %v2154, %v1923
      %v2189 = vsel %vm2157, %v2156, %v1925
      %v2190 = vld [vmem:[%s1] sm:$0xf]
      %v2191 = vld [vmem:[%s1 + $0x4] sm:$0xf]
      %v2192 = vld [vmem:[%s1 + $0x8] sm:$0xf]
      %v2193 = vld [vmem:[%s1 + $0xc] sm:$0xf]
      %v2194 = vld [vmem:[%s1 + $0x10] sm:$0x3]
      %v2200 = vunpack.c.l.b16 %v2190
      %v2201 = vunpack.c.l.b16 %v2191
      %v2202 = vunpack.c.l.b16 %v2192
      %v2203 = vunpack.c.l.b16 %v2193
      %v2204 = vunpack.c.l.b16 %v2194
      %v2205 = vpack.c.b16 %v2201, %v2200
      %v2206 = vpack.c.b16 %v2203, %v2202
      %v2207 = vpack.c.b16 %v2204, %v2204
      %vm2210 = vcmask 293888
      %v2211 = vsel %vm2210, %v2159, 0
      %v2213 = vsel %vm2210, %v2161, 0
      %v2215 = vsel %vm2210, %v2163, 0
      %v2217 = vsel %vm2210, %v2165, 0
      %v2219 = vsel %vm2210, %v2167, 0
      %v2221 = vsel %vm2210, %v2169, 0
      %v2223 = vsel %vm2210, %v2171, 0
      %v2225 = vsel %vm2210, %v2173, 0
      %v2227 = vsel %vm2210, %v2175, 0
      %v2229 = vsel %vm2210, %v2177, 0
      %v2231 = vsel %vm2210, %v2179, 0
      %v2233 = vsel %vm2210, %v2181, 0
      %v2235 = vsel %vm2210, %v2183, 0
      %v2237 = vsel %vm2210, %v2185, 0
      %v2239 = vsel %vm2210, %v2187, 0
      %v2241 = vsel %vm2210, %v2189, 0
      %vm2243 = vcmask 1041408
      %v2245 = vsel %vm2243, %v2207, 0
      %2247 = vmatprep.subr.bf16.mxu0 0
      %2248 = vmatpush1.bf16.msra.mxu0 %v2205
      %2249 = vmatprep.subr.bf16.mxu0 0
      %2250 = vmatpush1.bf16.msra.mxu0 %v2206
      %2251 = vmatprep.subr.bf16.mxu0 0
      %2252 = vmatpush1.bf16.msra.mxu0 %v2245
      %2253 = vmatprep.subr.bf16.mxu0 0
      %2254 = vmatpush1.bf16.msra.mxu0 0
      %2255 = vmatprep.subr.bf16.mxu0 0
      %2256 = vmatpush1.bf16.msra.mxu0 0
      %2257 = vmatprep.subr.bf16.mxu0 0
      %2258 = vmatpush1.bf16.msra.mxu0 0
      %2259 = vmatprep.subr.bf16.mxu0 0
      %2260 = vmatpush1.bf16.msra.mxu0 0
      %2261 = vmatprep.subr.bf16.mxu0 0
      %2262 = vmatpush1.bf16.msra.mxu0 0
      %2263 = vmatprep.subr.bf16.mxu0 0
      %2264 = vmatpush1.bf16.msra.mxu0 0
      %2265 = vmatprep.subr.bf16.mxu0 0
      %2266 = vmatpush1.bf16.msra.mxu0 0
      %2267 = vmatprep.subr.bf16.mxu0 0
      %2268 = vmatpush1.bf16.msra.mxu0 0
      %2269 = vmatprep.subr.bf16.mxu0 0
      %2270 = vmatpush1.bf16.msra.mxu0 0
      %2271 = vmatprep.subr.bf16.mxu0 0
      %2272 = vmatpush1.bf16.msra.mxu0 0
      %2273 = vmatprep.subr.bf16.mxu0 0
      %2274 = vmatpush1.bf16.msra.mxu0 0
      %2275 = vmatprep.subr.bf16.mxu0 0
      %2276 = vmatpush1.bf16.msra.mxu0 0
      %2277 = vmatprep.subr.bf16.mxu0 0
      %2278 = vmatpush1.bf16.msra.mxu0 0
      %2279 = vmatprep.mubr.bf16.mxu0 0
      %2280 = vmatmul.mubr.bf16.gmra.mrb[0].mxu0 %v2211
      %v2281 = vpop.f32.mrb[0].mxu0
      %v2282 = vadd.f32 0.0, %v2281
      %v2283 = vpop.f32.mrb[0].mxu0
      %v2284 = vpop.f32.mrb[0].mxu0
      %v2285 = vadd.f32 0.0, %v2284
      %v2286 = vpop.f32.mrb[0].mxu0
      %2287 = vmatprep.mubr.bf16.mxu0 0
      %2288 = vmatmul.mubr.bf16.gmra.mrb[0].mxu0 %v2213
      %v2289 = vpop.f32.mrb[0].mxu0
      %v2290 = vadd.f32 0.0, %v2289
      %v2291 = vpop.f32.mrb[0].mxu0
      %v2292 = vpop.f32.mrb[0].mxu0
      %v2293 = vadd.f32 0.0, %v2292
      %v2294 = vpop.f32.mrb[0].mxu0
      %2295 = vmatprep.mubr.bf16.mxu0 0
      %2296 = vmatmul.mubr.bf16.gmra.mrb[0].mxu0 %v2215
      %v2297 = vpop.f32.mrb[0].mxu0
      %v2298 = vadd.f32 0.0, %v2297
      %v2299 = vpop.f32.mrb[0].mxu0
      %v2300 = vpop.f32.mrb[0].mxu0
      %v2301 = vadd.f32 0.0, %v2300
      %v2302 = vpop.f32.mrb[0].mxu0
      %2303 = vmatprep.mubr.bf16.mxu0 0
      %2304 = vmatmul.mubr.bf16.gmra.mrb[0].mxu0 %v2217
      %v2305 = vpop.f32.mrb[0].mxu0
      %v2306 = vadd.f32 0.0, %v2305
      %v2307 = vpop.f32.mrb[0].mxu0
      %v2308 = vpop.f32.mrb[0].mxu0
      %v2309 = vadd.f32 0.0, %v2308
      %v2310 = vpop.f32.mrb[0].mxu0
      %2311 = vmatprep.mubr.bf16.mxu0 0
      %2312 = vmatmul.mubr.bf16.gmra.mrb[0].mxu0 %v2219
      %v2313 = vpop.f32.mrb[0].mxu0
      %v2314 = vadd.f32 0.0, %v2313
      %v2315 = vpop.f32.mrb[0].mxu0
      %v2316 = vpop.f32.mrb[0].mxu0
      %v2317 = vadd.f32 0.0, %v2316
      %v2318 = vpop.f32.mrb[0].mxu0
      %2319 = vmatprep.mubr.bf16.mxu0 0
      %2320 = vmatmul.mubr.bf16.gmra.mrb[0].mxu0 %v2221
      %v2321 = vpop.f32.mrb[0].mxu0
      %v2322 = vadd.f32 0.0, %v2321
      %v2323 = vpop.f32.mrb[0].mxu0
      %v2324 = vpop.f32.mrb[0].mxu0
      %v2325 = vadd.f32 0.0, %v2324
      %v2326 = vpop.f32.mrb[0].mxu0
      %2327 = vmatprep.mubr.bf16.mxu0 0
      %2328 = vmatmul.mubr.bf16.gmra.mrb[0].mxu0 %v2223
      %v2329 = vpop.f32.mrb[0].mxu0
      %v2330 = vadd.f32 0.0, %v2329
      %v2331 = vpop.f32.mrb[0].mxu0
      %v2332 = vpop.f32.mrb[0].mxu0
      %v2333 = vadd.f32 0.0, %v2332
      %v2334 = vpop.f32.mrb[0].mxu0
      %2335 = vmatprep.mubr.bf16.mxu0 0
      %2336 = vmatmul.mubr.bf16.gmra.mrb[0].mxu0 %v2225
      %v2337 = vpop.f32.mrb[0].mxu0
      %v2338 = vadd.f32 0.0, %v2337
      %v2339 = vpop.f32.mrb[0].mxu0
      %v2340 = vpop.f32.mrb[0].mxu0
      %v2341 = vadd.f32 0.0, %v2340
      %v2342 = vpop.f32.mrb[0].mxu0
      %2343 = vmatprep.mubr.bf16.mxu0 0
      %2344 = vmatmul.mubr.bf16.gmra.mrb[0].mxu0 %v2227
      %v2345 = vpop.f32.mrb[0].mxu0
      %v2346 = vadd.f32 0.0, %v2345
      %v2347 = vpop.f32.mrb[0].mxu0
      %v2348 = vpop.f32.mrb[0].mxu0
      %v2349 = vadd.f32 0.0, %v2348
      %v2350 = vpop.f32.mrb[0].mxu0
      %2351 = vmatprep.mubr.bf16.mxu0 0
      %2352 = vmatmul.mubr.bf16.gmra.mrb[0].mxu0 %v2229
      %v2353 = vpop.f32.mrb[0].mxu0
      %v2354 = vadd.f32 0.0, %v2353
      %v2355 = vpop.f32.mrb[0].mxu0
      %v2356 = vpop.f32.mrb[0].mxu0
      %v2357 = vadd.f32 0.0, %v2356
      %v2358 = vpop.f32.mrb[0].mxu0
      %2359 = vmatprep.mubr.bf16.mxu0 0
      %2360 = vmatmul.mubr.bf16.gmra.mrb[0].mxu0 %v2231
      %v2361 = vpop.f32.mrb[0].mxu0
      %v2362 = vadd.f32 0.0, %v2361
      %v2363 = vpop.f32.mrb[0].mxu0
      %v2364 = vpop.f32.mrb[0].mxu0
      %v2365 = vadd.f32 0.0, %v2364
      %v2366 = vpop.f32.mrb[0].mxu0
      %2367 = vmatprep.mubr.bf16.mxu0 0
      %2368 = vmatmul.mubr.bf16.gmra.mrb[0].mxu0 %v2233
      %v2369 = vpop.f32.mrb[0].mxu0
      %v2370 = vadd.f32 0.0, %v2369
      %v2371 = vpop.f32.mrb[0].mxu0
      %v2372 = vpop.f32.mrb[0].mxu0
      %v2373 = vadd.f32 0.0, %v2372
      %v2374 = vpop.f32.mrb[0].mxu0
      %2375 = vmatprep.mubr.bf16.mxu0 0
      %2376 = vmatmul.mubr.bf16.gmra.mrb[0].mxu0 %v2235
      %v2377 = vpop.f32.mrb[0].mxu0
      %v2378 = vadd.f32 0.0, %v2377
      %v2379 = vpop.f32.mrb[0].mxu0
      %v2380 = vpop.f32.mrb[0].mxu0
      %v2381 = vadd.f32 0.0, %v2380
      %v2382 = vpop.f32.mrb[0].mxu0
      %2383 = vmatprep.mubr.bf16.mxu0 0
      %2384 = vmatmul.mubr.bf16.gmra.mrb[0].mxu0 %v2237
      %v2385 = vpop.f32.mrb[0].mxu0
      %v2386 = vadd.f32 0.0, %v2385
      %v2387 = vpop.f32.mrb[0].mxu0
      %v2388 = vpop.f32.mrb[0].mxu0
      %v2389 = vadd.f32 0.0, %v2388
      %v2390 = vpop.f32.mrb[0].mxu0
      %2391 = vmatprep.mubr.bf16.mxu0 0
      %2392 = vmatmul.mubr.bf16.gmra.mrb[0].mxu0 %v2239
      %v2393 = vpop.f32.mrb[0].mxu0
      %v2394 = vadd.f32 0.0, %v2393
      %v2395 = vpop.f32.mrb[0].mxu0
      %v2396 = vpop.f32.mrb[0].mxu0
      %v2397 = vadd.f32 0.0, %v2396
      %v2398 = vpop.f32.mrb[0].mxu0
      %2399 = vmatprep.mubr.bf16.mxu0 0
      %2400 = vmatmul.mubr.bf16.gmra.mrb[0].mxu0 %v2241
      %v2401 = vpop.f32.mrb[0].mxu0
      %v2402 = vadd.f32 0.0, %v2401
      %v2403 = vpop.f32.mrb[0].mxu0
      %v2404 = vpop.f32.mrb[0].mxu0
      %v2405 = vadd.f32 0.0, %v2404
      %v2406 = vpop.f32.mrb[0].mxu0
      %2407 = vdwg.mxu0
      %v2408 = vpack.c.bf16 %v2285, %v2282
      %v2409 = vpack.c.bf16 %v2293, %v2290
      %v2410 = vpack.c.bf16 %v2301, %v2298
      %v2411 = vpack.c.bf16 %v2309, %v2306
      %v2412 = vpack.c.bf16 %v2317, %v2314
      %v2413 = vpack.c.bf16 %v2325, %v2322
      %v2414 = vpack.c.bf16 %v2333, %v2330
      %v2415 = vpack.c.bf16 %v2341, %v2338
      %v2416 = vpack.c.bf16 %v2349, %v2346
      %v2417 = vpack.c.bf16 %v2357, %v2354
      %v2418 = vpack.c.bf16 %v2365, %v2362
      %v2419 = vpack.c.bf16 %v2373, %v2370
      %v2420 = vpack.c.bf16 %v2381, %v2378
      %v2421 = vpack.c.bf16 %v2389, %v2386
      %v2422 = vpack.c.bf16 %v2397, %v2394
      %v2423 = vpack.c.bf16 %v2405, %v2402
      %v2440 = vunpack.c.l.b16 %v2408
      %v2441 = vunpack.c.h.b16 %v2408
      %v2442 = vunpack.c.l.b16 %v2409
      %v2443 = vunpack.c.h.b16 %v2409
      %v2444 = vunpack.c.l.b16 %v2410
      %v2445 = vunpack.c.h.b16 %v2410
      %v2446 = vunpack.c.l.b16 %v2411
      %v2447 = vunpack.c.h.b16 %v2411
      %v2448 = vunpack.c.l.b16 %v2412
      %v2449 = vunpack.c.h.b16 %v2412
      %v2450 = vunpack.c.l.b16 %v2413
      %v2451 = vunpack.c.h.b16 %v2413
      %v2452 = vunpack.c.l.b16 %v2414
      %v2453 = vunpack.c.h.b16 %v2414
      %v2454 = vunpack.c.l.b16 %v2415
      %v2455 = vunpack.c.h.b16 %v2415
      %v2456 = vunpack.c.l.b16 %v2416
      %v2457 = vunpack.c.h.b16 %v2416
      %v2458 = vunpack.c.l.b16 %v2417
      %v2459 = vunpack.c.h.b16 %v2417
      %v2460 = vunpack.c.l.b16 %v2418
      %v2461 = vunpack.c.h.b16 %v2418
      %v2462 = vunpack.c.l.b16 %v2419
      %v2463 = vunpack.c.h.b16 %v2419
      %v2464 = vunpack.c.l.b16 %v2420
      %v2465 = vunpack.c.h.b16 %v2420
      %v2466 = vunpack.c.l.b16 %v2421
      %v2467 = vunpack.c.h.b16 %v2421
      %v2468 = vunpack.c.l.b16 %v2422
      %v2469 = vunpack.c.h.b16 %v2422
      %v2470 = vunpack.c.l.b16 %v2423
      %v2471 = vunpack.c.h.b16 %v2423
      %v2472 = vpack.c.b16 %v2440, %v2440
      %v2473 = vpack.c.b16 %v2441, %v2441
      %v2474 = vpack.c.b16 %v2442, %v2442
      %v2475 = vpack.c.b16 %v2443, %v2443
      %v2476 = vpack.c.b16 %v2444, %v2444
      %v2477 = vpack.c.b16 %v2445, %v2445
      %v2478 = vpack.c.b16 %v2446, %v2446
      %v2479 = vpack.c.b16 %v2447, %v2447
      %v2480 = vpack.c.b16 %v2448, %v2448
      %v2481 = vpack.c.b16 %v2449, %v2449
      %v2482 = vpack.c.b16 %v2450, %v2450
      %v2483 = vpack.c.b16 %v2451, %v2451
      %v2484 = vpack.c.b16 %v2452, %v2452
      %v2485 = vpack.c.b16 %v2453, %v2453
      %v2486 = vpack.c.b16 %v2454, %v2454
      %v2487 = vpack.c.b16 %v2455, %v2455
      %v2488 = vpack.c.b16 %v2456, %v2456
      %v2489 = vpack.c.b16 %v2457, %v2457
      %v2490 = vpack.c.b16 %v2458, %v2458
      %v2491 = vpack.c.b16 %v2459, %v2459
      %v2492 = vpack.c.b16 %v2460, %v2460
      %v2493 = vpack.c.b16 %v2461, %v2461
      %v2494 = vpack.c.b16 %v2462, %v2462
      %v2495 = vpack.c.b16 %v2463, %v2463
      %v2496 = vpack.c.b16 %v2464, %v2464
      %v2497 = vpack.c.b16 %v2465, %v2465
      %v2498 = vpack.c.b16 %v2466, %v2466
      %v2499 = vpack.c.b16 %v2467, %v2467
      %v2500 = vpack.c.b16 %v2468, %v2468
      %v2501 = vpack.c.b16 %v2469, %v2469
      %v2502 = vpack.c.b16 %v2470, %v2470
      %v2503 = vpack.c.b16 %v2471, %v2471
      %vm2536 = vcmask 60416
      %2537 = vst.msk [vmem:[%s206] sm:$0xf] %vm2536, %v2472
      %2538 = vst.msk [vmem:[%s206 + $0x4] sm:$0xf] %vm2536, %v2473
      %2539 = vst.msk [vmem:[%s206 + $0x8] sm:$0xf] %vm2536, %v2474
      %2540 = vst.msk [vmem:[%s206 + $0xc] sm:$0xf] %vm2536, %v2475
      %2541 = vst.msk [vmem:[%s206 + $0x10] sm:$0xf] %vm2536, %v2476
      %2542 = vst.msk [vmem:[%s206 + $0x14] sm:$0xf] %vm2536, %v2477
      %2543 = vst.msk [vmem:[%s206 + $0x18] sm:$0xf] %vm2536, %v2478
      %2544 = vst.msk [vmem:[%s206 + $0x1c] sm:$0xf] %vm2536, %v2479
      %2545 = vst.msk [vmem:[%s206 + $0x20] sm:$0xf] %vm2536, %v2480
      %2546 = vst.msk [vmem:[%s206 + $0x24] sm:$0xf] %vm2536, %v2481
      %2547 = vst.msk [vmem:[%s206 + $0x28] sm:$0xf] %vm2536, %v2482
      %2548 = vst.msk [vmem:[%s206 + $0x2c] sm:$0xf] %vm2536, %v2483
      %2549 = vst.msk [vmem:[%s206 + $0x30] sm:$0xf] %vm2536, %v2484
      %2550 = vst.msk [vmem:[%s206 + $0x34] sm:$0xf] %vm2536, %v2485
      %2551 = vst.msk [vmem:[%s206 + $0x38] sm:$0xf] %vm2536, %v2486
      %2552 = vst.msk [vmem:[%s206 + $0x3c] sm:$0xf] %vm2536, %v2487
      %2553 = vst.msk [vmem:[%s206 + $0x40] sm:$0xf] %vm2536, %v2488
      %2554 = vst.msk [vmem:[%s206 + $0x44] sm:$0xf] %vm2536, %v2489
      %2555 = vst.msk [vmem:[%s206 + $0x48] sm:$0xf] %vm2536, %v2490
      %2556 = vst.msk [vmem:[%s206 + $0x4c] sm:$0xf] %vm2536, %v2491
      %2557 = vst.msk [vmem:[%s206 + $0x50] sm:$0xf] %vm2536, %v2492
      %2558 = vst.msk [vmem:[%s206 + $0x54] sm:$0xf] %vm2536, %v2493
      %2559 = vst.msk [vmem:[%s206 + $0x58] sm:$0xf] %vm2536, %v2494
      %2560 = vst.msk [vmem:[%s206 + $0x5c] sm:$0xf] %vm2536, %v2495
      %2561 = vst.msk [vmem:[%s206 + $0x60] sm:$0xf] %vm2536, %v2496
      %2562 = vst.msk [vmem:[%s206 + $0x64] sm:$0xf] %vm2536, %v2497
      %2563 = vst.msk [vmem:[%s206 + $0x68] sm:$0xf] %vm2536, %v2498
      %2564 = vst.msk [vmem:[%s206 + $0x6c] sm:$0xf] %vm2536, %v2499
      %2565 = vst.msk [vmem:[%s206 + $0x70] sm:$0xf] %vm2536, %v2500
      %2566 = vst.msk [vmem:[%s206 + $0x74] sm:$0xf] %vm2536, %v2501
      %2567 = vst.msk [vmem:[%s206 + $0x78] sm:$0xf] %vm2536, %v2502
      %2568 = vst.msk [vmem:[%s206 + $0x7c] sm:$0xf] %vm2536, %v2503
      %v2569 = vsel %vm1959, %v2282, 0.0
      %v2570 = vsel %vm1959, %v2285, 0.0
      %v2571 = vadd.f32 %v2569, %v2570
      %v2572 = vsel %vm1959, %v2290, 0.0
      %v2573 = vadd.f32 %v2571, %v2572
      %v2574 = vsel %vm1959, %v2293, 0.0
      %v2575 = vadd.f32 %v2573, %v2574
      %v2576 = vsel %vm1959, %v2298, 0.0
      %v2577 = vadd.f32 %v2575, %v2576
      %v2578 = vsel %vm1959, %v2301, 0.0
      %v2579 = vadd.f32 %v2577, %v2578
      %v2580 = vsel %vm1959, %v2306, 0.0
      %v2581 = vadd.f32 %v2579, %v2580
      %v2582 = vsel %vm1959, %v2309, 0.0
      %v2583 = vadd.f32 %v2581, %v2582
      %v2584 = vsel %vm1959, %v2314, 0.0
      %v2585 = vadd.f32 %v2583, %v2584
      %v2586 = vsel %vm1959, %v2317, 0.0
      %v2587 = vadd.f32 %v2585, %v2586
      %v2588 = vsel %vm1959, %v2322, 0.0
      %v2589 = vadd.f32 %v2587, %v2588
      %v2590 = vsel %vm1959, %v2325, 0.0
      %v2591 = vadd.f32 %v2589, %v2590
      %v2592 = vsel %vm1959, %v2330, 0.0
      %v2593 = vadd.f32 %v2591, %v2592
      %v2594 = vsel %vm1959, %v2333, 0.0
      %v2595 = vadd.f32 %v2593, %v2594
      %v2596 = vsel %vm1959, %v2338, 0.0
      %v2597 = vadd.f32 %v2595, %v2596
      %v2598 = vsel %vm1959, %v2341, 0.0
      %v2599 = vadd.f32 %v2597, %v2598
      %v2600 = vsel %vm1959, %v2346, 0.0
      %v2601 = vadd.f32 %v2599, %v2600
      %v2602 = vsel %vm1959, %v2349, 0.0
      %v2603 = vadd.f32 %v2601, %v2602
      %v2604 = vsel %vm1959, %v2354, 0.0
      %v2605 = vadd.f32 %v2603, %v2604
      %v2606 = vsel %vm1959, %v2357, 0.0
      %v2607 = vadd.f32 %v2605, %v2606
      %v2608 = vsel %vm1959, %v2362, 0.0
      %v2609 = vadd.f32 %v2607, %v2608
      %v2610 = vsel %vm1959, %v2365, 0.0
      %v2611 = vadd.f32 %v2609, %v2610
      %v2612 = vsel %vm1959, %v2370, 0.0
      %v2613 = vadd.f32 %v2611, %v2612
      %v2614 = vsel %vm1959, %v2373, 0.0
      %v2615 = vadd.f32 %v2613, %v2614
      %v2616 = vsel %vm1959, %v2378, 0.0
      %v2617 = vadd.f32 %v2615, %v2616
      %v2618 = vsel %vm1959, %v2381, 0.0
      %v2619 = vadd.f32 %v2617, %v2618
      %v2620 = vsel %vm1959, %v2386, 0.0
      %v2621 = vadd.f32 %v2619, %v2620
      %v2622 = vsel %vm1959, %v2389, 0.0
      %v2623 = vadd.f32 %v2621, %v2622
      %v2624 = vsel %vm1959, %v2394, 0.0
      %v2625 = vadd.f32 %v2623, %v2624
      %v2626 = vsel %vm1959, %v2397, 0.0
      %v2627 = vadd.f32 %v2625, %v2626
      %v2628 = vsel %vm1959, %v2402, 0.0
      %v2629 = vadd.f32 %v2627, %v2628
      %v2630 = vsel %vm1959, %v2405, 0.0
      %v2631 = vadd.f32 %v2629, %v2630
      %v2632 = vrot.slane %v2631, 4
      %v2633 = vadd.f32 %v2631, %v2632
      %v2634 = vrot.slane %v2633, 2
      %v2635 = vadd.f32 %v2633, %v2634
      %v2636 = vrot.slane %v2635, 1
      %v2637 = vadd.f32 %v2635, %v2636
      %v2638 = vmul.f32 %v2282, %v2282
      %v2639 = vmul.f32 %v2285, %v2285
      %v2640 = vmul.f32 %v2290, %v2290
      %v2641 = vmul.f32 %v2293, %v2293
      %v2642 = vmul.f32 %v2298, %v2298
      %v2643 = vmul.f32 %v2301, %v2301
      %v2644 = vmul.f32 %v2306, %v2306
      %v2645 = vmul.f32 %v2309, %v2309
      %v2646 = vmul.f32 %v2314, %v2314
      %v2647 = vmul.f32 %v2317, %v2317
      %v2648 = vmul.f32 %v2322, %v2322
      %v2649 = vmul.f32 %v2325, %v2325
      %v2650 = vmul.f32 %v2330, %v2330
      %v2651 = vmul.f32 %v2333, %v2333
      %v2652 = vmul.f32 %v2338, %v2338
      %v2653 = vmul.f32 %v2341, %v2341
      %v2654 = vmul.f32 %v2346, %v2346
      %v2655 = vmul.f32 %v2349, %v2349
      %v2656 = vmul.f32 %v2354, %v2354
      %v2657 = vmul.f32 %v2357, %v2357
      %v2658 = vmul.f32 %v2362, %v2362
      %v2659 = vmul.f32 %v2365, %v2365
      %v2660 = vmul.f32 %v2370, %v2370
      %v2661 = vmul.f32 %v2373, %v2373
      %v2662 = vmul.f32 %v2378, %v2378
      %v2663 = vmul.f32 %v2381, %v2381
      %v2664 = vmul.f32 %v2386, %v2386
      %v2665 = vmul.f32 %v2389, %v2389
      %v2666 = vmul.f32 %v2394, %v2394
      %v2667 = vmul.f32 %v2397, %v2397
      %v2668 = vmul.f32 %v2402, %v2402
      %v2669 = vmul.f32 %v2405, %v2405
      %v2670 = vsel %vm1959, %v2638, 0.0
      %v2671 = vsel %vm1959, %v2639, 0.0
      %v2672 = vadd.f32 %v2670, %v2671
      %v2673 = vsel %vm1959, %v2640, 0.0
      %v2674 = vadd.f32 %v2672, %v2673
      %v2675 = vsel %vm1959, %v2641, 0.0
      %v2676 = vadd.f32 %v2674, %v2675
      %v2677 = vsel %vm1959, %v2642, 0.0
      %v2678 = vadd.f32 %v2676, %v2677
      %v2679 = vsel %vm1959, %v2643, 0.0
      %v2680 = vadd.f32 %v2678, %v2679
      %v2681 = vsel %vm1959, %v2644, 0.0
      %v2682 = vadd.f32 %v2680, %v2681
      %v2683 = vsel %vm1959, %v2645, 0.0
      %v2684 = vadd.f32 %v2682, %v2683
      %v2685 = vsel %vm1959, %v2646, 0.0
      %v2686 = vadd.f32 %v2684, %v2685
      %v2687 = vsel %vm1959, %v2647, 0.0
      %v2688 = vadd.f32 %v2686, %v2687
      %v2689 = vsel %vm1959, %v2648, 0.0
      %v2690 = vadd.f32 %v2688, %v2689
      %v2691 = vsel %vm1959, %v2649, 0.0
      %v2692 = vadd.f32 %v2690, %v2691
      %v2693 = vsel %vm1959, %v2650, 0.0
      %v2694 = vadd.f32 %v2692, %v2693
      %v2695 = vsel %vm1959, %v2651, 0.0
      %v2696 = vadd.f32 %v2694, %v2695
      %v2697 = vsel %vm1959, %v2652, 0.0
      %v2698 = vadd.f32 %v2696, %v2697
      %v2699 = vsel %vm1959, %v2653, 0.0
      %v2700 = vadd.f32 %v2698, %v2699
      %v2701 = vsel %vm1959, %v2654, 0.0
      %v2702 = vadd.f32 %v2700, %v2701
      %v2703 = vsel %vm1959, %v2655, 0.0
      %v2704 = vadd.f32 %v2702, %v2703
      %v2705 = vsel %vm1959, %v2656, 0.0
      %v2706 = vadd.f32 %v2704, %v2705
      %v2707 = vsel %vm1959, %v2657, 0.0
      %v2708 = vadd.f32 %v2706, %v2707
      %v2709 = vsel %vm1959, %v2658, 0.0
      %v2710 = vadd.f32 %v2708, %v2709
      %v2711 = vsel %vm1959, %v2659, 0.0
      %v2712 = vadd.f32 %v2710, %v2711
      %v2713 = vsel %vm1959, %v2660, 0.0
      %v2714 = vadd.f32 %v2712, %v2713
      %v2715 = vsel %vm1959, %v2661, 0.0
      %v2716 = vadd.f32 %v2714, %v2715
      %v2717 = vsel %vm1959, %v2662, 0.0
      %v2718 = vadd.f32 %v2716, %v2717
      %v2719 = vsel %vm1959, %v2663, 0.0
      %v2720 = vadd.f32 %v2718, %v2719
      %v2721 = vsel %vm1959, %v2664, 0.0
      %v2722 = vadd.f32 %v2720, %v2721
      %v2723 = vsel %vm1959, %v2665, 0.0
      %v2724 = vadd.f32 %v2722, %v2723
      %v2725 = vsel %vm1959, %v2666, 0.0
      %v2726 = vadd.f32 %v2724, %v2725
      %v2727 = vsel %vm1959, %v2667, 0.0
      %v2728 = vadd.f32 %v2726, %v2727
      %v2729 = vsel %vm1959, %v2668, 0.0
      %v2730 = vadd.f32 %v2728, %v2729
      %v2731 = vsel %vm1959, %v2669, 0.0
      %v2732 = vadd.f32 %v2730, %v2731
      %v2733 = vrot.slane %v2732, 4
      %v2734 = vadd.f32 %v2732, %v2733
      %v2735 = vrot.slane %v2734, 2
      %v2736 = vadd.f32 %v2734, %v2735
      %v2737 = vrot.slane %v2736, 1
      %v2738 = vadd.f32 %v2736, %v2737
      %vm2739 = vcmask 1040384
      %v2740 = vsel %vm2739, %v2637, %v2738
      %vm2741 = vcmask 58368
      %2742 = vst.msk [vmem:[%s214] sm:$0x3] %vm2741, %v2740
      %s2743 = smul.u32 16, %s20
      %p2744 = scmp.lt.s32.totalorder %s19, 1
      %s2745 = scalar_select %p2744, %s19, 1
      %p2746 = scmp.lt.s32.totalorder %s2743, 15
      %s2747 = scalar_select %p2746, %s2743, 15
      %s2748 = smul.addr %s2747, 2
      %s2749 = smul.addr %s2745, 32
      %s2750 = sadd.s32 %s2748, %s2749
      %s2751 = smul.addr %s2750, 4
      %s2752 = scalar_lea.vmem %s2, %s2751
      %p2753 = scmp.lt.s32.totalorder %s19, 1
      %s2754 = scalar_select %p2753, %s19, 1
      %p2755 = scmp.lt.s32.totalorder %s20, 0
      %s2756 = scalar_select %p2755, %s20, 0
      %s2757 = sadd.s32 %s2756, %s2754
      %s2758 = smul.addr %s2757, 2
      %s2759 = scalar_lea.vmem %s3, %s2758
      // Predicated region
      $region29: #{conv_dropout_norm_relu.2} parent=27 // pred_check
        %p2760 = pneg %p94
      $region30: #{conv_dropout_norm_relu.2} parent=27 // pred_check_branch
        %2762 = sbr.rel (%p2760) target = $region32
      $region31: #{conv_dropout_norm_relu.2} parent=27 // pred_region
        %s2763 = smul.u32 16, %s20
      $region32: #{conv_dropout_norm_relu.2} parent=27 // pred_fallthru
        _
      // Predicated region
      $region33: #{conv_dropout_norm_relu.2} parent=27 // pred_check
        %p2764 = pneg %p122
      $region34: #{conv_dropout_norm_relu.2} parent=27 // pred_check_branch
        %2766 = sbr.rel (%p2764) target = $region36
      $region35: #{conv_dropout_norm_relu.2} parent=27 // pred_region
        _
      $region36: #{conv_dropout_norm_relu.2} parent=27 // pred_fallthru
        _
    $region28: #{conv_dropout_norm_relu.2} parent=5 // pred_fallthru
      _
    %p2767 = scmp.le.s32.totalorder 2, %s10
    // Predicated region
    $region37: #{conv_dropout_norm_relu.2} parent=5 // pred_check
      %p2768 = pneg %p2767
    $region38: #{conv_dropout_norm_relu.2} parent=5 // pred_check_branch
      %2770 = sbr.rel (%p2768) target = $region40
    $region39: #{conv_dropout_norm_relu.2} parent=5 // pred_region
      %s2771 = ssub.s32 %s10, 2
      // Predicated region
      $region41: #{conv_dropout_norm_relu.2} parent=39 // pred_check
        %p2772 = pneg %p100
      $region42: #{conv_dropout_norm_relu.2} parent=39 // pred_check_branch
        %2774 = sbr.rel (%p2772) target = $region44
      $region43: #{conv_dropout_norm_relu.2} parent=39 // pred_region
        %s2775 = smul.u32 16, %s22
        %p2776 = scmp.lt.s32.totalorder %s21, 1
        %s2777 = scalar_select %p2776, %s21, 1
        %p2778 = scmp.lt.s32.totalorder %s2775, 15
        %s2779 = scalar_select %p2778, %s2775, 15
        %s2780 = smul.addr %s2779, 2
        %s2781 = smul.addr %s2777, 32
        %s2782 = sadd.s32 %s2780, %s2781
        %s2783 = smul.addr %s2782, 4
        %s2784 = scalar_lea.vmem %s2, %s2783
      $region44: #{conv_dropout_norm_relu.2} parent=39 // pred_fallthru
        _
      // Predicated region
      $region45: #{conv_dropout_norm_relu.2} parent=39 // pred_check
        %p2785 = pneg %p128
      $region46: #{conv_dropout_norm_relu.2} parent=39 // pred_check_branch
        %2787 = sbr.rel (%p2785) target = $region48
      $region47: #{conv_dropout_norm_relu.2} parent=39 // pred_region
        %p2788 = scmp.lt.s32.totalorder %s21, 1
        %s2789 = scalar_select %p2788, %s21, 1
        %p2790 = scmp.lt.s32.totalorder %s22, 0
        %s2791 = scalar_select %p2790, %s22, 0
        %s2792 = sadd.s32 %s2791, %s2789
        %s2793 = smul.addr %s2792, 2
        %s2794 = scalar_lea.vmem %s3, %s2793
      $region48: #{conv_dropout_norm_relu.2} parent=39 // pred_fallthru
        _
    $region40: #{conv_dropout_norm_relu.2} parent=5 // pred_fallthru
      _
  $region6: #{conv_dropout_norm_relu.2} parent=0 // loop_footer
    %s14 = sadd.s32 1, %s10
  $region7: #{conv_dropout_norm_relu.2} parent=0 // loop_footer_branch
    %9 = sbr.rel target = $region3
  $region8: #{conv_dropout_norm_relu.2} parent=0 // loop_exit
    _

</llo_original>
